<compile_context>
chip_gen: v6e
topology: v6e:2x2x1
jax: 0.10.0
libtpu: 0.0.40
codegen_flags: <defaults>
</compile_context>

<pallas_src>
import functools

import jax
import jax.numpy as jnp
from jax import lax
from jax.experimental import pallas as pl
from jax.experimental.pallas import tpu as pltpu

EPS = 1e-5
LANE = 128


def _round_up(x, m):
    return (x + m - 1) // m * m


def _vmem_limit_bytes():
    # ~75% of physical VMEM: v5e/v6e 128 MiB -> 96 MiB, v7x 64 MiB -> 48 MiB.
    try:
        cap = int(pltpu.get_tpu_info().vmem_capacity_bytes)
        return max(32 * 1024 * 1024, cap * 3 // 4)
    except Exception:
        return 48 * 1024 * 1024  # safe on every generation


def _pick_tile_h(H, W, c_max, budget_bytes=2 * 1024 * 1024):
    """Largest divisor of H whose (tile_h, W, c_max) f32 block fits the budget."""
    row_bytes = W * c_max * 4
    best = 1
    for t in range(1, H + 1):
        if H % t == 0 and t * row_bytes <= budget_bytes:
            best = t
    return best


# --------------------------- Pass 1: conv1 (1x1) + stats ---------------------
def _conv1x1_stats_kernel(x_ref, w_ref, y_ref, st_ref):
    # x_ref: (1, th, W, Cin) f32   w_ref: (Cin, Cout) bf16   y_ref: bf16
    _, th, W, Cin = x_ref.shape
    Cout = w_ref.shape[1]
    M = th * W
    x = x_ref[...].reshape(M, Cin).astype(jnp.bfloat16)
    y = jnp.dot(x, w_ref[...], preferred_element_type=jnp.float32)
    y_ref[...] = y.reshape(1, th, W, Cout).astype(y_ref.dtype)
    s = jnp.sum(y, axis=0, keepdims=True)            # (1, Cout)  (f32 acc)
    ss = jnp.sum(y * y, axis=0, keepdims=True)       # (1, Cout)
    st_ref[...] = jnp.concatenate([s, ss], axis=0).reshape(1, 1, 2, Cout)


# ------------------ Pass 2: BN1+ReLU -> conv2 (3x3, banded) + stats ----------
def _bn_relu_conv3x3_stats_kernel(band_ref, top_ref, bot_ref, scale_ref,
                                  shift_ref, w_ref, y2_ref, st_ref):
    # band_ref: (1, th, W, C)  bf16 pre-BN conv1 rows of this band.
    # top_ref/bot_ref: (1, 1, W, C) bf16 neighbor rows (duplicate row at the
    #   image border; zero-masked below so the 3x3 conv sees SAME zero padding
    #   of the *post*-BN/ReLU activation).
    # w_ref: (9, C, Cout) bf16  (HWIO (3,3,C,Cout) reshaped; index = kh*3+kw).
    f32 = jnp.float32
    _, th, W, C = band_ref.shape
    Cout = w_ref.shape[2]
    Hp = th + 2
    M = th * W

    hb = pl.program_id(1)
    scale = scale_ref[...]
    shift = shift_ref[...]

    band = jnp.maximum(band_ref[...].astype(f32) * scale + shift, 0.0)
    top = jnp.maximum(top_ref[...].astype(f32) * scale + shift, 0.0)
    bot = jnp.maximum(bot_ref[...].astype(f32) * scale + shift, 0.0)
    top = jnp.where(hb > 0, top, 0.0)                             # image top
    bot = jnp.where(hb < pl.num_programs(1) - 1, bot, 0.0)        # image bottom

    h = jnp.concatenate([top, band, bot], axis=1)                 # (1, Hp, W, C)
    zcol = jnp.zeros((1, Hp, 1, C), f32)
    hp = jnp.concatenate([zcol, h, zcol], axis=2).astype(jnp.bfloat16)

    # 9 accumulating K=C matmuls (no im2col slab; MRB-friendly on v7x).
    acc = jnp.zeros((M, Cout), jnp.float32)
    for k in range(9):
        kh, kw = divmod(k, 3)
        tap = hp[:, kh:kh + th, kw:kw + W, :].reshape(M, C)
        acc = acc + jnp.dot(tap, w_ref[k], preferred_element_type=jnp.float32)

    y2_ref[...] = acc.reshape(1, th, W, Cout).astype(y2_ref.dtype)
    s = jnp.sum(acc, axis=0, keepdims=True)
    ss = jnp.sum(acc * acc, axis=0, keepdims=True)
    st_ref[...] = jnp.concatenate([s, ss], axis=0).reshape(1, 1, 2, Cout)


# ------------------ Pass 3: BN2+ReLU -> conv3 (1x1) + stats ------------------
def _bn_relu_conv1x1_stats_kernel(y2_ref, scale_ref, shift_ref, w_ref,
                                  y3_ref, st_ref):
    _, th, W, C = y2_ref.shape
    Cout = w_ref.shape[1]
    M = th * W
    h = jnp.maximum(
        y2_ref[...].astype(jnp.float32).reshape(M, C) * scale_ref[...]
        + shift_ref[...], 0.0)
    y3 = jnp.dot(h.astype(jnp.bfloat16), w_ref[...],
                 preferred_element_type=jnp.float32)
    y3_ref[...] = y3.reshape(1, th, W, Cout).astype(y3_ref.dtype)
    s = jnp.sum(y3, axis=0, keepdims=True)
    ss = jnp.sum(y3 * y3, axis=0, keepdims=True)
    st_ref[...] = jnp.concatenate([s, ss], axis=0).reshape(1, 1, 2, Cout)


# ------------------ Pass 4: BN3 + residual + ReLU ----------------------------
def _bn_add_relu_kernel(y3_ref, res_ref, scale_ref, shift_ref, out_ref):
    out = (y3_ref[...].astype(jnp.float32) * scale_ref[...] + shift_ref[...]
           + res_ref[...])
    out_ref[...] = jnp.maximum(out, 0.0)


def _fold_bn(stats, count, gamma, beta):
    """stats: (2, C) = (sum, sum_sq). Returns per-channel (scale, shift)."""
    mean = stats[0] / count
    var = jnp.maximum(stats[1] / count - mean * mean, 0.0)
    inv = lax.rsqrt(var + EPS)
    scale = gamma * inv
    shift = beta - mean * scale
    return scale.reshape(1, -1), shift.reshape(1, -1)


@functools.partial(jax.jit, static_argnames=("tile_h",))
def bottleneck_pallas(x_nchw, w1, g1, b1, w2, g2, b2, w3, g3, b3, *, tile_h=None):
    """Bottleneck forward (train-mode BN, stride=1, dilation=1, downsample=None).

    x_nchw: (N, Cin, H, W) f32.
    w1: (1,1,Cin,Cmid), w2: (3,3,Cmid,Cmid), w3: (1,1,Cmid,Cout) HWIO; Cout==Cin.
    g*/b*: per-channel BN gamma/beta.
    """
    N, Cin, H, W = x_nchw.shape
    Cmid = w1.shape[-1]
    Cout = w3.shape[-1]
    assert Cout == Cin, "downsample=None requires inplanes == planes * expansion"

    Cin_p = _round_up(Cin, LANE)
    Cmid_p = _round_up(Cmid, LANE)
    Cout_p = _round_up(Cout, LANE)

    if tile_h is None:
        tile_h = _pick_tile_h(H, W, max(Cin_p, Cmid_p, Cout_p))
    assert H % tile_h == 0
    nH = H // tile_h
    count = N * H * W

    f32, bf16 = jnp.float32, jnp.bfloat16

    # NHWC + lane-dense channel padding (zero-padded channels are an exact no-op
    # because the padded weights/gamma/beta are zero).
    # TODO(synk): if the surrounding model consumes NHWC, drop both transposes.
    x = jnp.transpose(x_nchw, (0, 2, 3, 1))
    x_p = jnp.pad(x, ((0, 0), (0, 0), (0, 0), (0, Cin_p - Cin)))

    w1_p = jnp.pad(w1.reshape(Cin, Cmid),
                   ((0, Cin_p - Cin), (0, Cmid_p - Cmid))).astype(bf16)
    w2_p = jnp.pad(w2, ((0, 0), (0, 0), (0, Cmid_p - Cmid), (0, Cmid_p - Cmid)))
    w2_p = w2_p.reshape(9, Cmid_p, Cmid_p).astype(bf16)
    w3_p = jnp.pad(w3.reshape(Cmid, Cout),
                   ((0, Cmid_p - Cmid), (0, Cout_p - Cout))).astype(bf16)

    g1_p = jnp.pad(g1, (0, Cmid_p - Cmid))
    b1_p = jnp.pad(b1, (0, Cmid_p - Cmid))
    g2_p = jnp.pad(g2, (0, Cmid_p - Cmid))
    b2_p = jnp.pad(b2, (0, Cmid_p - Cmid))
    g3_p = jnp.pad(g3, (0, Cout_p - Cout))
    b3_p = jnp.pad(b3, (0, Cout_p - Cout))

    vmem_bytes = _vmem_limit_bytes()
    cp_nh = pltpu.CompilerParams(dimension_semantics=("parallel", "parallel"),
                                 vmem_limit_bytes=vmem_bytes)

    # -------- Pass 1: conv1 (1x1) + per-tile BN1 stats (y1 stored bf16) ------
    y1, st1 = pl.pallas_call(
        _conv1x1_stats_kernel,
        out_shape=(jax.ShapeDtypeStruct((N, H, W, Cmid_p), bf16),
                   jax.ShapeDtypeStruct((N, nH, 2, Cmid_p), f32)),
        grid_spec=pltpu.PrefetchScalarGridSpec(
            num_scalar_prefetch=0, grid=(N, nH),
            in_specs=[pl.BlockSpec((1, tile_h, W, Cin_p), lambda n, h: (n, h, 0, 0)),
                      pl.BlockSpec((Cin_p, Cmid_p), lambda n, h: (0, 0))],
            out_specs=[pl.BlockSpec((1, tile_h, W, Cmid_p), lambda n, h: (n, h, 0, 0)),
                       pl.BlockSpec((1, 1, 2, Cmid_p), lambda n, h: (n, h, 0, 0))]),
        compiler_params=cp_nh,
        cost_estimate=pl.CostEstimate(
            flops=2 * count * Cin_p * Cmid_p, transcendentals=0,
            bytes_accessed=count * (4 * Cin_p + 2 * Cmid_p) + 2 * Cin_p * Cmid_p),
    )(x_p, w1_p)
    scale1, shift1 = _fold_bn(jnp.sum(st1, axis=(0, 1)), count, g1_p, b1_p)

    # -------- Pass 2: BN1+ReLU -> conv2 (3x3, banded, halo) + BN2 stats ------
    # y1 is read three times: the band block plus 1-row top/bottom halo blocks
    # whose index_maps clamp at the image border (masked in-kernel).
    y2, st2 = pl.pallas_call(
        _bn_relu_conv3x3_stats_kernel,
        out_shape=(jax.ShapeDtypeStruct((N, H, W, Cmid_p), bf16),
                   jax.ShapeDtypeStruct((N, nH, 2, Cmid_p), f32)),
        grid_spec=pltpu.PrefetchScalarGridSpec(
            num_scalar_prefetch=0, grid=(N, nH),
            in_specs=[
                pl.BlockSpec((1, tile_h, W, Cmid_p), lambda n, h: (n, h, 0, 0)),
                pl.BlockSpec((1, 1, W, Cmid_p),
                             lambda n, h: (n, jnp.maximum(h * tile_h - 1, 0), 0, 0)),
                pl.BlockSpec((1, 1, W, Cmid_p),
                             lambda n, h: (n, jnp.minimum((h + 1) * tile_h, H - 1), 0, 0)),
                pl.BlockSpec((1, Cmid_p), lambda n, h: (0, 0)),
                pl.BlockSpec((1, Cmid_p), lambda n, h: (0, 0)),
                pl.BlockSpec((9, Cmid_p, Cmid_p), lambda n, h: (0, 0, 0)),
            ],
            out_specs=[pl.BlockSpec((1, tile_h, W, Cmid_p), lambda n, h: (n, h, 0, 0)),
                       pl.BlockSpec((1, 1, 2, Cmid_p), lambda n, h: (n, h, 0, 0))]),
        compiler_params=cp_nh,
        cost_estimate=pl.CostEstimate(
            flops=2 * count * 9 * Cmid_p * Cmid_p, transcendentals=0,
            bytes_accessed=count * (2 * Cmid_p + 2 * Cmid_p)
            + N * nH * 2 * W * Cmid_p * 2 + 2 * 9 * Cmid_p * Cmid_p),
    )(y1, y1, y1, scale1, shift1, w2_p)
    scale2, shift2 = _fold_bn(jnp.sum(st2, axis=(0, 1)), count, g2_p, b2_p)

    # -------- Pass 3: BN2+ReLU -> conv3 (1x1) + per-tile BN3 stats -----------
    y3, st3 = pl.pallas_call(
        _bn_relu_conv1x1_stats_kernel,
        out_shape=(jax.ShapeDtypeStruct((N, H, W, Cout_p), bf16),
                   jax.ShapeDtypeStruct((N, nH, 2, Cout_p), f32)),
        grid_spec=pltpu.PrefetchScalarGridSpec(
            num_scalar_prefetch=0, grid=(N, nH),
            in_specs=[pl.BlockSpec((1, tile_h, W, Cmid_p), lambda n, h: (n, h, 0, 0)),
                      pl.BlockSpec((1, Cmid_p), lambda n, h: (0, 0)),
                      pl.BlockSpec((1, Cmid_p), lambda n, h: (0, 0)),
                      pl.BlockSpec((Cmid_p, Cout_p), lambda n, h: (0, 0))],
            out_specs=[pl.BlockSpec((1, tile_h, W, Cout_p), lambda n, h: (n, h, 0, 0)),
                       pl.BlockSpec((1, 1, 2, Cout_p), lambda n, h: (n, h, 0, 0))]),
        compiler_params=cp_nh,
        cost_estimate=pl.CostEstimate(
            flops=2 * count * Cmid_p * Cout_p, transcendentals=0,
            bytes_accessed=count * (2 * Cmid_p + 2 * Cout_p) + 2 * Cmid_p * Cout_p),
    )(y2, scale2, shift2, w3_p)
    scale3, shift3 = _fold_bn(jnp.sum(st3, axis=(0, 1)), count, g3_p, b3_p)

    # -------- Pass 4: BN3 + residual + ReLU ----------------------------------
    # TODO(synk): on v5e/v6e consider pipeline_mode=pl.Buffered(3) on the y3/x
    #   inputs (pure elementwise pass, DMA-exposed); skip on v7x.
    out_p = pl.pallas_call(
        _bn_add_relu_kernel,
        out_shape=jax.ShapeDtypeStruct((N, H, W, Cout_p), f32),
        grid_spec=pltpu.PrefetchScalarGridSpec(
            num_scalar_prefetch=0, grid=(N, nH),
            in_specs=[pl.BlockSpec((1, tile_h, W, Cout_p), lambda n, h: (n, h, 0, 0)),
                      pl.BlockSpec((1, tile_h, W, Cin_p), lambda n, h: (n, h, 0, 0)),
                      pl.BlockSpec((1, Cout_p), lambda n, h: (0, 0)),
                      pl.BlockSpec((1, Cout_p), lambda n, h: (0, 0))],
            out_specs=pl.BlockSpec((1, tile_h, W, Cout_p), lambda n, h: (n, h, 0, 0))),
        compiler_params=cp_nh,
        cost_estimate=pl.CostEstimate(
            flops=3 * count * Cout_p, transcendentals=0,
            bytes_accessed=count * (2 * Cout_p + 4 * Cin_p + 4 * Cout_p)),
    )(y3, x_p, scale3, shift3)

    out = out_p[..., :Cout]
    return jnp.transpose(out, (0, 3, 1, 2))


def bottleneck_ref(x_nchw, w1, g1, b1, w2, g2, b2, w3, g3, b3):
    """Pure-JAX reference: same train-mode BN semantics, bf16 MXU inputs."""
    x = jnp.transpose(x_nchw, (0, 2, 3, 1))

    def conv(h, w):
        return lax.conv_general_dilated(
            h.astype(jnp.bfloat16), w.astype(jnp.bfloat16),
            window_strides=(1, 1), padding="SAME",
            dimension_numbers=("NHWC", "HWIO", "NHWC"),
            preferred_element_type=jnp.float32)

    def bn(h, g, b):
        m = jnp.mean(h, axis=(0, 1, 2))
        v = jnp.maximum(jnp.mean(h * h, axis=(0, 1, 2)) - m * m, 0.0)
        return (h - m) * lax.rsqrt(v + EPS) * g + b

    h = jnp.maximum(bn(conv(x, w1), g1, b1), 0.0)
    h = jnp.maximum(bn(conv(h, w2), g2, b2), 0.0)
    o = bn(conv(h, w3), g3, b3)
    o = jnp.maximum(o + x, 0.0)
    return jnp.transpose(o, (0, 3, 1, 2))


if __name__ == "__main__":
    # Bottleneck(inplanes=16, planes=4): downsample=None requires inplanes == planes*4.
    planes, expansion = 4, 4
    inplanes = planes * expansion
    N, H, W = 2, 16, 16

    key = jax.random.PRNGKey(0)
    ks = jax.random.split(key, 10)
    x = jax.random.normal(ks[0], (N, inplanes, H, W), dtype=jnp.float32)

    # Conv weights generated in PyTorch OIHW order then moved to HWIO.
    w1 = jnp.transpose(
        0.2 * jax.random.normal(ks[1], (planes, inplanes, 1, 1), jnp.float32), (2, 3, 1, 0))
    w2 = jnp.transpose(
        0.2 * jax.random.normal(ks[2], (planes, planes, 3, 3), jnp.float32), (2, 3, 1, 0))
    w3 = jnp.transpose(
        0.2 * jax.random.normal(ks[3], (planes * expansion, planes, 1, 1), jnp.float32),
        (2, 3, 1, 0))
    g1 = 1.0 + 0.1 * jax.random.normal(ks[4], (planes,), jnp.float32)
    b1 = 0.1 * jax.random.normal(ks[5], (planes,), jnp.float32)
    g2 = 1.0 + 0.1 * jax.random.normal(ks[6], (planes,), jnp.float32)
    b2 = 0.1 * jax.random.normal(ks[7], (planes,), jnp.float32)
    g3 = 1.0 + 0.1 * jax.random.normal(ks[8], (planes * expansion,), jnp.float32)
    b3 = 0.1 * jax.random.normal(ks[9], (planes * expansion,), jnp.float32)

    # tile_h=8 -> 2 row-bands per image: exercises the pass-2 halo path.
    out = jax.block_until_ready(
        bottleneck_pallas(x, w1, g1, b1, w2, g2, b2, w3, g3, b3, tile_h=8))
    ref = jax.block_until_ready(
        bottleneck_ref(x, w1, g1, b1, w2, g2, b2, w3, g3, b3))

    assert out.shape == (N, inplanes, H, W)
    err = float(jnp.max(jnp.abs(out - ref)))
    assert jnp.allclose(out, ref, atol=5e-2, rtol=5e-2), err
    print("KERNEL_OK")
</pallas_src>

<mosaic_0001>
module attributes {stable_mosaic.version = 11 : i64} {
  func.func @_conv1x1_stats_kernel(%arg0: i32, %arg1: i32, %arg2: memref<1x8x16x128xf32, #tpu.memory_space<vmem>>, %arg3: memref<128x128xbf16, #tpu.memory_space<vmem>>, %arg4: memref<1x8x16x128xbf16, #tpu.memory_space<vmem>>, %arg5: memref<1x1x2x128xf32, #tpu.memory_space<vmem>>) attributes {dimension_semantics = [#tpu.dimension_semantics<parallel>, #tpu.dimension_semantics<parallel>], iteration_bounds = array<i64: 2, 2>, scalar_prefetch = 0 : i64, scratch_operands = 0 : i64, tpu.core_type = #tpu.core_type<tc>, window_params = [{transform_indices = @transform_0, window_bounds = array<i64: 1, 8, 16, 128>}, {pipeline_mode = #tpu.pipeline_mode<synchronous>, transform_indices = @transform_1, window_bounds = array<i64: 128, 128>}, {transform_indices = @transform_2, window_bounds = array<i64: 1, 8, 16, 128>}, {transform_indices = @transform_3, window_bounds = array<i64: 1, 1, 2, 128>}]} {
    %c0 = arith.constant 0 : index
    %c0_0 = arith.constant 0 : index
    %c0_1 = arith.constant 0 : index
    %c0_2 = arith.constant 0 : index
    %0 = vector.load %arg2[%c0, %c0_0, %c0_1, %c0_2] : memref<1x8x16x128xf32, #tpu.memory_space<vmem>>, vector<1x8x16x128xf32>
    %1 = vector.shape_cast %0 : vector<1x8x16x128xf32> to vector<128x128xf32>
    %2 = arith.truncf %1 : vector<128x128xf32> to vector<128x128xbf16>
    %c0_3 = arith.constant 0 : index
    %c0_4 = arith.constant 0 : index
    %3 = vector.load %arg3[%c0_3, %c0_4] : memref<128x128xbf16, #tpu.memory_space<vmem>>, vector<128x128xbf16>
    %cst = arith.constant dense<0.000000e+00> : vector<128x128xf32>
    %4 = tpu.matmul %2, %3, %cst {dimension_numbers = #tpu.dot_dimension_numbers<[1], [0], [0], [1], [0, 0, 1, 1], [], []>} : vector<128x128xbf16>, vector<128x128xbf16>, vector<128x128xf32> -> vector<128x128xf32>
    %5 = vector.shape_cast %4 : vector<128x128xf32> to vector<1x8x16x128xf32>
    %6 = arith.truncf %5 : vector<1x8x16x128xf32> to vector<1x8x16x128xbf16>
    %c0_5 = arith.constant 0 : index
    %c0_6 = arith.constant 0 : index
    %c0_7 = arith.constant 0 : index
    %c0_8 = arith.constant 0 : index
    %7 = vector.load %arg4[%c0_5, %c0_6, %c0_7, %c0_8] : memref<1x8x16x128xbf16, #tpu.memory_space<vmem>>, vector<1x8x16x128xbf16>
    tpu.vector_store %arg4[%c0_5, %c0_6, %c0_7, %c0_8], %6 {strides = array<i32>} : memref<1x8x16x128xbf16, #tpu.memory_space<vmem>>, vector<1x8x16x128xbf16>,
    %cst_9 = arith.constant dense<0.000000e+00> : vector<128xf32>
    %8 = vector.multi_reduction <add>, %4, %cst_9 [0] : vector<128x128xf32> to vector<128xf32>
    %9 = vector.shape_cast %8 : vector<128xf32> to vector<1x128xf32>
    %10 = arith.mulf %4, %4 : vector<128x128xf32>
    %cst_10 = arith.constant dense<0.000000e+00> : vector<128xf32>
    %11 = vector.multi_reduction <add>, %10, %cst_10 [0] : vector<128x128xf32> to vector<128xf32>
    %12 = vector.shape_cast %11 : vector<128xf32> to vector<1x128xf32>
    %13 = tpu.concatenate %9, %12 in 0 : vector<1x128xf32>, vector<1x128xf32> -> vector<2x128xf32>
    %14 = vector.shape_cast %13 : vector<2x128xf32> to vector<1x1x2x128xf32>
    %c0_11 = arith.constant 0 : index
    %c0_12 = arith.constant 0 : index
    %c0_13 = arith.constant 0 : index
    %c0_14 = arith.constant 0 : index
    %15 = vector.load %arg5[%c0_11, %c0_12, %c0_13, %c0_14] : memref<1x1x2x128xf32, #tpu.memory_space<vmem>>, vector<1x1x2x128xf32>
    tpu.vector_store %arg5[%c0_11, %c0_12, %c0_13, %c0_14], %14 {strides = array<i32>} : memref<1x1x2x128xf32, #tpu.memory_space<vmem>>, vector<1x1x2x128xf32>,
    return
  }
  func.func @transform_0(%arg0: i32, %arg1: i32) -> (i32, i32, i32, i32) {
    %c0_i32 = arith.constant 0 : i32
    %c0_i32_0 = arith.constant 0 : i32
    %c0_i32_1 = arith.constant 0 : i32
    return %arg0, %arg1, %c0_i32, %c0_i32_0 : i32, i32, i32, i32
  }
  func.func @transform_1(%arg0: i32, %arg1: i32) -> (i32, i32) {
    %c0_i32 = arith.constant 0 : i32
    %c0_i32_0 = arith.constant 0 : i32
    %c0_i32_1 = arith.constant 0 : i32
    return %c0_i32, %c0_i32_0 : i32, i32
  }
  func.func @transform_2(%arg0: i32, %arg1: i32) -> (i32, i32, i32, i32) {
    %c0_i32 = arith.constant 0 : i32
    %c0_i32_0 = arith.constant 0 : i32
    %c0_i32_1 = arith.constant 0 : i32
    return %arg0, %arg1, %c0_i32, %c0_i32_0 : i32, i32, i32, i32
  }
  func.func @transform_3(%arg0: i32, %arg1: i32) -> (i32, i32, i32, i32) {
    %c0_i32 = arith.constant 0 : i32
    %c0_i32_0 = arith.constant 0 : i32
    %c0_i32_1 = arith.constant 0 : i32
    return %arg0, %arg1, %c0_i32, %c0_i32_0 : i32, i32, i32, i32
  }
}

module attributes {stable_mosaic.version = 11 : i64} {
  func.func @_bn_relu_conv3x3_stats_kernel(%arg0: i32, %arg1: i32, %arg2: memref<1x8x16x128xbf16, #tpu.memory_space<vmem>>, %arg3: memref<1x1x16x128xbf16, #tpu.memory_space<vmem>>, %arg4: memref<1x1x16x128xbf16, #tpu.memory_space<vmem>>, %arg5: memref<1x128xf32, #tpu.memory_space<vmem>>, %arg6: memref<1x128xf32, #tpu.memory_space<vmem>>, %arg7: memref<9x128x128xbf16, #tpu.memory_space<vmem>>, %arg8: memref<1x8x16x128xbf16, #tpu.memory_space<vmem>>, %arg9: memref<1x1x2x128xf32, #tpu.memory_space<vmem>>) attributes {dimension_semantics = [#tpu.dimension_semantics<parallel>, #tpu.dimension_semantics<parallel>], iteration_bounds = array<i64: 2, 2>, scalar_prefetch = 0 : i64, scratch_operands = 0 : i64, tpu.core_type = #tpu.core_type<tc>, window_params = [{transform_indices = @transform_0, window_bounds = array<i64: 1, 8, 16, 128>}, {transform_indices = @transform_1, window_bounds = array<i64: 1, 1, 16, 128>}, {transform_indices = @transform_2, window_bounds = array<i64: 1, 1, 16, 128>}, {pipeline_mode = #tpu.pipeline_mode<synchronous>, transform_indices = @transform_3, window_bounds = array<i64: 1, 128>}, {pipeline_mode = #tpu.pipeline_mode<synchronous>, transform_indices = @transform_4, window_bounds = array<i64: 1, 128>}, {pipeline_mode = #tpu.pipeline_mode<synchronous>, transform_indices = @transform_5, window_bounds = array<i64: 9, 128, 128>}, {transform_indices = @transform_6, window_bounds = array<i64: 1, 8, 16, 128>}, {transform_indices = @transform_7, window_bounds = array<i64: 1, 1, 2, 128>}]} {
    %c0 = arith.constant 0 : index
    %c0_0 = arith.constant 0 : index
    %0 = vector.load %arg5[%c0, %c0_0] : memref<1x128xf32, #tpu.memory_space<vmem>>, vector<1x128xf32>
    %c0_1 = arith.constant 0 : index
    %c0_2 = arith.constant 0 : index
    %1 = vector.load %arg6[%c0_1, %c0_2] : memref<1x128xf32, #tpu.memory_space<vmem>>, vector<1x128xf32>
    %c0_3 = arith.constant 0 : index
    %c0_4 = arith.constant 0 : index
    %c0_5 = arith.constant 0 : index
    %c0_6 = arith.constant 0 : index
    %2 = vector.load %arg2[%c0_3, %c0_4, %c0_5, %c0_6] : memref<1x8x16x128xbf16, #tpu.memory_space<vmem>>, vector<1x8x16x128xbf16>
    %3 = arith.extf %2 : vector<1x8x16x128xbf16> to vector<1x8x16x128xf32>
    %4 = vector.shape_cast %0 : vector<1x128xf32> to vector<1x1x1x128xf32>
    %5 = vector.broadcast %4 : vector<1x1x1x128xf32> to vector<1x8x16x128xf32>
    %6 = arith.mulf %3, %5 : vector<1x8x16x128xf32>
    %7 = vector.shape_cast %1 : vector<1x128xf32> to vector<1x1x1x128xf32>
    %8 = vector.broadcast %7 : vector<1x1x1x128xf32> to vector<1x8x16x128xf32>
    %9 = arith.addf %6, %8 : vector<1x8x16x128xf32>
    %cst = arith.constant 0.000000e+00 : f32
    %10 = vector.broadcast %cst : f32 to vector<1x8x16x128xf32>
    %11 = arith.maximumf %9, %10 : vector<1x8x16x128xf32>
    %c0_7 = arith.constant 0 : index
    %c0_8 = arith.constant 0 : index
    %c0_9 = arith.constant 0 : index
    %c0_10 = arith.constant 0 : index
    %12 = vector.load %arg3[%c0_7, %c0_8, %c0_9, %c0_10] : memref<1x1x16x128xbf16, #tpu.memory_space<vmem>>, vector<1x1x16x128xbf16>
    %13 = arith.extf %12 : vector<1x1x16x128xbf16> to vector<1x1x16x128xf32>
    %14 = vector.shape_cast %0 : vector<1x128xf32> to vector<1x1x1x128xf32>
    %15 = vector.broadcast %14 : vector<1x1x1x128xf32> to vector<1x1x16x128xf32>
    %16 = arith.mulf %13, %15 : vector<1x1x16x128xf32>
    %17 = vector.shape_cast %1 : vector<1x128xf32> to vector<1x1x1x128xf32>
    %18 = vector.broadcast %17 : vector<1x1x1x128xf32> to vector<1x1x16x128xf32>
    %19 = arith.addf %16, %18 : vector<1x1x16x128xf32>
    %cst_11 = arith.constant 0.000000e+00 : f32
    %20 = vector.broadcast %cst_11 : f32 to vector<1x1x16x128xf32>
    %21 = arith.maximumf %19, %20 : vector<1x1x16x128xf32>
    %c0_12 = arith.constant 0 : index
    %c0_13 = arith.constant 0 : index
    %c0_14 = arith.constant 0 : index
    %c0_15 = arith.constant 0 : index
    %22 = vector.load %arg4[%c0_12, %c0_13, %c0_14, %c0_15] : memref<1x1x16x128xbf16, #tpu.memory_space<vmem>>, vector<1x1x16x128xbf16>
    %23 = arith.extf %22 : vector<1x1x16x128xbf16> to vector<1x1x16x128xf32>
    %24 = vector.shape_cast %0 : vector<1x128xf32> to vector<1x1x1x128xf32>
    %25 = vector.broadcast %24 : vector<1x1x1x128xf32> to vector<1x1x16x128xf32>
    %26 = arith.mulf %23, %25 : vector<1x1x16x128xf32>
    %27 = vector.shape_cast %1 : vector<1x128xf32> to vector<1x1x1x128xf32>
    %28 = vector.broadcast %27 : vector<1x1x1x128xf32> to vector<1x1x16x128xf32>
    %29 = arith.addf %26, %28 : vector<1x1x16x128xf32>
    %cst_16 = arith.constant 0.000000e+00 : f32
    %30 = vector.broadcast %cst_16 : f32 to vector<1x1x16x128xf32>
    %31 = arith.maximumf %29, %30 : vector<1x1x16x128xf32>
    %c0_i32 = arith.constant 0 : i32
    %32 = arith.cmpi sgt, %arg1, %c0_i32 : i32
    %cst_17 = arith.constant 0.000000e+00 : f32
    %33 = vector.broadcast %cst_17 : f32 to vector<1x1x16x128xf32>
    %34 = arith.select %32, %21, %33 : vector<1x1x16x128xf32>
    %c1_i32 = arith.constant 1 : i32
    %35 = arith.cmpi slt, %arg1, %c1_i32 : i32
    %cst_18 = arith.constant 0.000000e+00 : f32
    %36 = vector.broadcast %cst_18 : f32 to vector<1x1x16x128xf32>
    %37 = arith.select %35, %31, %36 : vector<1x1x16x128xf32>
    %38 = tpu.concatenate %34, %11, %37 in 1 : vector<1x1x16x128xf32>, vector<1x8x16x128xf32>, vector<1x1x16x128xf32> -> vector<1x10x16x128xf32>
    %cst_19 = arith.constant 0.000000e+00 : f32
    %39 = vector.broadcast %cst_19 : f32 to vector<1x10x1x128xf32>
    %40 = tpu.concatenate %39, %38, %39 in 2 : vector<1x10x1x128xf32>, vector<1x10x16x128xf32>, vector<1x10x1x128xf32> -> vector<1x10x18x128xf32>
    %41 = arith.truncf %40 : vector<1x10x18x128xf32> to vector<1x10x18x128xbf16>
    %cst_20 = arith.constant 0.000000e+00 : f32
    %42 = vector.broadcast %cst_20 : f32 to vector<128x128xf32>
    %43 = vector.extract_strided_slice %41 {offsets = [0, 0, 0, 0], sizes = [1, 8, 16, 128], strides = [1, 1, 1, 1]} : vector<1x10x18x128xbf16> to vector<1x8x16x128xbf16>
    %44 = vector.shape_cast %43 : vector<1x8x16x128xbf16> to vector<128x128xbf16>
    %c0_21 = arith.constant 0 : index
    %c0_22 = arith.constant 0 : index
    %c0_23 = arith.constant 0 : index
    %45 = vector.load %arg7[%c0_21, %c0_22, %c0_23] : memref<9x128x128xbf16, #tpu.memory_space<vmem>>, vector<1x128x128xbf16>
    %46 = vector.shape_cast %45 : vector<1x128x128xbf16> to vector<128x128xbf16>
    %cst_24 = arith.constant dense<0.000000e+00> : vector<128x128xf32>
    %47 = tpu.matmul %44, %46, %cst_24 {dimension_numbers = #tpu.dot_dimension_numbers<[1], [0], [0], [1], [0, 0, 1, 1], [], []>} : vector<128x128xbf16>, vector<128x128xbf16>, vector<128x128xf32> -> vector<128x128xf32>
    %48 = arith.addf %42, %47 : vector<128x128xf32>
    %49 = vector.extract_strided_slice %41 {offsets = [0, 0, 1, 0], sizes = [1, 8, 16, 128], strides = [1, 1, 1, 1]} : vector<1x10x18x128xbf16> to vector<1x8x16x128xbf16>
    %50 = vector.shape_cast %49 : vector<1x8x16x128xbf16> to vector<128x128xbf16>
    %c1 = arith.constant 1 : index
    %c0_25 = arith.constant 0 : index
    %c0_26 = arith.constant 0 : index
    %51 = vector.load %arg7[%c1, %c0_25, %c0_26] : memref<9x128x128xbf16, #tpu.memory_space<vmem>>, vector<1x128x128xbf16>
    %52 = vector.shape_cast %51 : vector<1x128x128xbf16> to vector<128x128xbf16>
    %cst_27 = arith.constant dense<0.000000e+00> : vector<128x128xf32>
    %53 = tpu.matmul %50, %52, %cst_27 {dimension_numbers = #tpu.dot_dimension_numbers<[1], [0], [0], [1], [0, 0, 1, 1], [], []>} : vector<128x128xbf16>, vector<128x128xbf16>, vector<128x128xf32> -> vector<128x128xf32>
    %54 = arith.addf %48, %53 : vector<128x128xf32>
    %55 = vector.extract_strided_slice %41 {offsets = [0, 0, 2, 0], sizes = [1, 8, 16, 128], strides = [1, 1, 1, 1]} : vector<1x10x18x128xbf16> to vector<1x8x16x128xbf16>
    %56 = vector.shape_cast %55 : vector<1x8x16x128xbf16> to vector<128x128xbf16>
    %c2 = arith.constant 2 : index
    %c0_28 = arith.constant 0 : index
    %c0_29 = arith.constant 0 : index
    %57 = vector.load %arg7[%c2, %c0_28, %c0_29] : memref<9x128x128xbf16, #tpu.memory_space<vmem>>, vector<1x128x128xbf16>
    %58 = vector.shape_cast %57 : vector<1x128x128xbf16> to vector<128x128xbf16>
    %cst_30 = arith.constant dense<0.000000e+00> : vector<128x128xf32>
    %59 = tpu.matmul %56, %58, %cst_30 {dimension_numbers = #tpu.dot_dimension_numbers<[1], [0], [0], [1], [0, 0, 1, 1], [], []>} : vector<128x128xbf16>, vector<128x128xbf16>, vector<128x128xf32> -> vector<128x128xf32>
    %60 = arith.addf %54, %59 : vector<128x128xf32>
    %61 = vector.extract_strided_slice %41 {offsets = [0, 1, 0, 0], sizes = [1, 8, 16, 128], strides = [1, 1, 1, 1]} : vector<1x10x18x128xbf16> to vector<1x8x16x128xbf16>
    %62 = vector.shape_cast %61 : vector<1x8x16x128xbf16> to vector<128x128xbf16>
    %c3 = arith.constant 3 : index
    %c0_31 = arith.constant 0 : index
    %c0_32 = arith.constant 0 : index
    %63 = vector.load %arg7[%c3, %c0_31, %c0_32] : memref<9x128x128xbf16, #tpu.memory_space<vmem>>, vector<1x128x128xbf16>
    %64 = vector.shape_cast %63 : vector<1x128x128xbf16> to vector<128x128xbf16>
    %cst_33 = arith.constant dense<0.000000e+00> : vector<128x128xf32>
    %65 = tpu.matmul %62, %64, %cst_33 {dimension_numbers = #tpu.dot_dimension_numbers<[1], [0], [0], [1], [0, 0, 1, 1], [], []>} : vector<128x128xbf16>, vector<128x128xbf16>, vector<128x128xf32> -> vector<128x128xf32>
    %66 = arith.addf %60, %65 : vector<128x128xf32>
    %67 = vector.extract_strided_slice %41 {offsets = [0, 1, 1, 0], sizes = [1, 8, 16, 128], strides = [1, 1, 1, 1]} : vector<1x10x18x128xbf16> to vector<1x8x16x128xbf16>
    %68 = vector.shape_cast %67 : vector<1x8x16x128xbf16> to vector<128x128xbf16>
    %c4 = arith.constant 4 : index
    %c0_34 = arith.constant 0 : index
    %c0_35 = arith.constant 0 : index
    %69 = vector.load %arg7[%c4, %c0_34, %c0_35] : memref<9x128x128xbf16, #tpu.memory_space<vmem>>, vector<1x128x128xbf16>
    %70 = vector.shape_cast %69 : vector<1x128x128xbf16> to vector<128x128xbf16>
    %cst_36 = arith.constant dense<0.000000e+00> : vector<128x128xf32>
    %71 = tpu.matmul %68, %70, %cst_36 {dimension_numbers = #tpu.dot_dimension_numbers<[1], [0], [0], [1], [0, 0, 1, 1], [], []>} : vector<128x128xbf16>, vector<128x128xbf16>, vector<128x128xf32> -> vector<128x128xf32>
    %72 = arith.addf %66, %71 : vector<128x128xf32>
    %73 = vector.extract_strided_slice %41 {offsets = [0, 1, 2, 0], sizes = [1, 8, 16, 128], strides = [1, 1, 1, 1]} : vector<1x10x18x128xbf16> to vector<1x8x16x128xbf16>
    %74 = vector.shape_cast %73 : vector<1x8x16x128xbf16> to vector<128x128xbf16>
    %c5 = arith.constant 5 : index
    %c0_37 = arith.constant 0 : index
    %c0_38 = arith.constant 0 : index
    %75 = vector.load %arg7[%c5, %c0_37, %c0_38] : memref<9x128x128xbf16, #tpu.memory_space<vmem>>, vector<1x128x128xbf16>
    %76 = vector.shape_cast %75 : vector<1x128x128xbf16> to vector<128x128xbf16>
    %cst_39 = arith.constant dense<0.000000e+00> : vector<128x128xf32>
    %77 = tpu.matmul %74, %76, %cst_39 {dimension_numbers = #tpu.dot_dimension_numbers<[1], [0], [0], [1], [0, 0, 1, 1], [], []>} : vector<128x128xbf16>, vector<128x128xbf16>, vector<128x128xf32> -> vector<128x128xf32>
    %78 = arith.addf %72, %77 : vector<128x128xf32>
    %79 = vector.extract_strided_slice %41 {offsets = [0, 2, 0, 0], sizes = [1, 8, 16, 128], strides = [1, 1, 1, 1]} : vector<1x10x18x128xbf16> to vector<1x8x16x128xbf16>
    %80 = vector.shape_cast %79 : vector<1x8x16x128xbf16> to vector<128x128xbf16>
    %c6 = arith.constant 6 : index
    %c0_40 = arith.constant 0 : index
    %c0_41 = arith.constant 0 : index
    %81 = vector.load %arg7[%c6, %c0_40, %c0_41] : memref<9x128x128xbf16, #tpu.memory_space<vmem>>, vector<1x128x128xbf16>
    %82 = vector.shape_cast %81 : vector<1x128x128xbf16> to vector<128x128xbf16>
    %cst_42 = arith.constant dense<0.000000e+00> : vector<128x128xf32>
    %83 = tpu.matmul %80, %82, %cst_42 {dimension_numbers = #tpu.dot_dimension_numbers<[1], [0], [0], [1], [0, 0, 1, 1], [], []>} : vector<128x128xbf16>, vector<128x128xbf16>, vector<128x128xf32> -> vector<128x128xf32>
    %84 = arith.addf %78, %83 : vector<128x128xf32>
    %85 = vector.extract_strided_slice %41 {offsets = [0, 2, 1, 0], sizes = [1, 8, 16, 128], strides = [1, 1, 1, 1]} : vector<1x10x18x128xbf16> to vector<1x8x16x128xbf16>
    %86 = vector.shape_cast %85 : vector<1x8x16x128xbf16> to vector<128x128xbf16>
    %c7 = arith.constant 7 : index
    %c0_43 = arith.constant 0 : index
    %c0_44 = arith.constant 0 : index
    %87 = vector.load %arg7[%c7, %c0_43, %c0_44] : memref<9x128x128xbf16, #tpu.memory_space<vmem>>, vector<1x128x128xbf16>
    %88 = vector.shape_cast %87 : vector<1x128x128xbf16> to vector<128x128xbf16>
    %cst_45 = arith.constant dense<0.000000e+00> : vector<128x128xf32>
    %89 = tpu.matmul %86, %88, %cst_45 {dimension_numbers = #tpu.dot_dimension_numbers<[1], [0], [0], [1], [0, 0, 1, 1], [], []>} : vector<128x128xbf16>, vector<128x128xbf16>, vector<128x128xf32> -> vector<128x128xf32>
    %90 = arith.addf %84, %89 : vector<128x128xf32>
    %91 = vector.extract_strided_slice %41 {offsets = [0, 2, 2, 0], sizes = [1, 8, 16, 128], strides = [1, 1, 1, 1]} : vector<1x10x18x128xbf16> to vector<1x8x16x128xbf16>
    %92 = vector.shape_cast %91 : vector<1x8x16x128xbf16> to vector<128x128xbf16>
    %c8 = arith.constant 8 : index
    %c0_46 = arith.constant 0 : index
    %c0_47 = arith.constant 0 : index
    %93 = vector.load %arg7[%c8, %c0_46, %c0_47] : memref<9x128x128xbf16, #tpu.memory_space<vmem>>, vector<1x128x128xbf16>
    %94 = vector.shape_cast %93 : vector<1x128x128xbf16> to vector<128x128xbf16>
    %cst_48 = arith.constant dense<0.000000e+00> : vector<128x128xf32>
    %95 = tpu.matmul %92, %94, %cst_48 {dimension_numbers = #tpu.dot_dimension_numbers<[1], [0], [0], [1], [0, 0, 1, 1], [], []>} : vector<128x128xbf16>, vector<128x128xbf16>, vector<128x128xf32> -> vector<128x128xf32>
    %96 = arith.addf %90, %95 : vector<128x128xf32>
    %97 = vector.shape_cast %96 : vector<128x128xf32> to vector<1x8x16x128xf32>
    %98 = arith.truncf %97 : vector<1x8x16x128xf32> to vector<1x8x16x128xbf16>
    %c0_49 = arith.constant 0 : index
    %c0_50 = arith.constant 0 : index
    %c0_51 = arith.constant 0 : index
    %c0_52 = arith.constant 0 : index
    %99 = vector.load %arg8[%c0_49, %c0_50, %c0_51, %c0_52] : memref<1x8x16x128xbf16, #tpu.memory_space<vmem>>, vector<1x8x16x128xbf16>
    tpu.vector_store %arg8[%c0_49, %c0_50, %c0_51, %c0_52], %98 {strides = array<i32>} : memref<1x8x16x128xbf16, #tpu.memory_space<vmem>>, vector<1x8x16x128xbf16>,
    %cst_53 = arith.constant dense<0.000000e+00> : vector<128xf32>
    %100 = vector.multi_reduction <add>, %96, %cst_53 [0] : vector<128x128xf32> to vector<128xf32>
    %101 = vector.shape_cast %100 : vector<128xf32> to vector<1x128xf32>
    %102 = arith.mulf %96, %96 : vector<128x128xf32>
    %cst_54 = arith.constant dense<0.000000e+00> : vector<128xf32>
    %103 = vector.multi_reduction <add>, %102, %cst_54 [0] : vector<128x128xf32> to vector<128xf32>
    %104 = vector.shape_cast %103 : vector<128xf32> to vector<1x128xf32>
    %105 = tpu.concatenate %101, %104 in 0 : vector<1x128xf32>, vector<1x128xf32> -> vector<2x128xf32>
    %106 = vector.shape_cast %105 : vector<2x128xf32> to vector<1x1x2x128xf32>
    %c0_55 = arith.constant 0 : index
    %c0_56 = arith.constant 0 : index
    %c0_57 = arith.constant 0 : index
    %c0_58 = arith.constant 0 : index
    %107 = vector.load %arg9[%c0_55, %c0_56, %c0_57, %c0_58] : memref<1x1x2x128xf32, #tpu.memory_space<vmem>>, vector<1x1x2x128xf32>
    tpu.vector_store %arg9[%c0_55, %c0_56, %c0_57, %c0_58], %106 {strides = array<i32>} : memref<1x1x2x128xf32, #tpu.memory_space<vmem>>, vector<1x1x2x128xf32>,
    return
  }
  func.func @transform_0(%arg0: i32, %arg1: i32) -> (i32, i32, i32, i32) {
    %c0_i32 = arith.constant 0 : i32
    %c0_i32_0 = arith.constant 0 : i32
    %c0_i32_1 = arith.constant 0 : i32
    return %arg0, %arg1, %c0_i32, %c0_i32_0 : i32, i32, i32, i32
  }
  func.func @transform_1(%arg0: i32, %arg1: i32) -> (i32, i32, i32, i32) {
    %c8_i32 = arith.constant 8 : i32
    %0 = arith.muli %arg1, %c8_i32 : i32
    %c1_i32 = arith.constant 1 : i32
    %1 = arith.subi %0, %c1_i32 : i32
    %c0_i32 = arith.constant 0 : i32
    %2 = arith.maxsi %1, %c0_i32 : i32
    %c0_i32_0 = arith.constant 0 : i32
    %c0_i32_1 = arith.constant 0 : i32
    %c0_i32_2 = arith.constant 0 : i32
    return %arg0, %2, %c0_i32_0, %c0_i32_1 : i32, i32, i32, i32
  }
  func.func @transform_2(%arg0: i32, %arg1: i32) -> (i32, i32, i32, i32) {
    %c1_i32 = arith.constant 1 : i32
    %0 = arith.addi %arg1, %c1_i32 : i32
    %c8_i32 = arith.constant 8 : i32
    %1 = arith.muli %0, %c8_i32 : i32
    %c15_i32 = arith.constant 15 : i32
    %2 = arith.minsi %1, %c15_i32 : i32
    %c0_i32 = arith.constant 0 : i32
    %c0_i32_0 = arith.constant 0 : i32
    %c0_i32_1 = arith.constant 0 : i32
    return %arg0, %2, %c0_i32, %c0_i32_0 : i32, i32, i32, i32
  }
  func.func @transform_3(%arg0: i32, %arg1: i32) -> (i32, i32) {
    %c0_i32 = arith.constant 0 : i32
    %c0_i32_0 = arith.constant 0 : i32
    %c0_i32_1 = arith.constant 0 : i32
    return %c0_i32, %c0_i32_0 : i32, i32
  }
  func.func @transform_4(%arg0: i32, %arg1: i32) -> (i32, i32) {
    %c0_i32 = arith.constant 0 : i32
    %c0_i32_0 = arith.constant 0 : i32
    %c0_i32_1 = arith.constant 0 : i32
    return %c0_i32, %c0_i32_0 : i32, i32
  }
  func.func @transform_5(%arg0: i32, %arg1: i32) -> (i32, i32, i32) {
    %c0_i32 = arith.constant 0 : i32
    %c0_i32_0 = arith.constant 0 : i32
    %c0_i32_1 = arith.constant 0 : i32
    %c0_i32_2 = arith.constant 0 : i32
    return %c0_i32, %c0_i32_0, %c0_i32_1 : i32, i32, i32
  }
  func.func @transform_6(%arg0: i32, %arg1: i32) -> (i32, i32, i32, i32) {
    %c0_i32 = arith.constant 0 : i32
    %c0_i32_0 = arith.constant 0 : i32
    %c0_i32_1 = arith.constant 0 : i32
    return %arg0, %arg1, %c0_i32, %c0_i32_0 : i32, i32, i32, i32
  }
  func.func @transform_7(%arg0: i32, %arg1: i32) -> (i32, i32, i32, i32) {
    %c0_i32 = arith.constant 0 : i32
    %c0_i32_0 = arith.constant 0 : i32
    %c0_i32_1 = arith.constant 0 : i32
    return %arg0, %arg1, %c0_i32, %c0_i32_0 : i32, i32, i32, i32
  }
}

module attributes {stable_mosaic.version = 11 : i64} {
  func.func @_bn_relu_conv1x1_stats_kernel(%arg0: i32, %arg1: i32, %arg2: memref<1x8x16x128xbf16, #tpu.memory_space<vmem>>, %arg3: memref<1x128xf32, #tpu.memory_space<vmem>>, %arg4: memref<1x128xf32, #tpu.memory_space<vmem>>, %arg5: memref<128x128xbf16, #tpu.memory_space<vmem>>, %arg6: memref<1x8x16x128xbf16, #tpu.memory_space<vmem>>, %arg7: memref<1x1x2x128xf32, #tpu.memory_space<vmem>>) attributes {dimension_semantics = [#tpu.dimension_semantics<parallel>, #tpu.dimension_semantics<parallel>], iteration_bounds = array<i64: 2, 2>, scalar_prefetch = 0 : i64, scratch_operands = 0 : i64, tpu.core_type = #tpu.core_type<tc>, window_params = [{transform_indices = @transform_0, window_bounds = array<i64: 1, 8, 16, 128>}, {pipeline_mode = #tpu.pipeline_mode<synchronous>, transform_indices = @transform_1, window_bounds = array<i64: 1, 128>}, {pipeline_mode = #tpu.pipeline_mode<synchronous>, transform_indices = @transform_2, window_bounds = array<i64: 1, 128>}, {pipeline_mode = #tpu.pipeline_mode<synchronous>, transform_indices = @transform_3, window_bounds = array<i64: 128, 128>}, {transform_indices = @transform_4, window_bounds = array<i64: 1, 8, 16, 128>}, {transform_indices = @transform_5, window_bounds = array<i64: 1, 1, 2, 128>}]} {
    %c0 = arith.constant 0 : index
    %c0_0 = arith.constant 0 : index
    %c0_1 = arith.constant 0 : index
    %c0_2 = arith.constant 0 : index
    %0 = vector.load %arg2[%c0, %c0_0, %c0_1, %c0_2] : memref<1x8x16x128xbf16, #tpu.memory_space<vmem>>, vector<1x8x16x128xbf16>
    %1 = arith.extf %0 : vector<1x8x16x128xbf16> to vector<1x8x16x128xf32>
    %2 = vector.shape_cast %1 : vector<1x8x16x128xf32> to vector<128x128xf32>
    %c0_3 = arith.constant 0 : index
    %c0_4 = arith.constant 0 : index
    %3 = vector.load %arg3[%c0_3, %c0_4] : memref<1x128xf32, #tpu.memory_space<vmem>>, vector<1x128xf32>
    %4 = vector.broadcast %3 : vector<1x128xf32> to vector<128x128xf32>
    %5 = arith.mulf %2, %4 : vector<128x128xf32>
    %c0_5 = arith.constant 0 : index
    %c0_6 = arith.constant 0 : index
    %6 = vector.load %arg4[%c0_5, %c0_6] : memref<1x128xf32, #tpu.memory_space<vmem>>, vector<1x128xf32>
    %7 = vector.broadcast %6 : vector<1x128xf32> to vector<128x128xf32>
    %8 = arith.addf %5, %7 : vector<128x128xf32>
    %cst = arith.constant 0.000000e+00 : f32
    %9 = vector.broadcast %cst : f32 to vector<128x128xf32>
    %10 = arith.maximumf %8, %9 : vector<128x128xf32>
    %11 = arith.truncf %10 : vector<128x128xf32> to vector<128x128xbf16>
    %c0_7 = arith.constant 0 : index
    %c0_8 = arith.constant 0 : index
    %12 = vector.load %arg5[%c0_7, %c0_8] : memref<128x128xbf16, #tpu.memory_space<vmem>>, vector<128x128xbf16>
    %cst_9 = arith.constant dense<0.000000e+00> : vector<128x128xf32>
    %13 = tpu.matmul %11, %12, %cst_9 {dimension_numbers = #tpu.dot_dimension_numbers<[1], [0], [0], [1], [0, 0, 1, 1], [], []>} : vector<128x128xbf16>, vector<128x128xbf16>, vector<128x128xf32> -> vector<128x128xf32>
    %14 = vector.shape_cast %13 : vector<128x128xf32> to vector<1x8x16x128xf32>
    %15 = arith.truncf %14 : vector<1x8x16x128xf32> to vector<1x8x16x128xbf16>
    %c0_10 = arith.constant 0 : index
    %c0_11 = arith.constant 0 : index
    %c0_12 = arith.constant 0 : index
    %c0_13 = arith.constant 0 : index
    %16 = vector.load %arg6[%c0_10, %c0_11, %c0_12, %c0_13] : memref<1x8x16x128xbf16, #tpu.memory_space<vmem>>, vector<1x8x16x128xbf16>
    tpu.vector_store %arg6[%c0_10, %c0_11, %c0_12, %c0_13], %15 {strides = array<i32>} : memref<1x8x16x128xbf16, #tpu.memory_space<vmem>>, vector<1x8x16x128xbf16>,
    %cst_14 = arith.constant dense<0.000000e+00> : vector<128xf32>
    %17 = vector.multi_reduction <add>, %13, %cst_14 [0] : vector<128x128xf32> to vector<128xf32>
    %18 = vector.shape_cast %17 : vector<128xf32> to vector<1x128xf32>
    %19 = arith.mulf %13, %13 : vector<128x128xf32>
    %cst_15 = arith.constant dense<0.000000e+00> : vector<128xf32>
    %20 = vector.multi_reduction <add>, %19, %cst_15 [0] : vector<128x128xf32> to vector<128xf32>
    %21 = vector.shape_cast %20 : vector<128xf32> to vector<1x128xf32>
    %22 = tpu.concatenate %18, %21 in 0 : vector<1x128xf32>, vector<1x128xf32> -> vector<2x128xf32>
    %23 = vector.shape_cast %22 : vector<2x128xf32> to vector<1x1x2x128xf32>
    %c0_16 = arith.constant 0 : index
    %c0_17 = arith.constant 0 : index
    %c0_18 = arith.constant 0 : index
    %c0_19 = arith.constant 0 : index
    %24 = vector.load %arg7[%c0_16, %c0_17, %c0_18, %c0_19] : memref<1x1x2x128xf32, #tpu.memory_space<vmem>>, vector<1x1x2x128xf32>
    tpu.vector_store %arg7[%c0_16, %c0_17, %c0_18, %c0_19], %23 {strides = array<i32>} : memref<1x1x2x128xf32, #tpu.memory_space<vmem>>, vector<1x1x2x128xf32>,
    return
  }
  func.func @transform_0(%arg0: i32, %arg1: i32) -> (i32, i32, i32, i32) {
    %c0_i32 = arith.constant 0 : i32
    %c0_i32_0 = arith.constant 0 : i32
    %c0_i32_1 = arith.constant 0 : i32
    return %arg0, %arg1, %c0_i32, %c0_i32_0 : i32, i32, i32, i32
  }
  func.func @transform_1(%arg0: i32, %arg1: i32) -> (i32, i32) {
    %c0_i32 = arith.constant 0 : i32
    %c0_i32_0 = arith.constant 0 : i32
    %c0_i32_1 = arith.constant 0 : i32
    return %c0_i32, %c0_i32_0 : i32, i32
  }
  func.func @transform_2(%arg0: i32, %arg1: i32) -> (i32, i32) {
    %c0_i32 = arith.constant 0 : i32
    %c0_i32_0 = arith.constant 0 : i32
    %c0_i32_1 = arith.constant 0 : i32
    return %c0_i32, %c0_i32_0 : i32, i32
  }
  func.func @transform_3(%arg0: i32, %arg1: i32) -> (i32, i32) {
    %c0_i32 = arith.constant 0 : i32
    %c0_i32_0 = arith.constant 0 : i32
    %c0_i32_1 = arith.constant 0 : i32
    return %c0_i32, %c0_i32_0 : i32, i32
  }
  func.func @transform_4(%arg0: i32, %arg1: i32) -> (i32, i32, i32, i32) {
    %c0_i32 = arith.constant 0 : i32
    %c0_i32_0 = arith.constant 0 : i32
    %c0_i32_1 = arith.constant 0 : i32
    return %arg0, %arg1, %c0_i32, %c0_i32_0 : i32, i32, i32, i32
  }
  func.func @transform_5(%arg0: i32, %arg1: i32) -> (i32, i32, i32, i32) {
    %c0_i32 = arith.constant 0 : i32
    %c0_i32_0 = arith.constant 0 : i32
    %c0_i32_1 = arith.constant 0 : i32
    return %arg0, %arg1, %c0_i32, %c0_i32_0 : i32, i32, i32, i32
  }
}

module attributes {stable_mosaic.version = 11 : i64} {
  func.func @_bn_add_relu_kernel(%arg0: i32, %arg1: i32, %arg2: memref<1x8x16x128xbf16, #tpu.memory_space<vmem>>, %arg3: memref<1x8x16x128xf32, #tpu.memory_space<vmem>>, %arg4: memref<1x128xf32, #tpu.memory_space<vmem>>, %arg5: memref<1x128xf32, #tpu.memory_space<vmem>>, %arg6: memref<1x8x16x128xf32, #tpu.memory_space<vmem>>) attributes {dimension_semantics = [#tpu.dimension_semantics<parallel>, #tpu.dimension_semantics<parallel>], iteration_bounds = array<i64: 2, 2>, scalar_prefetch = 0 : i64, scratch_operands = 0 : i64, tpu.core_type = #tpu.core_type<tc>, window_params = [{transform_indices = @transform_0, window_bounds = array<i64: 1, 8, 16, 128>}, {transform_indices = @transform_1, window_bounds = array<i64: 1, 8, 16, 128>}, {pipeline_mode = #tpu.pipeline_mode<synchronous>, transform_indices = @transform_2, window_bounds = array<i64: 1, 128>}, {pipeline_mode = #tpu.pipeline_mode<synchronous>, transform_indices = @transform_3, window_bounds = array<i64: 1, 128>}, {transform_indices = @transform_4, window_bounds = array<i64: 1, 8, 16, 128>}]} {
    %c0 = arith.constant 0 : index
    %c0_0 = arith.constant 0 : index
    %c0_1 = arith.constant 0 : index
    %c0_2 = arith.constant 0 : index
    %0 = vector.load %arg2[%c0, %c0_0, %c0_1, %c0_2] : memref<1x8x16x128xbf16, #tpu.memory_space<vmem>>, vector<1x8x16x128xbf16>
    %1 = arith.extf %0 : vector<1x8x16x128xbf16> to vector<1x8x16x128xf32>
    %c0_3 = arith.constant 0 : index
    %c0_4 = arith.constant 0 : index
    %2 = vector.load %arg4[%c0_3, %c0_4] : memref<1x128xf32, #tpu.memory_space<vmem>>, vector<1x128xf32>
    %3 = vector.shape_cast %2 : vector<1x128xf32> to vector<1x1x1x128xf32>
    %4 = vector.broadcast %3 : vector<1x1x1x128xf32> to vector<1x8x16x128xf32>
    %5 = arith.mulf %1, %4 : vector<1x8x16x128xf32>
    %c0_5 = arith.constant 0 : index
    %c0_6 = arith.constant 0 : index
    %6 = vector.load %arg5[%c0_5, %c0_6] : memref<1x128xf32, #tpu.memory_space<vmem>>, vector<1x128xf32>
    %7 = vector.shape_cast %6 : vector<1x128xf32> to vector<1x1x1x128xf32>
    %8 = vector.broadcast %7 : vector<1x1x1x128xf32> to vector<1x8x16x128xf32>
    %9 = arith.addf %5, %8 : vector<1x8x16x128xf32>
    %c0_7 = arith.constant 0 : index
    %c0_8 = arith.constant 0 : index
    %c0_9 = arith.constant 0 : index
    %c0_10 = arith.constant 0 : index
    %10 = vector.load %arg3[%c0_7, %c0_8, %c0_9, %c0_10] : memref<1x8x16x128xf32, #tpu.memory_space<vmem>>, vector<1x8x16x128xf32>
    %11 = arith.addf %9, %10 : vector<1x8x16x128xf32>
    %cst = arith.constant 0.000000e+00 : f32
    %12 = vector.broadcast %cst : f32 to vector<1x8x16x128xf32>
    %13 = arith.maximumf %11, %12 : vector<1x8x16x128xf32>
    %c0_11 = arith.constant 0 : index
    %c0_12 = arith.constant 0 : index
    %c0_13 = arith.constant 0 : index
    %c0_14 = arith.constant 0 : index
    %14 = vector.load %arg6[%c0_11, %c0_12, %c0_13, %c0_14] : memref<1x8x16x128xf32, #tpu.memory_space<vmem>>, vector<1x8x16x128xf32>
    tpu.vector_store %arg6[%c0_11, %c0_12, %c0_13, %c0_14], %13 {strides = array<i32>} : memref<1x8x16x128xf32, #tpu.memory_space<vmem>>, vector<1x8x16x128xf32>,
    return
  }
  func.func @transform_0(%arg0: i32, %arg1: i32) -> (i32, i32, i32, i32) {
    %c0_i32 = arith.constant 0 : i32
    %c0_i32_0 = arith.constant 0 : i32
    %c0_i32_1 = arith.constant 0 : i32
    return %arg0, %arg1, %c0_i32, %c0_i32_0 : i32, i32, i32, i32
  }
  func.func @transform_1(%arg0: i32, %arg1: i32) -> (i32, i32, i32, i32) {
    %c0_i32 = arith.constant 0 : i32
    %c0_i32_0 = arith.constant 0 : i32
    %c0_i32_1 = arith.constant 0 : i32
    return %arg0, %arg1, %c0_i32, %c0_i32_0 : i32, i32, i32, i32
  }
  func.func @transform_2(%arg0: i32, %arg1: i32) -> (i32, i32) {
    %c0_i32 = arith.constant 0 : i32
    %c0_i32_0 = arith.constant 0 : i32
    %c0_i32_1 = arith.constant 0 : i32
    return %c0_i32, %c0_i32_0 : i32, i32
  }
  func.func @transform_3(%arg0: i32, %arg1: i32) -> (i32, i32) {
    %c0_i32 = arith.constant 0 : i32
    %c0_i32_0 = arith.constant 0 : i32
    %c0_i32_1 = arith.constant 0 : i32
    return %c0_i32, %c0_i32_0 : i32, i32
  }
  func.func @transform_4(%arg0: i32, %arg1: i32) -> (i32, i32, i32, i32) {
    %c0_i32 = arith.constant 0 : i32
    %c0_i32_0 = arith.constant 0 : i32
    %c0_i32_1 = arith.constant 0 : i32
    return %arg0, %arg1, %c0_i32, %c0_i32_0 : i32, i32, i32, i32
  }
}

</mosaic_0001>

<llo_original>
// kernel: bottleneck_pallas.4
$region0: #{bottleneck_pallas.4}
  #allocation0 [shape = 'u32[]', space=smem, size = 0x4, offset = 0x4, fixed_abs, tag = 'smem constant byte address 0x4 - core index']
  #allocation1 [shape = 'u32[144,128]{1,0:T(1,128)}', space=vmem, size = 0x12000, scoped, tag = 'internal scratch']
  %s0 = inlined_call_operand.vmem [shape: f32[2,16,16,128], index: 0, kind: input, shape index: {}]
  %s1 = inlined_call_operand.vmem [shape: bf16[128,128], index: 1, kind: input, shape index: {}]
  %s2 = inlined_call_operand.vmem [shape: bf16[2,16,16,128], index: 2, kind: output, shape index: {0}]
  %s3 = inlined_call_operand.vmem [shape: f32[2,2,2,128], index: 3, kind: output, shape index: {1}]
  %4 = xla_tuple %s2, %s3
  %s5 = sld [smem:[#allocation0]]
  $region49: #{bottleneck_pallas.4} parent=0
    _
  %s7 = ssub.s32 1, %s5
  %s8 = scalar_select 0, %s7, %s5
  loop: start=0, step=1, limit=6
  $region2: #{bottleneck_pallas.4} parent=0 // loop_pre_header
    _
  $region3: #{bottleneck_pallas.4} parent=0 // loop_header
    %s10 = sphi 0, %s14
    %p11 = scmp.ge.s32.totalorder %s10, 6
    %s17 = sphi 0, %s29
    %s18 = sphi 0, %s25
    %s19 = sphi 0, %s17
    %s20 = sphi 0, %s18
    %s21 = sphi 0, %s19
    %s22 = sphi 0, %s20
    %s34 = sphi 0, %s36
    %s37 = sphi 0, %s34
    %s38 = sphi 0, %s37
    %s54 = sphi 0, %s38
    %s58 = sphi 0, %s58
    %s60 = sphi 0, %s58
    %s61 = sphi 0, %s60
    %s75 = sphi 0, %s61
    %s83 = sphi 0, %s85
    %s86 = sphi 0, %s83
    %s87 = sphi 0, %s86
    %s103 = sphi 0, %s87
    %s111 = sphi 0, %s113
    %s114 = sphi 0, %s111
    %s115 = sphi 0, %s114
    %s131 = sphi 0, %s115
  $region4: #{bottleneck_pallas.4} parent=0 // loop_header_branch
    %13 = sbr.rel (%p11) target = $region8
  $region5: #{bottleneck_pallas.4} parent=0 // loop_body
    %s15 = ssub.s32 %s10, 1
    %s16 = ssub.s32 %s10, 2
    %s23 = sadd.s32 1, %s18
    %p24 = scmp.ge.s32.totalorder %s23, 2
    %s25 = scalar_select %p24, 0, %s23
    %s26 = sadd.s32 1, %s17
    %s27 = scalar_select %p24, %s26, %s17
    %p28 = scmp.ge.s32.totalorder %s27, 2
    %s29 = scalar_select %p28, 0, %s27
    %s30 = ssub.s32 %s17, %s29
    %s31 = ssub.s32 %s18, %s25
    %s32 = sor.u32 %s30, %s31
    %p33 = scmp.eq.s32.totalorder %s32, 0
    %s35 = sadd.s32 %s34, 1
    %s36 = scalar_select %p33, %s34, %s35
    %p39 = pneg %p33
    %p40 = scmp.eq.s32.totalorder %s10, 3
    %p41 = por %p39, %p40
    %p42 = scmp.ne.s32.totalorder %s34, %s37
    %p43 = scmp.eq.s32.totalorder %s10, 0
    %p44 = por %p42, %p43
    %p45 = scmp.ne.s32.totalorder %s34, %s37
    %p46 = scmp.eq.s32.totalorder %s15, 3
    %p47 = por %p45, %p46
    %p48 = scmp.ne.s32.totalorder %s37, %s38
    %p49 = scmp.eq.s32.totalorder %s15, 0
    %p50 = por %p48, %p49
    %p51 = scmp.ne.s32.totalorder %s37, %s38
    %p52 = scmp.eq.s32.totalorder %s16, 3
    %p53 = por %p51, %p52
    %p55 = scmp.ne.s32.totalorder %s38, %s54
    %p56 = scmp.eq.s32.totalorder %s16, 0
    %p57 = por %p55, %p56
    %s59 = sadd.s32 %s58, 1
    %p62 = scmp.eq.s32.totalorder %s10, 3
    %p63 = scmp.ne.s32.totalorder %s58, %s60
    %p64 = scmp.eq.s32.totalorder %s10, 0
    %p65 = por %p63, %p64
    %p66 = scmp.ne.s32.totalorder %s58, %s60
    %p67 = scmp.eq.s32.totalorder %s15, 3
    %p68 = por %p66, %p67
    %p69 = scmp.ne.s32.totalorder %s60, %s61
    %p70 = scmp.eq.s32.totalorder %s15, 0
    %p71 = por %p69, %p70
    %p72 = scmp.ne.s32.totalorder %s60, %s61
    %p73 = scmp.eq.s32.totalorder %s16, 3
    %p74 = por %p72, %p73
    %p76 = scmp.ne.s32.totalorder %s61, %s75
    %p77 = scmp.eq.s32.totalorder %s16, 0
    %p78 = por %p76, %p77
    %s79 = ssub.s32 %s17, %s29
    %s80 = ssub.s32 %s18, %s25
    %s81 = sor.u32 %s79, %s80
    %p82 = scmp.eq.s32.totalorder %s81, 0
    %s84 = sadd.s32 %s83, 1
    %s85 = scalar_select %p82, %s83, %s84
    %p88 = pneg %p82
    %p89 = scmp.eq.s32.totalorder %s10, 3
    %p90 = por %p88, %p89
    %p91 = scmp.ne.s32.totalorder %s83, %s86
    %p92 = scmp.eq.s32.totalorder %s10, 0
    %p93 = por %p91, %p92
    %p94 = scmp.ne.s32.totalorder %s83, %s86
    %p95 = scmp.eq.s32.totalorder %s15, 3
    %p96 = por %p94, %p95
    %p97 = scmp.ne.s32.totalorder %s86, %s87
    %p98 = scmp.eq.s32.totalorder %s15, 0
    %p99 = por %p97, %p98
    %p100 = scmp.ne.s32.totalorder %s86, %s87
    %p101 = scmp.eq.s32.totalorder %s16, 3
    %p102 = por %p100, %p101
    %p104 = scmp.ne.s32.totalorder %s87, %s103
    %p105 = scmp.eq.s32.totalorder %s16, 0
    %p106 = por %p104, %p105
    %s107 = ssub.s32 %s17, %s29
    %s108 = ssub.s32 %s18, %s25
    %s109 = sor.u32 %s107, %s108
    %p110 = scmp.eq.s32.totalorder %s109, 0
    %s112 = sadd.s32 %s111, 1
    %s113 = scalar_select %p110, %s111, %s112
    %p116 = pneg %p110
    %p117 = scmp.eq.s32.totalorder %s10, 3
    %p118 = por %p116, %p117
    %p119 = scmp.ne.s32.totalorder %s111, %s114
    %p120 = scmp.eq.s32.totalorder %s10, 0
    %p121 = por %p119, %p120
    %p122 = scmp.ne.s32.totalorder %s111, %s114
    %p123 = scmp.eq.s32.totalorder %s15, 3
    %p124 = por %p122, %p123
    %p125 = scmp.ne.s32.totalorder %s114, %s115
    %p126 = scmp.eq.s32.totalorder %s15, 0
    %p127 = por %p125, %p126
    %p128 = scmp.ne.s32.totalorder %s114, %s115
    %p129 = scmp.eq.s32.totalorder %s16, 3
    %p130 = por %p128, %p129
    %p132 = scmp.ne.s32.totalorder %s115, %s131
    %p133 = scmp.eq.s32.totalorder %s16, 0
    %p134 = por %p132, %p133
    %p135 = scmp.le.s32.totalorder 1, %s10
    %p136 = scmp.lt.s32.totalorder %s10, 5
    %p137 = pnand %p135, %p136
    %p138 = pneg %p137
    // Predicated region
    $region9: #{bottleneck_pallas.4} parent=5 // pred_check
      _
    $region10: #{bottleneck_pallas.4} parent=5 // pred_check_branch
      %140 = sbr.rel (%p137) target = $region12
    $region11: #{bottleneck_pallas.4} parent=5 // pred_region
      %s141 = ssub.s32 %s10, 1
      // Predicated region
      $region13: #{bottleneck_pallas.4} parent=11 // pred_check
        %p142 = pneg %p71
      $region14: #{bottleneck_pallas.4} parent=11 // pred_check_branch
        %144 = sbr.rel (%p142) target = $region16
      $region15: #{bottleneck_pallas.4} parent=11 // pred_region
        _
      $region16: #{bottleneck_pallas.4} parent=11 // pred_fallthru
        _
    $region12: #{bottleneck_pallas.4} parent=5 // pred_fallthru
      _
    %p145 = scmp.lt.s32.totalorder %s10, 4
    // Predicated region
    $region17: #{bottleneck_pallas.4} parent=5 // pred_check
      %p146 = pneg %p145
    $region18: #{bottleneck_pallas.4} parent=5 // pred_check_branch
      %148 = sbr.rel (%p146) target = $region20
    $region19: #{bottleneck_pallas.4} parent=5 // pred_region
      // Predicated region
      $region21: #{bottleneck_pallas.4} parent=19 // pred_check
        %p149 = pneg %p44
      $region22: #{bottleneck_pallas.4} parent=19 // pred_check_branch
        %151 = sbr.rel (%p149) target = $region24
      $region23: #{bottleneck_pallas.4} parent=19 // pred_region
        %s152 = smul.u32 8, %s18
        %p153 = scmp.lt.s32.totalorder %s17, 1
        %s154 = scalar_select %p153, %s17, 1
        %p155 = scmp.lt.s32.totalorder %s152, 15
        %s156 = scalar_select %p155, %s152, 15
        %s157 = smul.addr %s156, 2
        %s158 = smul.addr %s154, 32
        %s159 = sadd.s32 %s157, %s158
        %s160 = smul.addr %s159, 8
        %s161 = scalar_lea.vmem %s0, %s160
        %s162 = smul.u32 8, %s18
      $region24: #{bottleneck_pallas.4} parent=19 // pred_fallthru
        _
    $region20: #{bottleneck_pallas.4} parent=5 // pred_fallthru
      _
    %p163 = scmp.le.s32.totalorder 1, %s10
    %p164 = scmp.lt.s32.totalorder %s10, 5
    %p165 = pnand %p163, %p164
    %p166 = pneg %p165
    // Predicated region
    $region25: #{bottleneck_pallas.4} parent=5 // pred_check
      _
    $region26: #{bottleneck_pallas.4} parent=5 // pred_check_branch
      %168 = sbr.rel (%p165) target = $region28
    $region27: #{bottleneck_pallas.4} parent=5 // pred_region
      %s169 = ssub.s32 %s10, 1
      %s170 = smul.u32 8, %s20
      %p171 = scmp.lt.s32.totalorder %s19, 1
      %s172 = scalar_select %p171, %s19, 1
      %p173 = scmp.lt.s32.totalorder %s170, 15
      %s174 = scalar_select %p173, %s170, 15
      %s175 = smul.addr %s174, 2
      %s176 = smul.addr %s172, 32
      %s177 = sadd.s32 %s175, %s176
      %s178 = smul.addr %s177, 8
      %s179 = scalar_lea.vmem %s0, %s178
      %p180 = pneg %p50
      %p181 = pneg %p47
      %p182 = pneg %p71
      %p183 = pneg %p68
      %p184 = pneg %p99
      %p185 = pneg %p96
      %s186 = smul.u32 8, %s20
      %p187 = scmp.lt.s32.totalorder %s19, 1
      %s188 = scalar_select %p187, %s19, 1
      %p189 = scmp.lt.s32.totalorder %s186, 15
      %s190 = scalar_select %p189, %s186, 15
      %s191 = smul.addr %s190, 2
      %s192 = smul.addr %s188, 32
      %s193 = sadd.s32 %s191, %s192
      %s194 = smul.addr %s193, 4
      %s195 = scalar_lea.vmem %s2, %s194
      %p196 = pneg %p127
      %p197 = pneg %p124
      %p198 = scmp.lt.s32.totalorder %s19, 1
      %s199 = scalar_select %p198, %s19, 1
      %p200 = scmp.lt.s32.totalorder %s20, 1
      %s201 = scalar_select %p200, %s20, 1
      %s202 = smul.addr %s199, 2
      %s203 = sadd.s32 %s201, %s202
      %s204 = smul.addr %s203, 2
      %s205 = scalar_lea.vmem %s3, %s204
      %s206 = smul.u32 8, %s20
      %p207 = scmp.lt.s32.totalorder %s19, 1
      %s208 = scalar_select %p207, %s19, 1
      %p209 = scmp.lt.s32.totalorder %s206, 15
      %s210 = scalar_select %p209, %s206, 15
      %s211 = smul.addr %s210, 2
      %s212 = smul.addr %s208, 32
      %s213 = sadd.s32 %s211, %s212
      %s214 = smul.addr %s213, 8
      %s215 = scalar_lea.vmem %s0, %s214
      %s216 = smul.u32 8, %s20
      %s217 = smul.u32 8, %s20
      %p218 = scmp.lt.s32.totalorder %s19, 1
      %s219 = scalar_select %p218, %s19, 1
      %p220 = scmp.lt.s32.totalorder %s217, 15
      %s221 = scalar_select %p220, %s217, 15
      %s222 = smul.addr %s221, 2
      %s223 = smul.addr %s219, 32
      %s224 = sadd.s32 %s222, %s223
      %s225 = smul.addr %s224, 4
      %s226 = scalar_lea.vmem %s2, %s225
      %s227 = smul.u32 8, %s20
      %p228 = scmp.lt.s32.totalorder %s19, 1
      %s229 = scalar_select %p228, %s19, 1
      %p230 = scmp.lt.s32.totalorder %s20, 1
      %s231 = scalar_select %p230, %s20, 1
      %s232 = smul.addr %s229, 2
      %s233 = sadd.s32 %s231, %s232
      %s234 = smul.addr %s233, 2
      %s235 = scalar_lea.vmem %s3, %s234
      %v237 = vld [vmem:[%s215] sm:$0xff]
      %v238 = vld [vmem:[%s215 + $0x8] sm:$0xff]
      %v239 = vld [vmem:[%s215 + $0x10] sm:$0xff]
      %v240 = vld [vmem:[%s215 + $0x18] sm:$0xff]
      %v241 = vld [vmem:[%s215 + $0x20] sm:$0xff]
      %v242 = vld [vmem:[%s215 + $0x28] sm:$0xff]
      %v243 = vld [vmem:[%s215 + $0x30] sm:$0xff]
      %v244 = vld [vmem:[%s215 + $0x38] sm:$0xff]
      %v245 = vld [vmem:[%s215 + $0x40] sm:$0xff]
      %v246 = vld [vmem:[%s215 + $0x48] sm:$0xff]
      %v247 = vld [vmem:[%s215 + $0x50] sm:$0xff]
      %v248 = vld [vmem:[%s215 + $0x58] sm:$0xff]
      %v249 = vld [vmem:[%s215 + $0x60] sm:$0xff]
      %v250 = vld [vmem:[%s215 + $0x68] sm:$0xff]
      %v251 = vld [vmem:[%s215 + $0x70] sm:$0xff]
      %v252 = vld [vmem:[%s215 + $0x78] sm:$0xff]
      %v253 = vpack.c.bf16 %v238, %v237
      %v254 = vpack.c.bf16 %v240, %v239
      %v255 = vpack.c.bf16 %v242, %v241
      %v256 = vpack.c.bf16 %v244, %v243
      %v257 = vpack.c.bf16 %v246, %v245
      %v258 = vpack.c.bf16 %v248, %v247
      %v259 = vpack.c.bf16 %v250, %v249
      %v260 = vpack.c.bf16 %v252, %v251
      %v261 = vld [vmem:[%s1] sm:$0xf]
      %v262 = vld [vmem:[%s1 + $0x4] sm:$0xf]
      %v263 = vld [vmem:[%s1 + $0x8] sm:$0xf]
      %v264 = vld [vmem:[%s1 + $0xc] sm:$0xf]
      %v265 = vld [vmem:[%s1 + $0x10] sm:$0xf]
      %v266 = vld [vmem:[%s1 + $0x14] sm:$0xf]
      %v267 = vld [vmem:[%s1 + $0x18] sm:$0xf]
      %v268 = vld [vmem:[%s1 + $0x1c] sm:$0xf]
      %v269 = vld [vmem:[%s1 + $0x20] sm:$0xf]
      %v270 = vld [vmem:[%s1 + $0x24] sm:$0xf]
      %v271 = vld [vmem:[%s1 + $0x28] sm:$0xf]
      %v272 = vld [vmem:[%s1 + $0x2c] sm:$0xf]
      %v273 = vld [vmem:[%s1 + $0x30] sm:$0xf]
      %v274 = vld [vmem:[%s1 + $0x34] sm:$0xf]
      %v275 = vld [vmem:[%s1 + $0x38] sm:$0xf]
      %v276 = vld [vmem:[%s1 + $0x3c] sm:$0xf]
      %v293 = vunpack.c.l.b16 %v261
      %v294 = vunpack.c.l.b16 %v262
      %v295 = vunpack.c.l.b16 %v263
      %v296 = vunpack.c.l.b16 %v264
      %v297 = vunpack.c.l.b16 %v265
      %v298 = vunpack.c.l.b16 %v266
      %v299 = vunpack.c.l.b16 %v267
      %v300 = vunpack.c.l.b16 %v268
      %v301 = vunpack.c.l.b16 %v269
      %v302 = vunpack.c.l.b16 %v270
      %v303 = vunpack.c.l.b16 %v271
      %v304 = vunpack.c.l.b16 %v272
      %v305 = vunpack.c.l.b16 %v273
      %v306 = vunpack.c.l.b16 %v274
      %v307 = vunpack.c.l.b16 %v275
      %v308 = vunpack.c.l.b16 %v276
      %v309 = vpack.c.b16 %v294, %v293
      %v310 = vpack.c.b16 %v296, %v295
      %v311 = vpack.c.b16 %v298, %v297
      %v312 = vpack.c.b16 %v300, %v299
      %v313 = vpack.c.b16 %v302, %v301
      %v314 = vpack.c.b16 %v304, %v303
      %v315 = vpack.c.b16 %v306, %v305
      %v316 = vpack.c.b16 %v308, %v307
      %325 = vmatprep.subr.bf16.mxu0 0
      %326 = vmatpush1.bf16.msra.mxu0 %v316
      %327 = vmatprep.subr.bf16.mxu0 0
      %328 = vmatpush1.bf16.msra.mxu0 %v315
      %329 = vmatprep.subr.bf16.mxu0 0
      %330 = vmatpush1.bf16.msra.mxu0 %v314
      %331 = vmatprep.subr.bf16.mxu0 0
      %332 = vmatpush1.bf16.msra.mxu0 %v313
      %333 = vmatprep.subr.bf16.mxu0 0
      %334 = vmatpush1.bf16.msra.mxu0 %v312
      %335 = vmatprep.subr.bf16.mxu0 0
      %336 = vmatpush1.bf16.msra.mxu0 %v311
      %337 = vmatprep.subr.bf16.mxu0 0
      %338 = vmatpush1.bf16.msra.mxu0 %v310
      %339 = vmatprep.subr.bf16.mxu0 0
      %340 = vmatpush1.bf16.msra.mxu0 %v309
      %341 = vmatprep.subr.bf16.mxu0 0
      %342 = vmatpush2.bf16.msra.mxu0 0
      %343 = vmatprep.subr.bf16.mxu0 0
      %344 = vmatpush2.bf16.msra.mxu0 0
      %345 = vmatprep.subr.bf16.mxu0 0
      %346 = vmatpush2.bf16.msra.mxu0 0
      %347 = vmatprep.subr.bf16.mxu0 0
      %348 = vmatpush2.bf16.msra.mxu0 0
      %349 = vmatprep.subr.bf16.mxu0 0
      %350 = vmatpush2.bf16.msra.mxu0 0
      %351 = vmatprep.subr.bf16.mxu0 0
      %352 = vmatpush2.bf16.msra.mxu0 0
      %353 = vmatprep.subr.bf16.mxu0 0
      %354 = vmatpush2.bf16.msra.mxu0 0
      %355 = vmatprep.subr.bf16.mxu0 0
      %356 = vmatpush2.bf16.msra.mxu0 0
      %357 = vmatprep.mubr.bf16.mxu0 0
      %358 = vmatmul.mubr.bf16.gmra.mxu0 %v253
      %v359 = vpop.f32.mrf.mxu0
      %v360 = vadd.f32 0.0, %v359
      %v361 = vpop.f32.mrf.mxu0
      %v362 = vpop.f32.mrf.mxu0
      %v363 = vadd.f32 0.0, %v362
      %v364 = vpop.f32.mrf.mxu0
      %365 = vmatprep.mubr.bf16.mxu0 0
      %366 = vmatmul.mubr.bf16.gmra.mxu0 %v254
      %v367 = vpop.f32.mrf.mxu0
      %v368 = vadd.f32 0.0, %v367
      %v369 = vpop.f32.mrf.mxu0
      %v370 = vpop.f32.mrf.mxu0
      %v371 = vadd.f32 0.0, %v370
      %v372 = vpop.f32.mrf.mxu0
      %373 = vmatprep.mubr.bf16.mxu0 0
      %374 = vmatmul.mubr.bf16.gmra.mxu0 %v255
      %v375 = vpop.f32.mrf.mxu0
      %v376 = vadd.f32 0.0, %v375
      %v377 = vpop.f32.mrf.mxu0
      %v378 = vpop.f32.mrf.mxu0
      %v379 = vadd.f32 0.0, %v378
      %v380 = vpop.f32.mrf.mxu0
      %381 = vmatprep.mubr.bf16.mxu0 0
      %382 = vmatmul.mubr.bf16.gmra.mxu0 %v256
      %v383 = vpop.f32.mrf.mxu0
      %v384 = vadd.f32 0.0, %v383
      %v385 = vpop.f32.mrf.mxu0
      %v386 = vpop.f32.mrf.mxu0
      %v387 = vadd.f32 0.0, %v386
      %v388 = vpop.f32.mrf.mxu0
      %389 = vmatprep.mubr.bf16.mxu0 0
      %390 = vmatmul.mubr.bf16.gmra.mxu0 %v257
      %v391 = vpop.f32.mrf.mxu0
      %v392 = vadd.f32 0.0, %v391
      %v393 = vpop.f32.mrf.mxu0
      %v394 = vpop.f32.mrf.mxu0
      %v395 = vadd.f32 0.0, %v394
      %v396 = vpop.f32.mrf.mxu0
      %397 = vmatprep.mubr.bf16.mxu0 0
      %398 = vmatmul.mubr.bf16.gmra.mxu0 %v258
      %v399 = vpop.f32.mrf.mxu0
      %v400 = vadd.f32 0.0, %v399
      %v401 = vpop.f32.mrf.mxu0
      %v402 = vpop.f32.mrf.mxu0
      %v403 = vadd.f32 0.0, %v402
      %v404 = vpop.f32.mrf.mxu0
      %405 = vmatprep.mubr.bf16.mxu0 0
      %406 = vmatmul.mubr.bf16.gmra.mxu0 %v259
      %v407 = vpop.f32.mrf.mxu0
      %v408 = vadd.f32 0.0, %v407
      %v409 = vpop.f32.mrf.mxu0
      %v410 = vpop.f32.mrf.mxu0
      %v411 = vadd.f32 0.0, %v410
      %v412 = vpop.f32.mrf.mxu0
      %413 = vmatprep.mubr.bf16.mxu0 0
      %414 = vmatmul.mubr.bf16.gmra.mxu0 %v260
      %v415 = vpop.f32.mrf.mxu0
      %v416 = vadd.f32 0.0, %v415
      %v417 = vpop.f32.mrf.mxu0
      %v418 = vpop.f32.mrf.mxu0
      %v419 = vadd.f32 0.0, %v418
      %v420 = vpop.f32.mrf.mxu0
      %421 = vdwg.mxu0
      %v422 = vpack.c.bf16 %v363, %v360
      %v423 = vpack.c.bf16 %v371, %v368
      %v424 = vpack.c.bf16 %v379, %v376
      %v425 = vpack.c.bf16 %v387, %v384
      %v426 = vpack.c.bf16 %v395, %v392
      %v427 = vpack.c.bf16 %v403, %v400
      %v428 = vpack.c.bf16 %v411, %v408
      %v429 = vpack.c.bf16 %v419, %v416
      %v438 = vunpack.c.l.b16 %v422
      %v439 = vunpack.c.h.b16 %v422
      %v440 = vunpack.c.l.b16 %v423
      %v441 = vunpack.c.h.b16 %v423
      %v442 = vunpack.c.l.b16 %v424
      %v443 = vunpack.c.h.b16 %v424
      %v444 = vunpack.c.l.b16 %v425
      %v445 = vunpack.c.h.b16 %v425
      %v446 = vunpack.c.l.b16 %v426
      %v447 = vunpack.c.h.b16 %v426
      %v448 = vunpack.c.l.b16 %v427
      %v449 = vunpack.c.h.b16 %v427
      %v450 = vunpack.c.l.b16 %v428
      %v451 = vunpack.c.h.b16 %v428
      %v452 = vunpack.c.l.b16 %v429
      %v453 = vunpack.c.h.b16 %v429
      %v454 = vpack.c.b16 %v438, %v438
      %v455 = vpack.c.b16 %v439, %v439
      %v456 = vpack.c.b16 %v440, %v440
      %v457 = vpack.c.b16 %v441, %v441
      %v458 = vpack.c.b16 %v442, %v442
      %v459 = vpack.c.b16 %v443, %v443
      %v460 = vpack.c.b16 %v444, %v444
      %v461 = vpack.c.b16 %v445, %v445
      %v462 = vpack.c.b16 %v446, %v446
      %v463 = vpack.c.b16 %v447, %v447
      %v464 = vpack.c.b16 %v448, %v448
      %v465 = vpack.c.b16 %v449, %v449
      %v466 = vpack.c.b16 %v450, %v450
      %v467 = vpack.c.b16 %v451, %v451
      %v468 = vpack.c.b16 %v452, %v452
      %v469 = vpack.c.b16 %v453, %v453
      %486 = vst [vmem:[%s226] sm:$0xf] %v454
      %487 = vst [vmem:[%s226 + $0x4] sm:$0xf] %v455
      %488 = vst [vmem:[%s226 + $0x8] sm:$0xf] %v456
      %489 = vst [vmem:[%s226 + $0xc] sm:$0xf] %v457
      %490 = vst [vmem:[%s226 + $0x10] sm:$0xf] %v458
      %491 = vst [vmem:[%s226 + $0x14] sm:$0xf] %v459
      %492 = vst [vmem:[%s226 + $0x18] sm:$0xf] %v460
      %493 = vst [vmem:[%s226 + $0x1c] sm:$0xf] %v461
      %494 = vst [vmem:[%s226 + $0x20] sm:$0xf] %v462
      %495 = vst [vmem:[%s226 + $0x24] sm:$0xf] %v463
      %496 = vst [vmem:[%s226 + $0x28] sm:$0xf] %v464
      %497 = vst [vmem:[%s226 + $0x2c] sm:$0xf] %v465
      %498 = vst [vmem:[%s226 + $0x30] sm:$0xf] %v466
      %499 = vst [vmem:[%s226 + $0x34] sm:$0xf] %v467
      %500 = vst [vmem:[%s226 + $0x38] sm:$0xf] %v468
      %501 = vst [vmem:[%s226 + $0x3c] sm:$0xf] %v469
      %v502 = vadd.f32 %v360, %v363
      %v503 = vadd.f32 %v502, %v368
      %v504 = vadd.f32 %v503, %v371
      %v505 = vadd.f32 %v504, %v376
      %v506 = vadd.f32 %v505, %v379
      %v507 = vadd.f32 %v506, %v384
      %v508 = vadd.f32 %v507, %v387
      %v509 = vadd.f32 %v508, %v392
      %v510 = vadd.f32 %v509, %v395
      %v511 = vadd.f32 %v510, %v400
      %v512 = vadd.f32 %v511, %v403
      %v513 = vadd.f32 %v512, %v408
      %v514 = vadd.f32 %v513, %v411
      %v515 = vadd.f32 %v514, %v416
      %v516 = vadd.f32 %v515, %v419
      %v517 = vrot.slane %v516, 4
      %v518 = vadd.f32 %v516, %v517
      %v519 = vrot.slane %v518, 2
      %v520 = vadd.f32 %v518, %v519
      %v521 = vrot.slane %v520, 1
      %v522 = vadd.f32 %v520, %v521
      %v523 = vmul.f32 %v360, %v360
      %v524 = vmul.f32 %v363, %v363
      %v525 = vmul.f32 %v368, %v368
      %v526 = vmul.f32 %v371, %v371
      %v527 = vmul.f32 %v376, %v376
      %v528 = vmul.f32 %v379, %v379
      %v529 = vmul.f32 %v384, %v384
      %v530 = vmul.f32 %v387, %v387
      %v531 = vmul.f32 %v392, %v392
      %v532 = vmul.f32 %v395, %v395
      %v533 = vmul.f32 %v400, %v400
      %v534 = vmul.f32 %v403, %v403
      %v535 = vmul.f32 %v408, %v408
      %v536 = vmul.f32 %v411, %v411
      %v537 = vmul.f32 %v416, %v416
      %v538 = vmul.f32 %v419, %v419
      %v539 = vadd.f32 %v523, %v524
      %v540 = vadd.f32 %v539, %v525
      %v541 = vadd.f32 %v540, %v526
      %v542 = vadd.f32 %v541, %v527
      %v543 = vadd.f32 %v542, %v528
      %v544 = vadd.f32 %v543, %v529
      %v545 = vadd.f32 %v544, %v530
      %v546 = vadd.f32 %v545, %v531
      %v547 = vadd.f32 %v546, %v532
      %v548 = vadd.f32 %v547, %v533
      %v549 = vadd.f32 %v548, %v534
      %v550 = vadd.f32 %v549, %v535
      %v551 = vadd.f32 %v550, %v536
      %v552 = vadd.f32 %v551, %v537
      %v553 = vadd.f32 %v552, %v538
      %v554 = vrot.slane %v553, 4
      %v555 = vadd.f32 %v553, %v554
      %v556 = vrot.slane %v555, 2
      %v557 = vadd.f32 %v555, %v556
      %v558 = vrot.slane %v557, 1
      %v559 = vadd.f32 %v557, %v558
      %vm560 = vcmask 1040384
      %v561 = vsel %vm560, %v522, %v559
      %562 = vst [vmem:[%s235] sm:$0x3] %v561
      %s563 = smul.u32 8, %s20
      %p564 = scmp.lt.s32.totalorder %s19, 1
      %s565 = scalar_select %p564, %s19, 1
      %p566 = scmp.lt.s32.totalorder %s563, 15
      %s567 = scalar_select %p566, %s563, 15
      %s568 = smul.addr %s567, 2
      %s569 = smul.addr %s565, 32
      %s570 = sadd.s32 %s568, %s569
      %s571 = smul.addr %s570, 4
      %s572 = scalar_lea.vmem %s2, %s571
      %p573 = scmp.lt.s32.totalorder %s19, 1
      %s574 = scalar_select %p573, %s19, 1
      %p575 = scmp.lt.s32.totalorder %s20, 1
      %s576 = scalar_select %p575, %s20, 1
      %s577 = smul.addr %s574, 2
      %s578 = sadd.s32 %s576, %s577
      %s579 = smul.addr %s578, 2
      %s580 = scalar_lea.vmem %s3, %s579
      // Predicated region
      $region29: #{bottleneck_pallas.4} parent=27 // pred_check
        %p581 = pneg %p96
      $region30: #{bottleneck_pallas.4} parent=27 // pred_check_branch
        %583 = sbr.rel (%p581) target = $region32
      $region31: #{bottleneck_pallas.4} parent=27 // pred_region
        %s584 = smul.u32 8, %s20
      $region32: #{bottleneck_pallas.4} parent=27 // pred_fallthru
        _
      // Predicated region
      $region33: #{bottleneck_pallas.4} parent=27 // pred_check
        %p585 = pneg %p124
      $region34: #{bottleneck_pallas.4} parent=27 // pred_check_branch
        %587 = sbr.rel (%p585) target = $region36
      $region35: #{bottleneck_pallas.4} parent=27 // pred_region
        _
      $region36: #{bottleneck_pallas.4} parent=27 // pred_fallthru
        _
    $region28: #{bottleneck_pallas.4} parent=5 // pred_fallthru
      _
    %p588 = scmp.le.s32.totalorder 2, %s10
    // Predicated region
    $region37: #{bottleneck_pallas.4} parent=5 // pred_check
      %p589 = pneg %p588
    $region38: #{bottleneck_pallas.4} parent=5 // pred_check_branch
      %591 = sbr.rel (%p589) target = $region40
    $region39: #{bottleneck_pallas.4} parent=5 // pred_region
      %s592 = ssub.s32 %s10, 2
      // Predicated region
      $region41: #{bottleneck_pallas.4} parent=39 // pred_check
        %p593 = pneg %p102
      $region42: #{bottleneck_pallas.4} parent=39 // pred_check_branch
        %595 = sbr.rel (%p593) target = $region44
      $region43: #{bottleneck_pallas.4} parent=39 // pred_region
        %s596 = smul.u32 8, %s22
        %p597 = scmp.lt.s32.totalorder %s21, 1
        %s598 = scalar_select %p597, %s21, 1
        %p599 = scmp.lt.s32.totalorder %s596, 15
        %s600 = scalar_select %p599, %s596, 15
        %s601 = smul.addr %s600, 2
        %s602 = smul.addr %s598, 32
        %s603 = sadd.s32 %s601, %s602
        %s604 = smul.addr %s603, 4
        %s605 = scalar_lea.vmem %s2, %s604
      $region44: #{bottleneck_pallas.4} parent=39 // pred_fallthru
        _
      // Predicated region
      $region45: #{bottleneck_pallas.4} parent=39 // pred_check
        %p606 = pneg %p130
      $region46: #{bottleneck_pallas.4} parent=39 // pred_check_branch
        %608 = sbr.rel (%p606) target = $region48
      $region47: #{bottleneck_pallas.4} parent=39 // pred_region
        %p609 = scmp.lt.s32.totalorder %s21, 1
        %s610 = scalar_select %p609, %s21, 1
        %p611 = scmp.lt.s32.totalorder %s22, 1
        %s612 = scalar_select %p611, %s22, 1
        %s613 = smul.addr %s610, 2
        %s614 = sadd.s32 %s612, %s613
        %s615 = smul.addr %s614, 2
        %s616 = scalar_lea.vmem %s3, %s615
      $region48: #{bottleneck_pallas.4} parent=39 // pred_fallthru
        _
    $region40: #{bottleneck_pallas.4} parent=5 // pred_fallthru
      _
  $region6: #{bottleneck_pallas.4} parent=0 // loop_footer
    %s14 = sadd.s32 1, %s10
  $region7: #{bottleneck_pallas.4} parent=0 // loop_footer_branch
    %9 = sbr.rel target = $region3
  $region8: #{bottleneck_pallas.4} parent=0 // loop_exit
    _

// kernel: bottleneck_pallas.6
$region0: #{bottleneck_pallas.6}
  #allocation0 [shape = 'u32[]', space=smem, size = 0x4, offset = 0x4, fixed_abs, tag = 'smem constant byte address 0x4 - core index']
  #allocation1 [shape = 'u32[144,128]{1,0:T(1,128)}', space=vmem, size = 0x12000, scoped, tag = 'internal scratch']
  %s0 = inlined_call_operand.vmem [shape: bf16[2,16,16,128], index: 0, kind: input, shape index: {}]
  %s1 = inlined_call_operand.vmem [shape: f32[1,128], index: 1, kind: input, shape index: {}]
  %s2 = inlined_call_operand.vmem [shape: f32[1,128], index: 2, kind: input, shape index: {}]
  %s3 = inlined_call_operand.vmem [shape: bf16[128,128], index: 3, kind: input, shape index: {}]
  %s4 = inlined_call_operand.vmem [shape: bf16[2,16,16,128], index: 4, kind: output, shape index: {0}]
  %s5 = inlined_call_operand.vmem [shape: f32[2,2,2,128], index: 5, kind: output, shape index: {1}]
  %6 = xla_tuple %s4, %s5
  %s7 = sld [smem:[#allocation0]]
  $region57: #{bottleneck_pallas.6} parent=0
    _
  %s9 = ssub.s32 1, %s7
  %s10 = scalar_select 0, %s9, %s7
  loop: start=0, step=1, limit=6
  $region2: #{bottleneck_pallas.6} parent=0 // loop_pre_header
    _
  $region3: #{bottleneck_pallas.6} parent=0 // loop_header
    %s12 = sphi 0, %s16
    %p13 = scmp.ge.s32.totalorder %s12, 6
    %s19 = sphi 0, %s31
    %s20 = sphi 0, %s27
    %s21 = sphi 0, %s19
    %s22 = sphi 0, %s20
    %s23 = sphi 0, %s21
    %s24 = sphi 0, %s22
    %s36 = sphi 0, %s38
    %s39 = sphi 0, %s36
    %s40 = sphi 0, %s39
    %s56 = sphi 0, %s40
    %s60 = sphi 0, %s60
    %s62 = sphi 0, %s60
    %s63 = sphi 0, %s62
    %s77 = sphi 0, %s63
    %s81 = sphi 0, %s81
    %s83 = sphi 0, %s81
    %s84 = sphi 0, %s83
    %s98 = sphi 0, %s84
    %s102 = sphi 0, %s102
    %s104 = sphi 0, %s102
    %s105 = sphi 0, %s104
    %s119 = sphi 0, %s105
    %s127 = sphi 0, %s129
    %s130 = sphi 0, %s127
    %s131 = sphi 0, %s130
    %s147 = sphi 0, %s131
    %s155 = sphi 0, %s157
    %s158 = sphi 0, %s155
    %s159 = sphi 0, %s158
    %s175 = sphi 0, %s159
  $region4: #{bottleneck_pallas.6} parent=0 // loop_header_branch
    %15 = sbr.rel (%p13) target = $region8
  $region5: #{bottleneck_pallas.6} parent=0 // loop_body
    %s17 = ssub.s32 %s12, 1
    %s18 = ssub.s32 %s12, 2
    %s25 = sadd.s32 1, %s20
    %p26 = scmp.ge.s32.totalorder %s25, 2
    %s27 = scalar_select %p26, 0, %s25
    %s28 = sadd.s32 1, %s19
    %s29 = scalar_select %p26, %s28, %s19
    %p30 = scmp.ge.s32.totalorder %s29, 2
    %s31 = scalar_select %p30, 0, %s29
    %s32 = ssub.s32 %s19, %s31
    %s33 = ssub.s32 %s20, %s27
    %s34 = sor.u32 %s32, %s33
    %p35 = scmp.eq.s32.totalorder %s34, 0
    %s37 = sadd.s32 %s36, 1
    %s38 = scalar_select %p35, %s36, %s37
    %p41 = pneg %p35
    %p42 = scmp.eq.s32.totalorder %s12, 3
    %p43 = por %p41, %p42
    %p44 = scmp.ne.s32.totalorder %s36, %s39
    %p45 = scmp.eq.s32.totalorder %s12, 0
    %p46 = por %p44, %p45
    %p47 = scmp.ne.s32.totalorder %s36, %s39
    %p48 = scmp.eq.s32.totalorder %s17, 3
    %p49 = por %p47, %p48
    %p50 = scmp.ne.s32.totalorder %s39, %s40
    %p51 = scmp.eq.s32.totalorder %s17, 0
    %p52 = por %p50, %p51
    %p53 = scmp.ne.s32.totalorder %s39, %s40
    %p54 = scmp.eq.s32.totalorder %s18, 3
    %p55 = por %p53, %p54
    %p57 = scmp.ne.s32.totalorder %s40, %s56
    %p58 = scmp.eq.s32.totalorder %s18, 0
    %p59 = por %p57, %p58
    %s61 = sadd.s32 %s60, 1
    %p64 = scmp.eq.s32.totalorder %s12, 3
    %p65 = scmp.ne.s32.totalorder %s60, %s62
    %p66 = scmp.eq.s32.totalorder %s12, 0
    %p67 = por %p65, %p66
    %p68 = scmp.ne.s32.totalorder %s60, %s62
    %p69 = scmp.eq.s32.totalorder %s17, 3
    %p70 = por %p68, %p69
    %p71 = scmp.ne.s32.totalorder %s62, %s63
    %p72 = scmp.eq.s32.totalorder %s17, 0
    %p73 = por %p71, %p72
    %p74 = scmp.ne.s32.totalorder %s62, %s63
    %p75 = scmp.eq.s32.totalorder %s18, 3
    %p76 = por %p74, %p75
    %p78 = scmp.ne.s32.totalorder %s63, %s77
    %p79 = scmp.eq.s32.totalorder %s18, 0
    %p80 = por %p78, %p79
    %s82 = sadd.s32 %s81, 1
    %p85 = scmp.eq.s32.totalorder %s12, 3
    %p86 = scmp.ne.s32.totalorder %s81, %s83
    %p87 = scmp.eq.s32.totalorder %s12, 0
    %p88 = por %p86, %p87
    %p89 = scmp.ne.s32.totalorder %s81, %s83
    %p90 = scmp.eq.s32.totalorder %s17, 3
    %p91 = por %p89, %p90
    %p92 = scmp.ne.s32.totalorder %s83, %s84
    %p93 = scmp.eq.s32.totalorder %s17, 0
    %p94 = por %p92, %p93
    %p95 = scmp.ne.s32.totalorder %s83, %s84
    %p96 = scmp.eq.s32.totalorder %s18, 3
    %p97 = por %p95, %p96
    %p99 = scmp.ne.s32.totalorder %s84, %s98
    %p100 = scmp.eq.s32.totalorder %s18, 0
    %p101 = por %p99, %p100
    %s103 = sadd.s32 %s102, 1
    %p106 = scmp.eq.s32.totalorder %s12, 3
    %p107 = scmp.ne.s32.totalorder %s102, %s104
    %p108 = scmp.eq.s32.totalorder %s12, 0
    %p109 = por %p107, %p108
    %p110 = scmp.ne.s32.totalorder %s102, %s104
    %p111 = scmp.eq.s32.totalorder %s17, 3
    %p112 = por %p110, %p111
    %p113 = scmp.ne.s32.totalorder %s104, %s105
    %p114 = scmp.eq.s32.totalorder %s17, 0
    %p115 = por %p113, %p114
    %p116 = scmp.ne.s32.totalorder %s104, %s105
    %p117 = scmp.eq.s32.totalorder %s18, 3
    %p118 = por %p116, %p117
    %p120 = scmp.ne.s32.totalorder %s105, %s119
    %p121 = scmp.eq.s32.totalorder %s18, 0
    %p122 = por %p120, %p121
    %s123 = ssub.s32 %s19, %s31
    %s124 = ssub.s32 %s20, %s27
    %s125 = sor.u32 %s123, %s124
    %p126 = scmp.eq.s32.totalorder %s125, 0
    %s128 = sadd.s32 %s127, 1
    %s129 = scalar_select %p126, %s127, %s128
    %p132 = pneg %p126
    %p133 = scmp.eq.s32.totalorder %s12, 3
    %p134 = por %p132, %p133
    %p135 = scmp.ne.s32.totalorder %s127, %s130
    %p136 = scmp.eq.s32.totalorder %s12, 0
    %p137 = por %p135, %p136
    %p138 = scmp.ne.s32.totalorder %s127, %s130
    %p139 = scmp.eq.s32.totalorder %s17, 3
    %p140 = por %p138, %p139
    %p141 = scmp.ne.s32.totalorder %s130, %s131
    %p142 = scmp.eq.s32.totalorder %s17, 0
    %p143 = por %p141, %p142
    %p144 = scmp.ne.s32.totalorder %s130, %s131
    %p145 = scmp.eq.s32.totalorder %s18, 3
    %p146 = por %p144, %p145
    %p148 = scmp.ne.s32.totalorder %s131, %s147
    %p149 = scmp.eq.s32.totalorder %s18, 0
    %p150 = por %p148, %p149
    %s151 = ssub.s32 %s19, %s31
    %s152 = ssub.s32 %s20, %s27
    %s153 = sor.u32 %s151, %s152
    %p154 = scmp.eq.s32.totalorder %s153, 0
    %s156 = sadd.s32 %s155, 1
    %s157 = scalar_select %p154, %s155, %s156
    %p160 = pneg %p154
    %p161 = scmp.eq.s32.totalorder %s12, 3
    %p162 = por %p160, %p161
    %p163 = scmp.ne.s32.totalorder %s155, %s158
    %p164 = scmp.eq.s32.totalorder %s12, 0
    %p165 = por %p163, %p164
    %p166 = scmp.ne.s32.totalorder %s155, %s158
    %p167 = scmp.eq.s32.totalorder %s17, 3
    %p168 = por %p166, %p167
    %p169 = scmp.ne.s32.totalorder %s158, %s159
    %p170 = scmp.eq.s32.totalorder %s17, 0
    %p171 = por %p169, %p170
    %p172 = scmp.ne.s32.totalorder %s158, %s159
    %p173 = scmp.eq.s32.totalorder %s18, 3
    %p174 = por %p172, %p173
    %p176 = scmp.ne.s32.totalorder %s159, %s175
    %p177 = scmp.eq.s32.totalorder %s18, 0
    %p178 = por %p176, %p177
    %p179 = scmp.le.s32.totalorder 1, %s12
    %p180 = scmp.lt.s32.totalorder %s12, 5
    %p181 = pnand %p179, %p180
    %p182 = pneg %p181
    // Predicated region
    $region9: #{bottleneck_pallas.6} parent=5 // pred_check
      _
    $region10: #{bottleneck_pallas.6} parent=5 // pred_check_branch
      %184 = sbr.rel (%p181) target = $region12
    $region11: #{bottleneck_pallas.6} parent=5 // pred_region
      %s185 = ssub.s32 %s12, 1
      // Predicated region
      $region13: #{bottleneck_pallas.6} parent=11 // pred_check
        %p186 = pneg %p73
      $region14: #{bottleneck_pallas.6} parent=11 // pred_check_branch
        %188 = sbr.rel (%p186) target = $region16
      $region15: #{bottleneck_pallas.6} parent=11 // pred_region
        _
      $region16: #{bottleneck_pallas.6} parent=11 // pred_fallthru
        _
      // Predicated region
      $region17: #{bottleneck_pallas.6} parent=11 // pred_check
        %p189 = pneg %p94
      $region18: #{bottleneck_pallas.6} parent=11 // pred_check_branch
        %191 = sbr.rel (%p189) target = $region20
      $region19: #{bottleneck_pallas.6} parent=11 // pred_region
        _
      $region20: #{bottleneck_pallas.6} parent=11 // pred_fallthru
        _
      // Predicated region
      $region21: #{bottleneck_pallas.6} parent=11 // pred_check
        %p192 = pneg %p115
      $region22: #{bottleneck_pallas.6} parent=11 // pred_check_branch
        %194 = sbr.rel (%p192) target = $region24
      $region23: #{bottleneck_pallas.6} parent=11 // pred_region
        _
      $region24: #{bottleneck_pallas.6} parent=11 // pred_fallthru
        _
    $region12: #{bottleneck_pallas.6} parent=5 // pred_fallthru
      _
    %p195 = scmp.lt.s32.totalorder %s12, 4
    // Predicated region
    $region25: #{bottleneck_pallas.6} parent=5 // pred_check
      %p196 = pneg %p195
    $region26: #{bottleneck_pallas.6} parent=5 // pred_check_branch
      %198 = sbr.rel (%p196) target = $region28
    $region27: #{bottleneck_pallas.6} parent=5 // pred_region
      // Predicated region
      $region29: #{bottleneck_pallas.6} parent=27 // pred_check
        %p199 = pneg %p46
      $region30: #{bottleneck_pallas.6} parent=27 // pred_check_branch
        %201 = sbr.rel (%p199) target = $region32
      $region31: #{bottleneck_pallas.6} parent=27 // pred_region
        %s202 = smul.u32 8, %s20
        %p203 = scmp.lt.s32.totalorder %s19, 1
        %s204 = scalar_select %p203, %s19, 1
        %p205 = scmp.lt.s32.totalorder %s202, 15
        %s206 = scalar_select %p205, %s202, 15
        %s207 = smul.addr %s206, 2
        %s208 = smul.addr %s204, 32
        %s209 = sadd.s32 %s207, %s208
        %s210 = smul.addr %s209, 4
        %s211 = scalar_lea.vmem %s0, %s210
        %s212 = smul.u32 8, %s20
      $region32: #{bottleneck_pallas.6} parent=27 // pred_fallthru
        _
    $region28: #{bottleneck_pallas.6} parent=5 // pred_fallthru
      _
    %p213 = scmp.le.s32.totalorder 1, %s12
    %p214 = scmp.lt.s32.totalorder %s12, 5
    %p215 = pnand %p213, %p214
    %p216 = pneg %p215
    // Predicated region
    $region33: #{bottleneck_pallas.6} parent=5 // pred_check
      _
    $region34: #{bottleneck_pallas.6} parent=5 // pred_check_branch
      %218 = sbr.rel (%p215) target = $region36
    $region35: #{bottleneck_pallas.6} parent=5 // pred_region
      %s219 = ssub.s32 %s12, 1
      %s220 = smul.u32 8, %s22
      %p221 = scmp.lt.s32.totalorder %s21, 1
      %s222 = scalar_select %p221, %s21, 1
      %p223 = scmp.lt.s32.totalorder %s220, 15
      %s224 = scalar_select %p223, %s220, 15
      %s225 = smul.addr %s224, 2
      %s226 = smul.addr %s222, 32
      %s227 = sadd.s32 %s225, %s226
      %s228 = smul.addr %s227, 4
      %s229 = scalar_lea.vmem %s0, %s228
      %p230 = pneg %p52
      %p231 = pneg %p49
      %p232 = pneg %p73
      %p233 = pneg %p70
      %p234 = pneg %p94
      %p235 = pneg %p91
      %p236 = pneg %p115
      %p237 = pneg %p112
      %p238 = pneg %p143
      %p239 = pneg %p140
      %s240 = smul.u32 8, %s22
      %p241 = scmp.lt.s32.totalorder %s21, 1
      %s242 = scalar_select %p241, %s21, 1
      %p243 = scmp.lt.s32.totalorder %s240, 15
      %s244 = scalar_select %p243, %s240, 15
      %s245 = smul.addr %s244, 2
      %s246 = smul.addr %s242, 32
      %s247 = sadd.s32 %s245, %s246
      %s248 = smul.addr %s247, 4
      %s249 = scalar_lea.vmem %s4, %s248
      %p250 = pneg %p171
      %p251 = pneg %p168
      %p252 = scmp.lt.s32.totalorder %s21, 1
      %s253 = scalar_select %p252, %s21, 1
      %p254 = scmp.lt.s32.totalorder %s22, 1
      %s255 = scalar_select %p254, %s22, 1
      %s256 = smul.addr %s253, 2
      %s257 = sadd.s32 %s255, %s256
      %s258 = smul.addr %s257, 2
      %s259 = scalar_lea.vmem %s5, %s258
      %s260 = smul.u32 8, %s22
      %p261 = scmp.lt.s32.totalorder %s21, 1
      %s262 = scalar_select %p261, %s21, 1
      %p263 = scmp.lt.s32.totalorder %s260, 15
      %s264 = scalar_select %p263, %s260, 15
      %s265 = smul.addr %s264, 2
      %s266 = smul.addr %s262, 32
      %s267 = sadd.s32 %s265, %s266
      %s268 = smul.addr %s267, 4
      %s269 = scalar_lea.vmem %s0, %s268
      %s270 = smul.u32 8, %s22
      %s271 = smul.u32 8, %s22
      %p272 = scmp.lt.s32.totalorder %s21, 1
      %s273 = scalar_select %p272, %s21, 1
      %p274 = scmp.lt.s32.totalorder %s271, 15
      %s275 = scalar_select %p274, %s271, 15
      %s276 = smul.addr %s275, 2
      %s277 = smul.addr %s273, 32
      %s278 = sadd.s32 %s276, %s277
      %s279 = smul.addr %s278, 4
      %s280 = scalar_lea.vmem %s4, %s279
      %s281 = smul.u32 8, %s22
      %p282 = scmp.lt.s32.totalorder %s21, 1
      %s283 = scalar_select %p282, %s21, 1
      %p284 = scmp.lt.s32.totalorder %s22, 1
      %s285 = scalar_select %p284, %s22, 1
      %s286 = smul.addr %s283, 2
      %s287 = sadd.s32 %s285, %s286
      %s288 = smul.addr %s287, 2
      %s289 = scalar_lea.vmem %s5, %s288
      %v291 = vld [vmem:[%s269] sm:$0xf]
      %v292 = vld [vmem:[%s269 + $0x4] sm:$0xf]
      %v293 = vld [vmem:[%s269 + $0x8] sm:$0xf]
      %v294 = vld [vmem:[%s269 + $0xc] sm:$0xf]
      %v295 = vld [vmem:[%s269 + $0x10] sm:$0xf]
      %v296 = vld [vmem:[%s269 + $0x14] sm:$0xf]
      %v297 = vld [vmem:[%s269 + $0x18] sm:$0xf]
      %v298 = vld [vmem:[%s269 + $0x1c] sm:$0xf]
      %v299 = vld [vmem:[%s269 + $0x20] sm:$0xf]
      %v300 = vld [vmem:[%s269 + $0x24] sm:$0xf]
      %v301 = vld [vmem:[%s269 + $0x28] sm:$0xf]
      %v302 = vld [vmem:[%s269 + $0x2c] sm:$0xf]
      %v303 = vld [vmem:[%s269 + $0x30] sm:$0xf]
      %v304 = vld [vmem:[%s269 + $0x34] sm:$0xf]
      %v305 = vld [vmem:[%s269 + $0x38] sm:$0xf]
      %v306 = vld [vmem:[%s269 + $0x3c] sm:$0xf]
      %v307 = vunpack.c.l.bf16 %v291
      %v308 = vunpack.c.l.bf16 %v292
      %v309 = vunpack.c.l.bf16 %v293
      %v310 = vunpack.c.l.bf16 %v294
      %v311 = vunpack.c.l.bf16 %v295
      %v312 = vunpack.c.l.bf16 %v296
      %v313 = vunpack.c.l.bf16 %v297
      %v314 = vunpack.c.l.bf16 %v298
      %v315 = vunpack.c.l.bf16 %v299
      %v316 = vunpack.c.l.bf16 %v300
      %v317 = vunpack.c.l.bf16 %v301
      %v318 = vunpack.c.l.bf16 %v302
      %v319 = vunpack.c.l.bf16 %v303
      %v320 = vunpack.c.l.bf16 %v304
      %v321 = vunpack.c.l.bf16 %v305
      %v322 = vunpack.c.l.bf16 %v306
      %v323 = vld [vmem:[%s1] sm:$0x1]
      %v325 = vlaneseq
      %v326 = vshrl.u32 %v325, 7
      %v327 = vsub.s32 0, %v326
      %v328 = vrot.slane %v323, %v327
      %v330 = vmul.f32 %v307, %v328
      %v331 = vmul.f32 %v308, %v328
      %v332 = vmul.f32 %v309, %v328
      %v333 = vmul.f32 %v310, %v328
      %v334 = vmul.f32 %v311, %v328
      %v335 = vmul.f32 %v312, %v328
      %v336 = vmul.f32 %v313, %v328
      %v337 = vmul.f32 %v314, %v328
      %v338 = vmul.f32 %v315, %v328
      %v339 = vmul.f32 %v316, %v328
      %v340 = vmul.f32 %v317, %v328
      %v341 = vmul.f32 %v318, %v328
      %v342 = vmul.f32 %v319, %v328
      %v343 = vmul.f32 %v320, %v328
      %v344 = vmul.f32 %v321, %v328
      %v345 = vmul.f32 %v322, %v328
      %v346 = vld [vmem:[%s2] sm:$0x1]
      %v348 = vlaneseq
      %v349 = vshrl.u32 %v348, 7
      %v350 = vsub.s32 0, %v349
      %v351 = vrot.slane %v346, %v350
      %v353 = vadd.f32 %v330, %v351
      %v354 = vadd.f32 %v331, %v351
      %v355 = vadd.f32 %v332, %v351
      %v356 = vadd.f32 %v333, %v351
      %v357 = vadd.f32 %v334, %v351
      %v358 = vadd.f32 %v335, %v351
      %v359 = vadd.f32 %v336, %v351
      %v360 = vadd.f32 %v337, %v351
      %v361 = vadd.f32 %v338, %v351
      %v362 = vadd.f32 %v339, %v351
      %v363 = vadd.f32 %v340, %v351
      %v364 = vadd.f32 %v341, %v351
      %v365 = vadd.f32 %v342, %v351
      %v366 = vadd.f32 %v343, %v351
      %v367 = vadd.f32 %v344, %v351
      %v368 = vadd.f32 %v345, %v351
      %v369 = vmax.f32 %v353, 0.0
      %v370 = vmax.f32 %v354, 0.0
      %v371 = vmax.f32 %v355, 0.0
      %v372 = vmax.f32 %v356, 0.0
      %v373 = vmax.f32 %v357, 0.0
      %v374 = vmax.f32 %v358, 0.0
      %v375 = vmax.f32 %v359, 0.0
      %v376 = vmax.f32 %v360, 0.0
      %v377 = vmax.f32 %v361, 0.0
      %v378 = vmax.f32 %v362, 0.0
      %v379 = vmax.f32 %v363, 0.0
      %v380 = vmax.f32 %v364, 0.0
      %v381 = vmax.f32 %v365, 0.0
      %v382 = vmax.f32 %v366, 0.0
      %v383 = vmax.f32 %v367, 0.0
      %v384 = vmax.f32 %v368, 0.0
      %v385 = vpack.c.bf16 %v370, %v369
      %v386 = vpack.c.bf16 %v372, %v371
      %v387 = vpack.c.bf16 %v374, %v373
      %v388 = vpack.c.bf16 %v376, %v375
      %v389 = vpack.c.bf16 %v378, %v377
      %v390 = vpack.c.bf16 %v380, %v379
      %v391 = vpack.c.bf16 %v382, %v381
      %v392 = vpack.c.bf16 %v384, %v383
      %v393 = vld [vmem:[%s3] sm:$0xf]
      %v394 = vld [vmem:[%s3 + $0x4] sm:$0xf]
      %v395 = vld [vmem:[%s3 + $0x8] sm:$0xf]
      %v396 = vld [vmem:[%s3 + $0xc] sm:$0xf]
      %v397 = vld [vmem:[%s3 + $0x10] sm:$0xf]
      %v398 = vld [vmem:[%s3 + $0x14] sm:$0xf]
      %v399 = vld [vmem:[%s3 + $0x18] sm:$0xf]
      %v400 = vld [vmem:[%s3 + $0x1c] sm:$0xf]
      %v401 = vld [vmem:[%s3 + $0x20] sm:$0xf]
      %v402 = vld [vmem:[%s3 + $0x24] sm:$0xf]
      %v403 = vld [vmem:[%s3 + $0x28] sm:$0xf]
      %v404 = vld [vmem:[%s3 + $0x2c] sm:$0xf]
      %v405 = vld [vmem:[%s3 + $0x30] sm:$0xf]
      %v406 = vld [vmem:[%s3 + $0x34] sm:$0xf]
      %v407 = vld [vmem:[%s3 + $0x38] sm:$0xf]
      %v408 = vld [vmem:[%s3 + $0x3c] sm:$0xf]
      %v425 = vunpack.c.l.b16 %v393
      %v426 = vunpack.c.l.b16 %v394
      %v427 = vunpack.c.l.b16 %v395
      %v428 = vunpack.c.l.b16 %v396
      %v429 = vunpack.c.l.b16 %v397
      %v430 = vunpack.c.l.b16 %v398
      %v431 = vunpack.c.l.b16 %v399
      %v432 = vunpack.c.l.b16 %v400
      %v433 = vunpack.c.l.b16 %v401
      %v434 = vunpack.c.l.b16 %v402
      %v435 = vunpack.c.l.b16 %v403
      %v436 = vunpack.c.l.b16 %v404
      %v437 = vunpack.c.l.b16 %v405
      %v438 = vunpack.c.l.b16 %v406
      %v439 = vunpack.c.l.b16 %v407
      %v440 = vunpack.c.l.b16 %v408
      %v441 = vpack.c.b16 %v426, %v425
      %v442 = vpack.c.b16 %v428, %v427
      %v443 = vpack.c.b16 %v430, %v429
      %v444 = vpack.c.b16 %v432, %v431
      %v445 = vpack.c.b16 %v434, %v433
      %v446 = vpack.c.b16 %v436, %v435
      %v447 = vpack.c.b16 %v438, %v437
      %v448 = vpack.c.b16 %v440, %v439
      %457 = vmatprep.subr.bf16.mxu0 0
      %458 = vmatpush1.bf16.msra.mxu0 %v448
      %459 = vmatprep.subr.bf16.mxu0 0
      %460 = vmatpush1.bf16.msra.mxu0 %v447
      %461 = vmatprep.subr.bf16.mxu0 0
      %462 = vmatpush1.bf16.msra.mxu0 %v446
      %463 = vmatprep.subr.bf16.mxu0 0
      %464 = vmatpush1.bf16.msra.mxu0 %v445
      %465 = vmatprep.subr.bf16.mxu0 0
      %466 = vmatpush1.bf16.msra.mxu0 %v444
      %467 = vmatprep.subr.bf16.mxu0 0
      %468 = vmatpush1.bf16.msra.mxu0 %v443
      %469 = vmatprep.subr.bf16.mxu0 0
      %470 = vmatpush1.bf16.msra.mxu0 %v442
      %471 = vmatprep.subr.bf16.mxu0 0
      %472 = vmatpush1.bf16.msra.mxu0 %v441
      %473 = vmatprep.subr.bf16.mxu0 0
      %474 = vmatpush2.bf16.msra.mxu0 0
      %475 = vmatprep.subr.bf16.mxu0 0
      %476 = vmatpush2.bf16.msra.mxu0 0
      %477 = vmatprep.subr.bf16.mxu0 0
      %478 = vmatpush2.bf16.msra.mxu0 0
      %479 = vmatprep.subr.bf16.mxu0 0
      %480 = vmatpush2.bf16.msra.mxu0 0
      %481 = vmatprep.subr.bf16.mxu0 0
      %482 = vmatpush2.bf16.msra.mxu0 0
      %483 = vmatprep.subr.bf16.mxu0 0
      %484 = vmatpush2.bf16.msra.mxu0 0
      %485 = vmatprep.subr.bf16.mxu0 0
      %486 = vmatpush2.bf16.msra.mxu0 0
      %487 = vmatprep.subr.bf16.mxu0 0
      %488 = vmatpush2.bf16.msra.mxu0 0
      %489 = vmatprep.mubr.bf16.mxu0 0
      %490 = vmatmul.mubr.bf16.gmra.mxu0 %v385
      %v491 = vpop.f32.mrf.mxu0
      %v492 = vadd.f32 0.0, %v491
      %v493 = vpop.f32.mrf.mxu0
      %v494 = vpop.f32.mrf.mxu0
      %v495 = vadd.f32 0.0, %v494
      %v496 = vpop.f32.mrf.mxu0
      %497 = vmatprep.mubr.bf16.mxu0 0
      %498 = vmatmul.mubr.bf16.gmra.mxu0 %v386
      %v499 = vpop.f32.mrf.mxu0
      %v500 = vadd.f32 0.0, %v499
      %v501 = vpop.f32.mrf.mxu0
      %v502 = vpop.f32.mrf.mxu0
      %v503 = vadd.f32 0.0, %v502
      %v504 = vpop.f32.mrf.mxu0
      %505 = vmatprep.mubr.bf16.mxu0 0
      %506 = vmatmul.mubr.bf16.gmra.mxu0 %v387
      %v507 = vpop.f32.mrf.mxu0
      %v508 = vadd.f32 0.0, %v507
      %v509 = vpop.f32.mrf.mxu0
      %v510 = vpop.f32.mrf.mxu0
      %v511 = vadd.f32 0.0, %v510
      %v512 = vpop.f32.mrf.mxu0
      %513 = vmatprep.mubr.bf16.mxu0 0
      %514 = vmatmul.mubr.bf16.gmra.mxu0 %v388
      %v515 = vpop.f32.mrf.mxu0
      %v516 = vadd.f32 0.0, %v515
      %v517 = vpop.f32.mrf.mxu0
      %v518 = vpop.f32.mrf.mxu0
      %v519 = vadd.f32 0.0, %v518
      %v520 = vpop.f32.mrf.mxu0
      %521 = vmatprep.mubr.bf16.mxu0 0
      %522 = vmatmul.mubr.bf16.gmra.mxu0 %v389
      %v523 = vpop.f32.mrf.mxu0
      %v524 = vadd.f32 0.0, %v523
      %v525 = vpop.f32.mrf.mxu0
      %v526 = vpop.f32.mrf.mxu0
      %v527 = vadd.f32 0.0, %v526
      %v528 = vpop.f32.mrf.mxu0
      %529 = vmatprep.mubr.bf16.mxu0 0
      %530 = vmatmul.mubr.bf16.gmra.mxu0 %v390
      %v531 = vpop.f32.mrf.mxu0
      %v532 = vadd.f32 0.0, %v531
      %v533 = vpop.f32.mrf.mxu0
      %v534 = vpop.f32.mrf.mxu0
      %v535 = vadd.f32 0.0, %v534
      %v536 = vpop.f32.mrf.mxu0
      %537 = vmatprep.mubr.bf16.mxu0 0
      %538 = vmatmul.mubr.bf16.gmra.mxu0 %v391
      %v539 = vpop.f32.mrf.mxu0
      %v540 = vadd.f32 0.0, %v539
      %v541 = vpop.f32.mrf.mxu0
      %v542 = vpop.f32.mrf.mxu0
      %v543 = vadd.f32 0.0, %v542
      %v544 = vpop.f32.mrf.mxu0
      %545 = vmatprep.mubr.bf16.mxu0 0
      %546 = vmatmul.mubr.bf16.gmra.mxu0 %v392
      %v547 = vpop.f32.mrf.mxu0
      %v548 = vadd.f32 0.0, %v547
      %v549 = vpop.f32.mrf.mxu0
      %v550 = vpop.f32.mrf.mxu0
      %v551 = vadd.f32 0.0, %v550
      %v552 = vpop.f32.mrf.mxu0
      %553 = vdwg.mxu0
      %v554 = vpack.c.bf16 %v495, %v492
      %v555 = vpack.c.bf16 %v503, %v500
      %v556 = vpack.c.bf16 %v511, %v508
      %v557 = vpack.c.bf16 %v519, %v516
      %v558 = vpack.c.bf16 %v527, %v524
      %v559 = vpack.c.bf16 %v535, %v532
      %v560 = vpack.c.bf16 %v543, %v540
      %v561 = vpack.c.bf16 %v551, %v548
      %v570 = vunpack.c.l.b16 %v554
      %v571 = vunpack.c.h.b16 %v554
      %v572 = vunpack.c.l.b16 %v555
      %v573 = vunpack.c.h.b16 %v555
      %v574 = vunpack.c.l.b16 %v556
      %v575 = vunpack.c.h.b16 %v556
      %v576 = vunpack.c.l.b16 %v557
      %v577 = vunpack.c.h.b16 %v557
      %v578 = vunpack.c.l.b16 %v558
      %v579 = vunpack.c.h.b16 %v558
      %v580 = vunpack.c.l.b16 %v559
      %v581 = vunpack.c.h.b16 %v559
      %v582 = vunpack.c.l.b16 %v560
      %v583 = vunpack.c.h.b16 %v560
      %v584 = vunpack.c.l.b16 %v561
      %v585 = vunpack.c.h.b16 %v561
      %v586 = vpack.c.b16 %v570, %v570
      %v587 = vpack.c.b16 %v571, %v571
      %v588 = vpack.c.b16 %v572, %v572
      %v589 = vpack.c.b16 %v573, %v573
      %v590 = vpack.c.b16 %v574, %v574
      %v591 = vpack.c.b16 %v575, %v575
      %v592 = vpack.c.b16 %v576, %v576
      %v593 = vpack.c.b16 %v577, %v577
      %v594 = vpack.c.b16 %v578, %v578
      %v595 = vpack.c.b16 %v579, %v579
      %v596 = vpack.c.b16 %v580, %v580
      %v597 = vpack.c.b16 %v581, %v581
      %v598 = vpack.c.b16 %v582, %v582
      %v599 = vpack.c.b16 %v583, %v583
      %v600 = vpack.c.b16 %v584, %v584
      %v601 = vpack.c.b16 %v585, %v585
      %618 = vst [vmem:[%s280] sm:$0xf] %v586
      %619 = vst [vmem:[%s280 + $0x4] sm:$0xf] %v587
      %620 = vst [vmem:[%s280 + $0x8] sm:$0xf] %v588
      %621 = vst [vmem:[%s280 + $0xc] sm:$0xf] %v589
      %622 = vst [vmem:[%s280 + $0x10] sm:$0xf] %v590
      %623 = vst [vmem:[%s280 + $0x14] sm:$0xf] %v591
      %624 = vst [vmem:[%s280 + $0x18] sm:$0xf] %v592
      %625 = vst [vmem:[%s280 + $0x1c] sm:$0xf] %v593
      %626 = vst [vmem:[%s280 + $0x20] sm:$0xf] %v594
      %627 = vst [vmem:[%s280 + $0x24] sm:$0xf] %v595
      %628 = vst [vmem:[%s280 + $0x28] sm:$0xf] %v596
      %629 = vst [vmem:[%s280 + $0x2c] sm:$0xf] %v597
      %630 = vst [vmem:[%s280 + $0x30] sm:$0xf] %v598
      %631 = vst [vmem:[%s280 + $0x34] sm:$0xf] %v599
      %632 = vst [vmem:[%s280 + $0x38] sm:$0xf] %v600
      %633 = vst [vmem:[%s280 + $0x3c] sm:$0xf] %v601
      %v634 = vadd.f32 %v492, %v495
      %v635 = vadd.f32 %v634, %v500
      %v636 = vadd.f32 %v635, %v503
      %v637 = vadd.f32 %v636, %v508
      %v638 = vadd.f32 %v637, %v511
      %v639 = vadd.f32 %v638, %v516
      %v640 = vadd.f32 %v639, %v519
      %v641 = vadd.f32 %v640, %v524
      %v642 = vadd.f32 %v641, %v527
      %v643 = vadd.f32 %v642, %v532
      %v644 = vadd.f32 %v643, %v535
      %v645 = vadd.f32 %v644, %v540
      %v646 = vadd.f32 %v645, %v543
      %v647 = vadd.f32 %v646, %v548
      %v648 = vadd.f32 %v647, %v551
      %v649 = vrot.slane %v648, 4
      %v650 = vadd.f32 %v648, %v649
      %v651 = vrot.slane %v650, 2
      %v652 = vadd.f32 %v650, %v651
      %v653 = vrot.slane %v652, 1
      %v654 = vadd.f32 %v652, %v653
      %v655 = vmul.f32 %v492, %v492
      %v656 = vmul.f32 %v495, %v495
      %v657 = vmul.f32 %v500, %v500
      %v658 = vmul.f32 %v503, %v503
      %v659 = vmul.f32 %v508, %v508
      %v660 = vmul.f32 %v511, %v511
      %v661 = vmul.f32 %v516, %v516
      %v662 = vmul.f32 %v519, %v519
      %v663 = vmul.f32 %v524, %v524
      %v664 = vmul.f32 %v527, %v527
      %v665 = vmul.f32 %v532, %v532
      %v666 = vmul.f32 %v535, %v535
      %v667 = vmul.f32 %v540, %v540
      %v668 = vmul.f32 %v543, %v543
      %v669 = vmul.f32 %v548, %v548
      %v670 = vmul.f32 %v551, %v551
      %v671 = vadd.f32 %v655, %v656
      %v672 = vadd.f32 %v671, %v657
      %v673 = vadd.f32 %v672, %v658
      %v674 = vadd.f32 %v673, %v659
      %v675 = vadd.f32 %v674, %v660
      %v676 = vadd.f32 %v675, %v661
      %v677 = vadd.f32 %v676, %v662
      %v678 = vadd.f32 %v677, %v663
      %v679 = vadd.f32 %v678, %v664
      %v680 = vadd.f32 %v679, %v665
      %v681 = vadd.f32 %v680, %v666
      %v682 = vadd.f32 %v681, %v667
      %v683 = vadd.f32 %v682, %v668
      %v684 = vadd.f32 %v683, %v669
      %v685 = vadd.f32 %v684, %v670
      %v686 = vrot.slane %v685, 4
      %v687 = vadd.f32 %v685, %v686
      %v688 = vrot.slane %v687, 2
      %v689 = vadd.f32 %v687, %v688
      %v690 = vrot.slane %v689, 1
      %v691 = vadd.f32 %v689, %v690
      %vm692 = vcmask 1040384
      %v693 = vsel %vm692, %v654, %v691
      %694 = vst [vmem:[%s289] sm:$0x3] %v693
      %s695 = smul.u32 8, %s22
      %p696 = scmp.lt.s32.totalorder %s21, 1
      %s697 = scalar_select %p696, %s21, 1
      %p698 = scmp.lt.s32.totalorder %s695, 15
      %s699 = scalar_select %p698, %s695, 15
      %s700 = smul.addr %s699, 2
      %s701 = smul.addr %s697, 32
      %s702 = sadd.s32 %s700, %s701
      %s703 = smul.addr %s702, 4
      %s704 = scalar_lea.vmem %s4, %s703
      %p705 = scmp.lt.s32.totalorder %s21, 1
      %s706 = scalar_select %p705, %s21, 1
      %p707 = scmp.lt.s32.totalorder %s22, 1
      %s708 = scalar_select %p707, %s22, 1
      %s709 = smul.addr %s706, 2
      %s710 = sadd.s32 %s708, %s709
      %s711 = smul.addr %s710, 2
      %s712 = scalar_lea.vmem %s5, %s711
      // Predicated region
      $region37: #{bottleneck_pallas.6} parent=35 // pred_check
        %p713 = pneg %p140
      $region38: #{bottleneck_pallas.6} parent=35 // pred_check_branch
        %715 = sbr.rel (%p713) target = $region40
      $region39: #{bottleneck_pallas.6} parent=35 // pred_region
        %s716 = smul.u32 8, %s22
      $region40: #{bottleneck_pallas.6} parent=35 // pred_fallthru
        _
      // Predicated region
      $region41: #{bottleneck_pallas.6} parent=35 // pred_check
        %p717 = pneg %p168
      $region42: #{bottleneck_pallas.6} parent=35 // pred_check_branch
        %719 = sbr.rel (%p717) target = $region44
      $region43: #{bottleneck_pallas.6} parent=35 // pred_region
        _
      $region44: #{bottleneck_pallas.6} parent=35 // pred_fallthru
        _
    $region36: #{bottleneck_pallas.6} parent=5 // pred_fallthru
      _
    %p720 = scmp.le.s32.totalorder 2, %s12
    // Predicated region
    $region45: #{bottleneck_pallas.6} parent=5 // pred_check
      %p721 = pneg %p720
    $region46: #{bottleneck_pallas.6} parent=5 // pred_check_branch
      %723 = sbr.rel (%p721) target = $region48
    $region47: #{bottleneck_pallas.6} parent=5 // pred_region
      %s724 = ssub.s32 %s12, 2
      // Predicated region
      $region49: #{bottleneck_pallas.6} parent=47 // pred_check
        %p725 = pneg %p146
      $region50: #{bottleneck_pallas.6} parent=47 // pred_check_branch
        %727 = sbr.rel (%p725) target = $region52
      $region51: #{bottleneck_pallas.6} parent=47 // pred_region
        %s728 = smul.u32 8, %s24
        %p729 = scmp.lt.s32.totalorder %s23, 1
        %s730 = scalar_select %p729, %s23, 1
        %p731 = scmp.lt.s32.totalorder %s728, 15
        %s732 = scalar_select %p731, %s728, 15
        %s733 = smul.addr %s732, 2
        %s734 = smul.addr %s730, 32
        %s735 = sadd.s32 %s733, %s734
        %s736 = smul.addr %s735, 4
        %s737 = scalar_lea.vmem %s4, %s736
      $region52: #{bottleneck_pallas.6} parent=47 // pred_fallthru
        _
      // Predicated region
      $region53: #{bottleneck_pallas.6} parent=47 // pred_check
        %p738 = pneg %p174
      $region54: #{bottleneck_pallas.6} parent=47 // pred_check_branch
        %740 = sbr.rel (%p738) target = $region56
      $region55: #{bottleneck_pallas.6} parent=47 // pred_region
        %p741 = scmp.lt.s32.totalorder %s23, 1
        %s742 = scalar_select %p741, %s23, 1
        %p743 = scmp.lt.s32.totalorder %s24, 1
        %s744 = scalar_select %p743, %s24, 1
        %s745 = smul.addr %s742, 2
        %s746 = sadd.s32 %s744, %s745
        %s747 = smul.addr %s746, 2
        %s748 = scalar_lea.vmem %s5, %s747
      $region56: #{bottleneck_pallas.6} parent=47 // pred_fallthru
        _
    $region48: #{bottleneck_pallas.6} parent=5 // pred_fallthru
      _
  $region6: #{bottleneck_pallas.6} parent=0 // loop_footer
    %s16 = sadd.s32 1, %s12
  $region7: #{bottleneck_pallas.6} parent=0 // loop_footer_branch
    %11 = sbr.rel target = $region3
  $region8: #{bottleneck_pallas.6} parent=0 // loop_exit
    _

// kernel: bottleneck_pallas.7
$region0: #{bottleneck_pallas.7}
  #allocation0 [shape = 'u32[]', space=smem, size = 0x4, offset = 0x4, fixed_abs, tag = 'smem constant byte address 0x4 - core index']
  #allocation1 [shape = 'u32[144,128]{1,0:T(1,128)}', space=vmem, size = 0x12000, scoped, tag = 'internal scratch']
  %s0 = inlined_call_operand.vmem [shape: bf16[2,16,16,128], index: 0, kind: input, shape index: {}]
  %s1 = inlined_call_operand.vmem [shape: f32[2,16,16,128], index: 1, kind: input, shape index: {}]
  %s2 = inlined_call_operand.vmem [shape: f32[1,128], index: 2, kind: input, shape index: {}]
  %s3 = inlined_call_operand.vmem [shape: f32[1,128], index: 3, kind: input, shape index: {}]
  %s4 = inlined_call_operand.vmem [shape: f32[2,16,16,128], index: 4, kind: output, shape index: {}]
  %s5 = sld [smem:[#allocation0]]
  $region49: #{bottleneck_pallas.7} parent=0
    _
  %s7 = ssub.s32 1, %s5
  %s8 = scalar_select 0, %s7, %s5
  loop: start=0, step=1, limit=6
  $region2: #{bottleneck_pallas.7} parent=0 // loop_pre_header
    _
  $region3: #{bottleneck_pallas.7} parent=0 // loop_header
    %s10 = sphi 0, %s14
    %p11 = scmp.ge.s32.totalorder %s10, 6
    %s17 = sphi 0, %s29
    %s18 = sphi 0, %s25
    %s19 = sphi 0, %s17
    %s20 = sphi 0, %s18
    %s21 = sphi 0, %s19
    %s22 = sphi 0, %s20
    %s34 = sphi 0, %s36
    %s37 = sphi 0, %s34
    %s38 = sphi 0, %s37
    %s54 = sphi 0, %s38
    %s62 = sphi 0, %s64
    %s65 = sphi 0, %s62
    %s66 = sphi 0, %s65
    %s82 = sphi 0, %s66
    %s86 = sphi 0, %s86
    %s88 = sphi 0, %s86
    %s89 = sphi 0, %s88
    %s103 = sphi 0, %s89
    %s107 = sphi 0, %s107
    %s109 = sphi 0, %s107
    %s110 = sphi 0, %s109
    %s124 = sphi 0, %s110
    %s132 = sphi 0, %s134
    %s135 = sphi 0, %s132
    %s136 = sphi 0, %s135
    %s152 = sphi 0, %s136
  $region4: #{bottleneck_pallas.7} parent=0 // loop_header_branch
    %13 = sbr.rel (%p11) target = $region8
  $region5: #{bottleneck_pallas.7} parent=0 // loop_body
    %s15 = ssub.s32 %s10, 1
    %s16 = ssub.s32 %s10, 2
    %s23 = sadd.s32 1, %s18
    %p24 = scmp.ge.s32.totalorder %s23, 2
    %s25 = scalar_select %p24, 0, %s23
    %s26 = sadd.s32 1, %s17
    %s27 = scalar_select %p24, %s26, %s17
    %p28 = scmp.ge.s32.totalorder %s27, 2
    %s29 = scalar_select %p28, 0, %s27
    %s30 = ssub.s32 %s17, %s29
    %s31 = ssub.s32 %s18, %s25
    %s32 = sor.u32 %s30, %s31
    %p33 = scmp.eq.s32.totalorder %s32, 0
    %s35 = sadd.s32 %s34, 1
    %s36 = scalar_select %p33, %s34, %s35
    %p39 = pneg %p33
    %p40 = scmp.eq.s32.totalorder %s10, 3
    %p41 = por %p39, %p40
    %p42 = scmp.ne.s32.totalorder %s34, %s37
    %p43 = scmp.eq.s32.totalorder %s10, 0
    %p44 = por %p42, %p43
    %p45 = scmp.ne.s32.totalorder %s34, %s37
    %p46 = scmp.eq.s32.totalorder %s15, 3
    %p47 = por %p45, %p46
    %p48 = scmp.ne.s32.totalorder %s37, %s38
    %p49 = scmp.eq.s32.totalorder %s15, 0
    %p50 = por %p48, %p49
    %p51 = scmp.ne.s32.totalorder %s37, %s38
    %p52 = scmp.eq.s32.totalorder %s16, 3
    %p53 = por %p51, %p52
    %p55 = scmp.ne.s32.totalorder %s38, %s54
    %p56 = scmp.eq.s32.totalorder %s16, 0
    %p57 = por %p55, %p56
    %s58 = ssub.s32 %s17, %s29
    %s59 = ssub.s32 %s18, %s25
    %s60 = sor.u32 %s58, %s59
    %p61 = scmp.eq.s32.totalorder %s60, 0
    %s63 = sadd.s32 %s62, 1
    %s64 = scalar_select %p61, %s62, %s63
    %p67 = pneg %p61
    %p68 = scmp.eq.s32.totalorder %s10, 3
    %p69 = por %p67, %p68
    %p70 = scmp.ne.s32.totalorder %s62, %s65
    %p71 = scmp.eq.s32.totalorder %s10, 0
    %p72 = por %p70, %p71
    %p73 = scmp.ne.s32.totalorder %s62, %s65
    %p74 = scmp.eq.s32.totalorder %s15, 3
    %p75 = por %p73, %p74
    %p76 = scmp.ne.s32.totalorder %s65, %s66
    %p77 = scmp.eq.s32.totalorder %s15, 0
    %p78 = por %p76, %p77
    %p79 = scmp.ne.s32.totalorder %s65, %s66
    %p80 = scmp.eq.s32.totalorder %s16, 3
    %p81 = por %p79, %p80
    %p83 = scmp.ne.s32.totalorder %s66, %s82
    %p84 = scmp.eq.s32.totalorder %s16, 0
    %p85 = por %p83, %p84
    %s87 = sadd.s32 %s86, 1
    %p90 = scmp.eq.s32.totalorder %s10, 3
    %p91 = scmp.ne.s32.totalorder %s86, %s88
    %p92 = scmp.eq.s32.totalorder %s10, 0
    %p93 = por %p91, %p92
    %p94 = scmp.ne.s32.totalorder %s86, %s88
    %p95 = scmp.eq.s32.totalorder %s15, 3
    %p96 = por %p94, %p95
    %p97 = scmp.ne.s32.totalorder %s88, %s89
    %p98 = scmp.eq.s32.totalorder %s15, 0
    %p99 = por %p97, %p98
    %p100 = scmp.ne.s32.totalorder %s88, %s89
    %p101 = scmp.eq.s32.totalorder %s16, 3
    %p102 = por %p100, %p101
    %p104 = scmp.ne.s32.totalorder %s89, %s103
    %p105 = scmp.eq.s32.totalorder %s16, 0
    %p106 = por %p104, %p105
    %s108 = sadd.s32 %s107, 1
    %p111 = scmp.eq.s32.totalorder %s10, 3
    %p112 = scmp.ne.s32.totalorder %s107, %s109
    %p113 = scmp.eq.s32.totalorder %s10, 0
    %p114 = por %p112, %p113
    %p115 = scmp.ne.s32.totalorder %s107, %s109
    %p116 = scmp.eq.s32.totalorder %s15, 3
    %p117 = por %p115, %p116
    %p118 = scmp.ne.s32.totalorder %s109, %s110
    %p119 = scmp.eq.s32.totalorder %s15, 0
    %p120 = por %p118, %p119
    %p121 = scmp.ne.s32.totalorder %s109, %s110
    %p122 = scmp.eq.s32.totalorder %s16, 3
    %p123 = por %p121, %p122
    %p125 = scmp.ne.s32.totalorder %s110, %s124
    %p126 = scmp.eq.s32.totalorder %s16, 0
    %p127 = por %p125, %p126
    %s128 = ssub.s32 %s17, %s29
    %s129 = ssub.s32 %s18, %s25
    %s130 = sor.u32 %s128, %s129
    %p131 = scmp.eq.s32.totalorder %s130, 0
    %s133 = sadd.s32 %s132, 1
    %s134 = scalar_select %p131, %s132, %s133
    %p137 = pneg %p131
    %p138 = scmp.eq.s32.totalorder %s10, 3
    %p139 = por %p137, %p138
    %p140 = scmp.ne.s32.totalorder %s132, %s135
    %p141 = scmp.eq.s32.totalorder %s10, 0
    %p142 = por %p140, %p141
    %p143 = scmp.ne.s32.totalorder %s132, %s135
    %p144 = scmp.eq.s32.totalorder %s15, 3
    %p145 = por %p143, %p144
    %p146 = scmp.ne.s32.totalorder %s135, %s136
    %p147 = scmp.eq.s32.totalorder %s15, 0
    %p148 = por %p146, %p147
    %p149 = scmp.ne.s32.totalorder %s135, %s136
    %p150 = scmp.eq.s32.totalorder %s16, 3
    %p151 = por %p149, %p150
    %p153 = scmp.ne.s32.totalorder %s136, %s152
    %p154 = scmp.eq.s32.totalorder %s16, 0
    %p155 = por %p153, %p154
    %p156 = scmp.le.s32.totalorder 1, %s10
    %p157 = scmp.lt.s32.totalorder %s10, 5
    %p158 = pnand %p156, %p157
    %p159 = pneg %p158
    // Predicated region
    $region9: #{bottleneck_pallas.7} parent=5 // pred_check
      _
    $region10: #{bottleneck_pallas.7} parent=5 // pred_check_branch
      %161 = sbr.rel (%p158) target = $region12
    $region11: #{bottleneck_pallas.7} parent=5 // pred_region
      %s162 = ssub.s32 %s10, 1
      // Predicated region
      $region13: #{bottleneck_pallas.7} parent=11 // pred_check
        %p163 = pneg %p99
      $region14: #{bottleneck_pallas.7} parent=11 // pred_check_branch
        %165 = sbr.rel (%p163) target = $region16
      $region15: #{bottleneck_pallas.7} parent=11 // pred_region
        _
      $region16: #{bottleneck_pallas.7} parent=11 // pred_fallthru
        _
      // Predicated region
      $region17: #{bottleneck_pallas.7} parent=11 // pred_check
        %p166 = pneg %p120
      $region18: #{bottleneck_pallas.7} parent=11 // pred_check_branch
        %168 = sbr.rel (%p166) target = $region20
      $region19: #{bottleneck_pallas.7} parent=11 // pred_region
        _
      $region20: #{bottleneck_pallas.7} parent=11 // pred_fallthru
        _
    $region12: #{bottleneck_pallas.7} parent=5 // pred_fallthru
      _
    %p169 = scmp.lt.s32.totalorder %s10, 4
    // Predicated region
    $region21: #{bottleneck_pallas.7} parent=5 // pred_check
      %p170 = pneg %p169
    $region22: #{bottleneck_pallas.7} parent=5 // pred_check_branch
      %172 = sbr.rel (%p170) target = $region24
    $region23: #{bottleneck_pallas.7} parent=5 // pred_region
      // Predicated region
      $region25: #{bottleneck_pallas.7} parent=23 // pred_check
        %p173 = pneg %p44
      $region26: #{bottleneck_pallas.7} parent=23 // pred_check_branch
        %175 = sbr.rel (%p173) target = $region28
      $region27: #{bottleneck_pallas.7} parent=23 // pred_region
        %s176 = smul.u32 8, %s18
        %p177 = scmp.lt.s32.totalorder %s17, 1
        %s178 = scalar_select %p177, %s17, 1
        %p179 = scmp.lt.s32.totalorder %s176, 15
        %s180 = scalar_select %p179, %s176, 15
        %s181 = smul.addr %s180, 2
        %s182 = smul.addr %s178, 32
        %s183 = sadd.s32 %s181, %s182
        %s184 = smul.addr %s183, 4
        %s185 = scalar_lea.vmem %s0, %s184
        %s186 = smul.u32 8, %s18
      $region28: #{bottleneck_pallas.7} parent=23 // pred_fallthru
        _
      // Predicated region
      $region29: #{bottleneck_pallas.7} parent=23 // pred_check
        %p187 = pneg %p72
      $region30: #{bottleneck_pallas.7} parent=23 // pred_check_branch
        %189 = sbr.rel (%p187) target = $region32
      $region31: #{bottleneck_pallas.7} parent=23 // pred_region
        %s190 = smul.u32 8, %s18
        %p191 = scmp.lt.s32.totalorder %s17, 1
        %s192 = scalar_select %p191, %s17, 1
        %p193 = scmp.lt.s32.totalorder %s190, 15
        %s194 = scalar_select %p193, %s190, 15
        %s195 = smul.addr %s194, 2
        %s196 = smul.addr %s192, 32
        %s197 = sadd.s32 %s195, %s196
        %s198 = smul.addr %s197, 8
        %s199 = scalar_lea.vmem %s1, %s198
        %s200 = smul.u32 8, %s18
      $region32: #{bottleneck_pallas.7} parent=23 // pred_fallthru
        _
    $region24: #{bottleneck_pallas.7} parent=5 // pred_fallthru
      _
    %p201 = scmp.le.s32.totalorder 1, %s10
    %p202 = scmp.lt.s32.totalorder %s10, 5
    %p203 = pnand %p201, %p202
    %p204 = pneg %p203
    // Predicated region
    $region33: #{bottleneck_pallas.7} parent=5 // pred_check
      _
    $region34: #{bottleneck_pallas.7} parent=5 // pred_check_branch
      %206 = sbr.rel (%p203) target = $region36
    $region35: #{bottleneck_pallas.7} parent=5 // pred_region
      %s207 = ssub.s32 %s10, 1
      %s208 = smul.u32 8, %s20
      %p209 = scmp.lt.s32.totalorder %s19, 1
      %s210 = scalar_select %p209, %s19, 1
      %p211 = scmp.lt.s32.totalorder %s208, 15
      %s212 = scalar_select %p211, %s208, 15
      %s213 = smul.addr %s212, 2
      %s214 = smul.addr %s210, 32
      %s215 = sadd.s32 %s213, %s214
      %s216 = smul.addr %s215, 4
      %s217 = scalar_lea.vmem %s0, %s216
      %p218 = pneg %p50
      %p219 = pneg %p47
      %s220 = smul.u32 8, %s20
      %p221 = scmp.lt.s32.totalorder %s19, 1
      %s222 = scalar_select %p221, %s19, 1
      %p223 = scmp.lt.s32.totalorder %s220, 15
      %s224 = scalar_select %p223, %s220, 15
      %s225 = smul.addr %s224, 2
      %s226 = smul.addr %s222, 32
      %s227 = sadd.s32 %s225, %s226
      %s228 = smul.addr %s227, 8
      %s229 = scalar_lea.vmem %s1, %s228
      %p230 = pneg %p78
      %p231 = pneg %p75
      %p232 = pneg %p99
      %p233 = pneg %p96
      %p234 = pneg %p120
      %p235 = pneg %p117
      %p236 = pneg %p148
      %p237 = pneg %p145
      %s238 = smul.u32 8, %s20
      %p239 = scmp.lt.s32.totalorder %s19, 1
      %s240 = scalar_select %p239, %s19, 1
      %p241 = scmp.lt.s32.totalorder %s238, 15
      %s242 = scalar_select %p241, %s238, 15
      %s243 = smul.addr %s242, 2
      %s244 = smul.addr %s240, 32
      %s245 = sadd.s32 %s243, %s244
      %s246 = smul.addr %s245, 8
      %s247 = scalar_lea.vmem %s4, %s246
      %s248 = smul.u32 8, %s20
      %p249 = scmp.lt.s32.totalorder %s19, 1
      %s250 = scalar_select %p249, %s19, 1
      %p251 = scmp.lt.s32.totalorder %s248, 15
      %s252 = scalar_select %p251, %s248, 15
      %s253 = smul.addr %s252, 2
      %s254 = smul.addr %s250, 32
      %s255 = sadd.s32 %s253, %s254
      %s256 = smul.addr %s255, 4
      %s257 = scalar_lea.vmem %s0, %s256
      %s258 = smul.u32 8, %s20
      %s259 = smul.u32 8, %s20
      %p260 = scmp.lt.s32.totalorder %s19, 1
      %s261 = scalar_select %p260, %s19, 1
      %p262 = scmp.lt.s32.totalorder %s259, 15
      %s263 = scalar_select %p262, %s259, 15
      %s264 = smul.addr %s263, 2
      %s265 = smul.addr %s261, 32
      %s266 = sadd.s32 %s264, %s265
      %s267 = smul.addr %s266, 8
      %s268 = scalar_lea.vmem %s1, %s267
      %s269 = smul.u32 8, %s20
      %s270 = smul.u32 8, %s20
      %p271 = scmp.lt.s32.totalorder %s19, 1
      %s272 = scalar_select %p271, %s19, 1
      %p273 = scmp.lt.s32.totalorder %s270, 15
      %s274 = scalar_select %p273, %s270, 15
      %s275 = smul.addr %s274, 2
      %s276 = smul.addr %s272, 32
      %s277 = sadd.s32 %s275, %s276
      %s278 = smul.addr %s277, 8
      %s279 = scalar_lea.vmem %s4, %s278
      %s280 = smul.u32 8, %s20
      %v281 = vld [vmem:[%s257] sm:$0xf]
      %v282 = vld [vmem:[%s257 + $0x4] sm:$0xf]
      %v283 = vld [vmem:[%s257 + $0x8] sm:$0xf]
      %v284 = vld [vmem:[%s257 + $0xc] sm:$0xf]
      %v285 = vld [vmem:[%s257 + $0x10] sm:$0xf]
      %v286 = vld [vmem:[%s257 + $0x14] sm:$0xf]
      %v287 = vld [vmem:[%s257 + $0x18] sm:$0xf]
      %v288 = vld [vmem:[%s257 + $0x1c] sm:$0xf]
      %v289 = vld [vmem:[%s257 + $0x20] sm:$0xf]
      %v290 = vld [vmem:[%s257 + $0x24] sm:$0xf]
      %v291 = vld [vmem:[%s257 + $0x28] sm:$0xf]
      %v292 = vld [vmem:[%s257 + $0x2c] sm:$0xf]
      %v293 = vld [vmem:[%s257 + $0x30] sm:$0xf]
      %v294 = vld [vmem:[%s257 + $0x34] sm:$0xf]
      %v295 = vld [vmem:[%s257 + $0x38] sm:$0xf]
      %v296 = vld [vmem:[%s257 + $0x3c] sm:$0xf]
      %v297 = vunpack.c.l.bf16 %v281
      %v298 = vunpack.c.l.bf16 %v282
      %v299 = vunpack.c.l.bf16 %v283
      %v300 = vunpack.c.l.bf16 %v284
      %v301 = vunpack.c.l.bf16 %v285
      %v302 = vunpack.c.l.bf16 %v286
      %v303 = vunpack.c.l.bf16 %v287
      %v304 = vunpack.c.l.bf16 %v288
      %v305 = vunpack.c.l.bf16 %v289
      %v306 = vunpack.c.l.bf16 %v290
      %v307 = vunpack.c.l.bf16 %v291
      %v308 = vunpack.c.l.bf16 %v292
      %v309 = vunpack.c.l.bf16 %v293
      %v310 = vunpack.c.l.bf16 %v294
      %v311 = vunpack.c.l.bf16 %v295
      %v312 = vunpack.c.l.bf16 %v296
      %v313 = vld [vmem:[%s2] sm:$0x1]
      %v315 = vlaneseq
      %v316 = vshrl.u32 %v315, 7
      %v317 = vsub.s32 0, %v316
      %v318 = vrot.slane %v313, %v317
      %v320 = vmul.f32 %v297, %v318
      %v321 = vmul.f32 %v298, %v318
      %v322 = vmul.f32 %v299, %v318
      %v323 = vmul.f32 %v300, %v318
      %v324 = vmul.f32 %v301, %v318
      %v325 = vmul.f32 %v302, %v318
      %v326 = vmul.f32 %v303, %v318
      %v327 = vmul.f32 %v304, %v318
      %v328 = vmul.f32 %v305, %v318
      %v329 = vmul.f32 %v306, %v318
      %v330 = vmul.f32 %v307, %v318
      %v331 = vmul.f32 %v308, %v318
      %v332 = vmul.f32 %v309, %v318
      %v333 = vmul.f32 %v310, %v318
      %v334 = vmul.f32 %v311, %v318
      %v335 = vmul.f32 %v312, %v318
      %v336 = vld [vmem:[%s3] sm:$0x1]
      %v338 = vlaneseq
      %v339 = vshrl.u32 %v338, 7
      %v340 = vsub.s32 0, %v339
      %v341 = vrot.slane %v336, %v340
      %v343 = vadd.f32 %v320, %v341
      %v344 = vadd.f32 %v321, %v341
      %v345 = vadd.f32 %v322, %v341
      %v346 = vadd.f32 %v323, %v341
      %v347 = vadd.f32 %v324, %v341
      %v348 = vadd.f32 %v325, %v341
      %v349 = vadd.f32 %v326, %v341
      %v350 = vadd.f32 %v327, %v341
      %v351 = vadd.f32 %v328, %v341
      %v352 = vadd.f32 %v329, %v341
      %v353 = vadd.f32 %v330, %v341
      %v354 = vadd.f32 %v331, %v341
      %v355 = vadd.f32 %v332, %v341
      %v356 = vadd.f32 %v333, %v341
      %v357 = vadd.f32 %v334, %v341
      %v358 = vadd.f32 %v335, %v341
      %v359 = vld [vmem:[%s268] sm:$0xff]
      %v360 = vld [vmem:[%s268 + $0x8] sm:$0xff]
      %v361 = vld [vmem:[%s268 + $0x10] sm:$0xff]
      %v362 = vld [vmem:[%s268 + $0x18] sm:$0xff]
      %v363 = vld [vmem:[%s268 + $0x20] sm:$0xff]
      %v364 = vld [vmem:[%s268 + $0x28] sm:$0xff]
      %v365 = vld [vmem:[%s268 + $0x30] sm:$0xff]
      %v366 = vld [vmem:[%s268 + $0x38] sm:$0xff]
      %v367 = vld [vmem:[%s268 + $0x40] sm:$0xff]
      %v368 = vld [vmem:[%s268 + $0x48] sm:$0xff]
      %v369 = vld [vmem:[%s268 + $0x50] sm:$0xff]
      %v370 = vld [vmem:[%s268 + $0x58] sm:$0xff]
      %v371 = vld [vmem:[%s268 + $0x60] sm:$0xff]
      %v372 = vld [vmem:[%s268 + $0x68] sm:$0xff]
      %v373 = vld [vmem:[%s268 + $0x70] sm:$0xff]
      %v374 = vld [vmem:[%s268 + $0x78] sm:$0xff]
      %v375 = vadd.f32 %v343, %v359
      %v376 = vadd.f32 %v344, %v360
      %v377 = vadd.f32 %v345, %v361
      %v378 = vadd.f32 %v346, %v362
      %v379 = vadd.f32 %v347, %v363
      %v380 = vadd.f32 %v348, %v364
      %v381 = vadd.f32 %v349, %v365
      %v382 = vadd.f32 %v350, %v366
      %v383 = vadd.f32 %v351, %v367
      %v384 = vadd.f32 %v352, %v368
      %v385 = vadd.f32 %v353, %v369
      %v386 = vadd.f32 %v354, %v370
      %v387 = vadd.f32 %v355, %v371
      %v388 = vadd.f32 %v356, %v372
      %v389 = vadd.f32 %v357, %v373
      %v390 = vadd.f32 %v358, %v374
      %v391 = vmax.f32 %v375, 0.0
      %v392 = vmax.f32 %v376, 0.0
      %v393 = vmax.f32 %v377, 0.0
      %v394 = vmax.f32 %v378, 0.0
      %v395 = vmax.f32 %v379, 0.0
      %v396 = vmax.f32 %v380, 0.0
      %v397 = vmax.f32 %v381, 0.0
      %v398 = vmax.f32 %v382, 0.0
      %v399 = vmax.f32 %v383, 0.0
      %v400 = vmax.f32 %v384, 0.0
      %v401 = vmax.f32 %v385, 0.0
      %v402 = vmax.f32 %v386, 0.0
      %v403 = vmax.f32 %v387, 0.0
      %v404 = vmax.f32 %v388, 0.0
      %v405 = vmax.f32 %v389, 0.0
      %v406 = vmax.f32 %v390, 0.0
      %407 = vst [vmem:[%s279] sm:$0xff] %v391
      %408 = vst [vmem:[%s279 + $0x8] sm:$0xff] %v392
      %409 = vst [vmem:[%s279 + $0x10] sm:$0xff] %v393
      %410 = vst [vmem:[%s279 + $0x18] sm:$0xff] %v394
      %411 = vst [vmem:[%s279 + $0x20] sm:$0xff] %v395
      %412 = vst [vmem:[%s279 + $0x28] sm:$0xff] %v396
      %413 = vst [vmem:[%s279 + $0x30] sm:$0xff] %v397
      %414 = vst [vmem:[%s279 + $0x38] sm:$0xff] %v398
      %415 = vst [vmem:[%s279 + $0x40] sm:$0xff] %v399
      %416 = vst [vmem:[%s279 + $0x48] sm:$0xff] %v400
      %417 = vst [vmem:[%s279 + $0x50] sm:$0xff] %v401
      %418 = vst [vmem:[%s279 + $0x58] sm:$0xff] %v402
      %419 = vst [vmem:[%s279 + $0x60] sm:$0xff] %v403
      %420 = vst [vmem:[%s279 + $0x68] sm:$0xff] %v404
      %421 = vst [vmem:[%s279 + $0x70] sm:$0xff] %v405
      %422 = vst [vmem:[%s279 + $0x78] sm:$0xff] %v406
      %s423 = smul.u32 8, %s20
      %p424 = scmp.lt.s32.totalorder %s19, 1
      %s425 = scalar_select %p424, %s19, 1
      %p426 = scmp.lt.s32.totalorder %s423, 15
      %s427 = scalar_select %p426, %s423, 15
      %s428 = smul.addr %s427, 2
      %s429 = smul.addr %s425, 32
      %s430 = sadd.s32 %s428, %s429
      %s431 = smul.addr %s430, 8
      %s432 = scalar_lea.vmem %s4, %s431
      // Predicated region
      $region37: #{bottleneck_pallas.7} parent=35 // pred_check
        %p433 = pneg %p145
      $region38: #{bottleneck_pallas.7} parent=35 // pred_check_branch
        %435 = sbr.rel (%p433) target = $region40
      $region39: #{bottleneck_pallas.7} parent=35 // pred_region
        %s436 = smul.u32 8, %s20
      $region40: #{bottleneck_pallas.7} parent=35 // pred_fallthru
        _
    $region36: #{bottleneck_pallas.7} parent=5 // pred_fallthru
      _
    %p437 = scmp.le.s32.totalorder 2, %s10
    // Predicated region
    $region41: #{bottleneck_pallas.7} parent=5 // pred_check
      %p438 = pneg %p437
    $region42: #{bottleneck_pallas.7} parent=5 // pred_check_branch
      %440 = sbr.rel (%p438) target = $region44
    $region43: #{bottleneck_pallas.7} parent=5 // pred_region
      %s441 = ssub.s32 %s10, 2
      // Predicated region
      $region45: #{bottleneck_pallas.7} parent=43 // pred_check
        %p442 = pneg %p151
      $region46: #{bottleneck_pallas.7} parent=43 // pred_check_branch
        %444 = sbr.rel (%p442) target = $region48
      $region47: #{bottleneck_pallas.7} parent=43 // pred_region
        %s445 = smul.u32 8, %s22
        %p446 = scmp.lt.s32.totalorder %s21, 1
        %s447 = scalar_select %p446, %s21, 1
        %p448 = scmp.lt.s32.totalorder %s445, 15
        %s449 = scalar_select %p448, %s445, 15
        %s450 = smul.addr %s449, 2
        %s451 = smul.addr %s447, 32
        %s452 = sadd.s32 %s450, %s451
        %s453 = smul.addr %s452, 8
        %s454 = scalar_lea.vmem %s4, %s453
      $region48: #{bottleneck_pallas.7} parent=43 // pred_fallthru
        _
    $region44: #{bottleneck_pallas.7} parent=5 // pred_fallthru
      _
  $region6: #{bottleneck_pallas.7} parent=0 // loop_footer
    %s14 = sadd.s32 1, %s10
  $region7: #{bottleneck_pallas.7} parent=0 // loop_footer_branch
    %9 = sbr.rel target = $region3
  $region8: #{bottleneck_pallas.7} parent=0 // loop_exit
    _

// kernel: bottleneck_pallas.5
$region0: #{bottleneck_pallas.5}
  #allocation0 [shape = 'u32[]', space=smem, size = 0x4, offset = 0x4, fixed_abs, tag = 'smem constant byte address 0x4 - core index']
  #allocation1 [shape = 'u32[144,128]{1,0:T(1,128)}', space=vmem, size = 0x12000, scoped, tag = 'internal scratch']
  %s0 = inlined_call_operand.vmem [shape: bf16[2,16,16,128], index: 0, kind: input, shape index: {}, may-alias: {0,1,2}]
  %s1 = inlined_call_operand.vmem [shape: bf16[2,16,16,128], index: 1, kind: input, shape index: {}, may-alias: {0,1,2}]
  %s2 = inlined_call_operand.vmem [shape: bf16[2,16,16,128], index: 2, kind: input, shape index: {}, may-alias: {0,1,2}]
  %s3 = inlined_call_operand.vmem [shape: f32[1,128], index: 3, kind: input, shape index: {}]
  %s4 = inlined_call_operand.vmem [shape: f32[1,128], index: 4, kind: input, shape index: {}]
  %s5 = inlined_call_operand.vmem [shape: bf16[9,128,128], index: 5, kind: input, shape index: {}]
  %s6 = inlined_call_operand.vmem [shape: bf16[2,16,16,128], index: 6, kind: output, shape index: {0}]
  %s7 = inlined_call_operand.vmem [shape: f32[2,2,2,128], index: 7, kind: output, shape index: {1}]
  %8 = xla_tuple %s6, %s7
  %s9 = sld [smem:[#allocation0]]
  $region65: #{bottleneck_pallas.5} parent=0
    _
  %s11 = ssub.s32 1, %s9
  %s12 = scalar_select 0, %s11, %s9
  loop: start=0, step=1, limit=6
  $region2: #{bottleneck_pallas.5} parent=0 // loop_pre_header
    _
  $region3: #{bottleneck_pallas.5} parent=0 // loop_header
    %s14 = sphi 0, %s18
    %p15 = scmp.ge.s32.totalorder %s14, 6
    %s21 = sphi 0, %s33
    %s22 = sphi 0, %s29
    %s23 = sphi 0, %s21
    %s24 = sphi 0, %s22
    %s25 = sphi 0, %s23
    %s26 = sphi 0, %s24
    %s38 = sphi 0, %s40
    %s41 = sphi 0, %s38
    %s42 = sphi 0, %s41
    %s58 = sphi 0, %s42
    %s74 = sphi 0, %s76
    %s77 = sphi 0, %s74
    %s78 = sphi 0, %s77
    %s94 = sphi 0, %s78
    %s110 = sphi 0, %s112
    %s113 = sphi 0, %s110
    %s114 = sphi 0, %s113
    %s130 = sphi 0, %s114
    %s134 = sphi 0, %s134
    %s136 = sphi 0, %s134
    %s137 = sphi 0, %s136
    %s151 = sphi 0, %s137
    %s155 = sphi 0, %s155
    %s157 = sphi 0, %s155
    %s158 = sphi 0, %s157
    %s172 = sphi 0, %s158
    %s176 = sphi 0, %s176
    %s178 = sphi 0, %s176
    %s179 = sphi 0, %s178
    %s193 = sphi 0, %s179
    %s201 = sphi 0, %s203
    %s204 = sphi 0, %s201
    %s205 = sphi 0, %s204
    %s221 = sphi 0, %s205
    %s229 = sphi 0, %s231
    %s232 = sphi 0, %s229
    %s233 = sphi 0, %s232
    %s249 = sphi 0, %s233
  $region4: #{bottleneck_pallas.5} parent=0 // loop_header_branch
    %17 = sbr.rel (%p15) target = $region8
  $region5: #{bottleneck_pallas.5} parent=0 // loop_body
    %s19 = ssub.s32 %s14, 1
    %s20 = ssub.s32 %s14, 2
    %s27 = sadd.s32 1, %s22
    %p28 = scmp.ge.s32.totalorder %s27, 2
    %s29 = scalar_select %p28, 0, %s27
    %s30 = sadd.s32 1, %s21
    %s31 = scalar_select %p28, %s30, %s21
    %p32 = scmp.ge.s32.totalorder %s31, 2
    %s33 = scalar_select %p32, 0, %s31
    %s34 = ssub.s32 %s21, %s33
    %s35 = ssub.s32 %s22, %s29
    %s36 = sor.u32 %s34, %s35
    %p37 = scmp.eq.s32.totalorder %s36, 0
    %s39 = sadd.s32 %s38, 1
    %s40 = scalar_select %p37, %s38, %s39
    %p43 = pneg %p37
    %p44 = scmp.eq.s32.totalorder %s14, 3
    %p45 = por %p43, %p44
    %p46 = scmp.ne.s32.totalorder %s38, %s41
    %p47 = scmp.eq.s32.totalorder %s14, 0
    %p48 = por %p46, %p47
    %p49 = scmp.ne.s32.totalorder %s38, %s41
    %p50 = scmp.eq.s32.totalorder %s19, 3
    %p51 = por %p49, %p50
    %p52 = scmp.ne.s32.totalorder %s41, %s42
    %p53 = scmp.eq.s32.totalorder %s19, 0
    %p54 = por %p52, %p53
    %p55 = scmp.ne.s32.totalorder %s41, %s42
    %p56 = scmp.eq.s32.totalorder %s20, 3
    %p57 = por %p55, %p56
    %p59 = scmp.ne.s32.totalorder %s42, %s58
    %p60 = scmp.eq.s32.totalorder %s20, 0
    %p61 = por %p59, %p60
    %s62 = smul.u32 %s22, 8
    %s63 = ssub.s32 %s62, 1
    %p64 = scmp.gt.s32.totalorder %s63, 0
    %s65 = scalar_select %p64, %s63, 0
    %s66 = smul.u32 %s29, 8
    %s67 = ssub.s32 %s66, 1
    %p68 = scmp.gt.s32.totalorder %s67, 0
    %s69 = scalar_select %p68, %s67, 0
    %s70 = ssub.s32 %s21, %s33
    %s71 = ssub.s32 %s65, %s69
    %s72 = sor.u32 %s70, %s71
    %p73 = scmp.eq.s32.totalorder %s72, 0
    %s75 = sadd.s32 %s74, 1
    %s76 = scalar_select %p73, %s74, %s75
    %p79 = pneg %p73
    %p80 = scmp.eq.s32.totalorder %s14, 3
    %p81 = por %p79, %p80
    %p82 = scmp.ne.s32.totalorder %s74, %s77
    %p83 = scmp.eq.s32.totalorder %s14, 0
    %p84 = por %p82, %p83
    %p85 = scmp.ne.s32.totalorder %s74, %s77
    %p86 = scmp.eq.s32.totalorder %s19, 3
    %p87 = por %p85, %p86
    %p88 = scmp.ne.s32.totalorder %s77, %s78
    %p89 = scmp.eq.s32.totalorder %s19, 0
    %p90 = por %p88, %p89
    %p91 = scmp.ne.s32.totalorder %s77, %s78
    %p92 = scmp.eq.s32.totalorder %s20, 3
    %p93 = por %p91, %p92
    %p95 = scmp.ne.s32.totalorder %s78, %s94
    %p96 = scmp.eq.s32.totalorder %s20, 0
    %p97 = por %p95, %p96
    %s98 = sadd.s32 %s22, 1
    %s99 = smul.u32 %s98, 8
    %p100 = scmp.lt.s32.totalorder %s99, 15
    %s101 = scalar_select %p100, %s99, 15
    %s102 = sadd.s32 %s29, 1
    %s103 = smul.u32 %s102, 8
    %p104 = scmp.lt.s32.totalorder %s103, 15
    %s105 = scalar_select %p104, %s103, 15
    %s106 = ssub.s32 %s21, %s33
    %s107 = ssub.s32 %s101, %s105
    %s108 = sor.u32 %s106, %s107
    %p109 = scmp.eq.s32.totalorder %s108, 0
    %s111 = sadd.s32 %s110, 1
    %s112 = scalar_select %p109, %s110, %s111
    %p115 = pneg %p109
    %p116 = scmp.eq.s32.totalorder %s14, 3
    %p117 = por %p115, %p116
    %p118 = scmp.ne.s32.totalorder %s110, %s113
    %p119 = scmp.eq.s32.totalorder %s14, 0
    %p120 = por %p118, %p119
    %p121 = scmp.ne.s32.totalorder %s110, %s113
    %p122 = scmp.eq.s32.totalorder %s19, 3
    %p123 = por %p121, %p122
    %p124 = scmp.ne.s32.totalorder %s113, %s114
    %p125 = scmp.eq.s32.totalorder %s19, 0
    %p126 = por %p124, %p125
    %p127 = scmp.ne.s32.totalorder %s113, %s114
    %p128 = scmp.eq.s32.totalorder %s20, 3
    %p129 = por %p127, %p128
    %p131 = scmp.ne.s32.totalorder %s114, %s130
    %p132 = scmp.eq.s32.totalorder %s20, 0
    %p133 = por %p131, %p132
    %s135 = sadd.s32 %s134, 1
    %p138 = scmp.eq.s32.totalorder %s14, 3
    %p139 = scmp.ne.s32.totalorder %s134, %s136
    %p140 = scmp.eq.s32.totalorder %s14, 0
    %p141 = por %p139, %p140
    %p142 = scmp.ne.s32.totalorder %s134, %s136
    %p143 = scmp.eq.s32.totalorder %s19, 3
    %p144 = por %p142, %p143
    %p145 = scmp.ne.s32.totalorder %s136, %s137
    %p146 = scmp.eq.s32.totalorder %s19, 0
    %p147 = por %p145, %p146
    %p148 = scmp.ne.s32.totalorder %s136, %s137
    %p149 = scmp.eq.s32.totalorder %s20, 3
    %p150 = por %p148, %p149
    %p152 = scmp.ne.s32.totalorder %s137, %s151
    %p153 = scmp.eq.s32.totalorder %s20, 0
    %p154 = por %p152, %p153
    %s156 = sadd.s32 %s155, 1
    %p159 = scmp.eq.s32.totalorder %s14, 3
    %p160 = scmp.ne.s32.totalorder %s155, %s157
    %p161 = scmp.eq.s32.totalorder %s14, 0
    %p162 = por %p160, %p161
    %p163 = scmp.ne.s32.totalorder %s155, %s157
    %p164 = scmp.eq.s32.totalorder %s19, 3
    %p165 = por %p163, %p164
    %p166 = scmp.ne.s32.totalorder %s157, %s158
    %p167 = scmp.eq.s32.totalorder %s19, 0
    %p168 = por %p166, %p167
    %p169 = scmp.ne.s32.totalorder %s157, %s158
    %p170 = scmp.eq.s32.totalorder %s20, 3
    %p171 = por %p169, %p170
    %p173 = scmp.ne.s32.totalorder %s158, %s172
    %p174 = scmp.eq.s32.totalorder %s20, 0
    %p175 = por %p173, %p174
    %s177 = sadd.s32 %s176, 1
    %p180 = scmp.eq.s32.totalorder %s14, 3
    %p181 = scmp.ne.s32.totalorder %s176, %s178
    %p182 = scmp.eq.s32.totalorder %s14, 0
    %p183 = por %p181, %p182
    %p184 = scmp.ne.s32.totalorder %s176, %s178
    %p185 = scmp.eq.s32.totalorder %s19, 3
    %p186 = por %p184, %p185
    %p187 = scmp.ne.s32.totalorder %s178, %s179
    %p188 = scmp.eq.s32.totalorder %s19, 0
    %p189 = por %p187, %p188
    %p190 = scmp.ne.s32.totalorder %s178, %s179
    %p191 = scmp.eq.s32.totalorder %s20, 3
    %p192 = por %p190, %p191
    %p194 = scmp.ne.s32.totalorder %s179, %s193
    %p195 = scmp.eq.s32.totalorder %s20, 0
    %p196 = por %p194, %p195
    %s197 = ssub.s32 %s21, %s33
    %s198 = ssub.s32 %s22, %s29
    %s199 = sor.u32 %s197, %s198
    %p200 = scmp.eq.s32.totalorder %s199, 0
    %s202 = sadd.s32 %s201, 1
    %s203 = scalar_select %p200, %s201, %s202
    %p206 = pneg %p200
    %p207 = scmp.eq.s32.totalorder %s14, 3
    %p208 = por %p206, %p207
    %p209 = scmp.ne.s32.totalorder %s201, %s204
    %p210 = scmp.eq.s32.totalorder %s14, 0
    %p211 = por %p209, %p210
    %p212 = scmp.ne.s32.totalorder %s201, %s204
    %p213 = scmp.eq.s32.totalorder %s19, 3
    %p214 = por %p212, %p213
    %p215 = scmp.ne.s32.totalorder %s204, %s205
    %p216 = scmp.eq.s32.totalorder %s19, 0
    %p217 = por %p215, %p216
    %p218 = scmp.ne.s32.totalorder %s204, %s205
    %p219 = scmp.eq.s32.totalorder %s20, 3
    %p220 = por %p218, %p219
    %p222 = scmp.ne.s32.totalorder %s205, %s221
    %p223 = scmp.eq.s32.totalorder %s20, 0
    %p224 = por %p222, %p223
    %s225 = ssub.s32 %s21, %s33
    %s226 = ssub.s32 %s22, %s29
    %s227 = sor.u32 %s225, %s226
    %p228 = scmp.eq.s32.totalorder %s227, 0
    %s230 = sadd.s32 %s229, 1
    %s231 = scalar_select %p228, %s229, %s230
    %p234 = pneg %p228
    %p235 = scmp.eq.s32.totalorder %s14, 3
    %p236 = por %p234, %p235
    %p237 = scmp.ne.s32.totalorder %s229, %s232
    %p238 = scmp.eq.s32.totalorder %s14, 0
    %p239 = por %p237, %p238
    %p240 = scmp.ne.s32.totalorder %s229, %s232
    %p241 = scmp.eq.s32.totalorder %s19, 3
    %p242 = por %p240, %p241
    %p243 = scmp.ne.s32.totalorder %s232, %s233
    %p244 = scmp.eq.s32.totalorder %s19, 0
    %p245 = por %p243, %p244
    %p246 = scmp.ne.s32.totalorder %s232, %s233
    %p247 = scmp.eq.s32.totalorder %s20, 3
    %p248 = por %p246, %p247
    %p250 = scmp.ne.s32.totalorder %s233, %s249
    %p251 = scmp.eq.s32.totalorder %s20, 0
    %p252 = por %p250, %p251
    %p253 = scmp.le.s32.totalorder 1, %s14
    %p254 = scmp.lt.s32.totalorder %s14, 5
    %p255 = pnand %p253, %p254
    %p256 = pneg %p255
    // Predicated region
    $region9: #{bottleneck_pallas.5} parent=5 // pred_check
      _
    $region10: #{bottleneck_pallas.5} parent=5 // pred_check_branch
      %258 = sbr.rel (%p255) target = $region12
    $region11: #{bottleneck_pallas.5} parent=5 // pred_region
      %s259 = ssub.s32 %s14, 1
      // Predicated region
      $region13: #{bottleneck_pallas.5} parent=11 // pred_check
        %p260 = pneg %p147
      $region14: #{bottleneck_pallas.5} parent=11 // pred_check_branch
        %262 = sbr.rel (%p260) target = $region16
      $region15: #{bottleneck_pallas.5} parent=11 // pred_region
        _
      $region16: #{bottleneck_pallas.5} parent=11 // pred_fallthru
        _
      // Predicated region
      $region17: #{bottleneck_pallas.5} parent=11 // pred_check
        %p263 = pneg %p168
      $region18: #{bottleneck_pallas.5} parent=11 // pred_check_branch
        %265 = sbr.rel (%p263) target = $region20
      $region19: #{bottleneck_pallas.5} parent=11 // pred_region
        _
      $region20: #{bottleneck_pallas.5} parent=11 // pred_fallthru
        _
      // Predicated region
      $region21: #{bottleneck_pallas.5} parent=11 // pred_check
        %p266 = pneg %p189
      $region22: #{bottleneck_pallas.5} parent=11 // pred_check_branch
        %268 = sbr.rel (%p266) target = $region24
      $region23: #{bottleneck_pallas.5} parent=11 // pred_region
        _
      $region24: #{bottleneck_pallas.5} parent=11 // pred_fallthru
        _
    $region12: #{bottleneck_pallas.5} parent=5 // pred_fallthru
      _
    %p269 = scmp.lt.s32.totalorder %s14, 4
    // Predicated region
    $region25: #{bottleneck_pallas.5} parent=5 // pred_check
      %p270 = pneg %p269
    $region26: #{bottleneck_pallas.5} parent=5 // pred_check_branch
      %272 = sbr.rel (%p270) target = $region28
    $region27: #{bottleneck_pallas.5} parent=5 // pred_region
      // Predicated region
      $region29: #{bottleneck_pallas.5} parent=27 // pred_check
        %p273 = pneg %p48
      $region30: #{bottleneck_pallas.5} parent=27 // pred_check_branch
        %275 = sbr.rel (%p273) target = $region32
      $region31: #{bottleneck_pallas.5} parent=27 // pred_region
        %s276 = smul.u32 8, %s22
        %p277 = scmp.lt.s32.totalorder %s21, 1
        %s278 = scalar_select %p277, %s21, 1
        %p279 = scmp.lt.s32.totalorder %s276, 15
        %s280 = scalar_select %p279, %s276, 15
        %s281 = smul.addr %s280, 2
        %s282 = smul.addr %s278, 32
        %s283 = sadd.s32 %s281, %s282
        %s284 = smul.addr %s283, 4
        %s285 = scalar_lea.vmem %s0, %s284
        %s286 = smul.u32 8, %s22
      $region32: #{bottleneck_pallas.5} parent=27 // pred_fallthru
        _
      // Predicated region
      $region33: #{bottleneck_pallas.5} parent=27 // pred_check
        %p287 = pneg %p84
      $region34: #{bottleneck_pallas.5} parent=27 // pred_check_branch
        %289 = sbr.rel (%p287) target = $region36
      $region35: #{bottleneck_pallas.5} parent=27 // pred_region
        %s290 = smul.u32 %s22, 8
        %s291 = ssub.s32 %s290, 1
        %p292 = scmp.gt.s32.totalorder %s291, 0
        %s293 = scalar_select %p292, %s291, 0
        %p294 = scmp.lt.s32.totalorder %s21, 1
        %s295 = scalar_select %p294, %s21, 1
        %p296 = scmp.lt.s32.totalorder %s293, 15
        %s297 = scalar_select %p296, %s293, 15
        %s298 = smul.addr %s297, 2
        %s299 = smul.addr %s295, 32
        %s300 = sadd.s32 %s298, %s299
        %s301 = smul.addr %s300, 4
        %s302 = scalar_lea.vmem %s1, %s301
        %s303 = smul.u32 %s22, 8
        %s304 = ssub.s32 %s303, 1
        %p305 = scmp.gt.s32.totalorder %s304, 0
        %s306 = scalar_select %p305, %s304, 0
      $region36: #{bottleneck_pallas.5} parent=27 // pred_fallthru
        _
      // Predicated region
      $region37: #{bottleneck_pallas.5} parent=27 // pred_check
        %p307 = pneg %p120
      $region38: #{bottleneck_pallas.5} parent=27 // pred_check_branch
        %309 = sbr.rel (%p307) target = $region40
      $region39: #{bottleneck_pallas.5} parent=27 // pred_region
        %s310 = sadd.s32 %s22, 1
        %s311 = smul.u32 %s310, 8
        %p312 = scmp.lt.s32.totalorder %s311, 15
        %s313 = scalar_select %p312, %s311, 15
        %p314 = scmp.lt.s32.totalorder %s21, 1
        %s315 = scalar_select %p314, %s21, 1
        %p316 = scmp.lt.s32.totalorder %s313, 15
        %s317 = scalar_select %p316, %s313, 15
        %s318 = smul.addr %s317, 2
        %s319 = smul.addr %s315, 32
        %s320 = sadd.s32 %s318, %s319
        %s321 = smul.addr %s320, 4
        %s322 = scalar_lea.vmem %s2, %s321
        %s323 = sadd.s32 %s22, 1
        %s324 = smul.u32 %s323, 8
        %p325 = scmp.lt.s32.totalorder %s324, 15
        %s326 = scalar_select %p325, %s324, 15
      $region40: #{bottleneck_pallas.5} parent=27 // pred_fallthru
        _
    $region28: #{bottleneck_pallas.5} parent=5 // pred_fallthru
      _
    %p327 = scmp.le.s32.totalorder 1, %s14
    %p328 = scmp.lt.s32.totalorder %s14, 5
    %p329 = pnand %p327, %p328
    %p330 = pneg %p329
    // Predicated region
    $region41: #{bottleneck_pallas.5} parent=5 // pred_check
      _
    $region42: #{bottleneck_pallas.5} parent=5 // pred_check_branch
      %332 = sbr.rel (%p329) target = $region44
    $region43: #{bottleneck_pallas.5} parent=5 // pred_region
      %s333 = ssub.s32 %s14, 1
      %s334 = smul.u32 8, %s24
      %p335 = scmp.lt.s32.totalorder %s23, 1
      %s336 = scalar_select %p335, %s23, 1
      %p337 = scmp.lt.s32.totalorder %s334, 15
      %s338 = scalar_select %p337, %s334, 15
      %s339 = smul.addr %s338, 2
      %s340 = smul.addr %s336, 32
      %s341 = sadd.s32 %s339, %s340
      %s342 = smul.addr %s341, 4
      %s343 = scalar_lea.vmem %s0, %s342
      %p344 = pneg %p54
      %p345 = pneg %p51
      %s346 = smul.u32 %s24, 8
      %s347 = ssub.s32 %s346, 1
      %p348 = scmp.gt.s32.totalorder %s347, 0
      %s349 = scalar_select %p348, %s347, 0
      %p350 = scmp.lt.s32.totalorder %s23, 1
      %s351 = scalar_select %p350, %s23, 1
      %p352 = scmp.lt.s32.totalorder %s349, 15
      %s353 = scalar_select %p352, %s349, 15
      %s354 = smul.addr %s353, 2
      %s355 = smul.addr %s351, 32
      %s356 = sadd.s32 %s354, %s355
      %s357 = smul.addr %s356, 4
      %s358 = scalar_lea.vmem %s1, %s357
      %p359 = pneg %p90
      %p360 = pneg %p87
      %s361 = sadd.s32 %s24, 1
      %s362 = smul.u32 %s361, 8
      %p363 = scmp.lt.s32.totalorder %s362, 15
      %s364 = scalar_select %p363, %s362, 15
      %p365 = scmp.lt.s32.totalorder %s23, 1
      %s366 = scalar_select %p365, %s23, 1
      %p367 = scmp.lt.s32.totalorder %s364, 15
      %s368 = scalar_select %p367, %s364, 15
      %s369 = smul.addr %s368, 2
      %s370 = smul.addr %s366, 32
      %s371 = sadd.s32 %s369, %s370
      %s372 = smul.addr %s371, 4
      %s373 = scalar_lea.vmem %s2, %s372
      %p374 = pneg %p126
      %p375 = pneg %p123
      %p376 = pneg %p147
      %p377 = pneg %p144
      %p378 = pneg %p168
      %p379 = pneg %p165
      %p380 = pneg %p189
      %p381 = pneg %p186
      %p382 = pneg %p217
      %p383 = pneg %p214
      %s384 = smul.u32 8, %s24
      %p385 = scmp.lt.s32.totalorder %s23, 1
      %s386 = scalar_select %p385, %s23, 1
      %p387 = scmp.lt.s32.totalorder %s384, 15
      %s388 = scalar_select %p387, %s384, 15
      %s389 = smul.addr %s388, 2
      %s390 = smul.addr %s386, 32
      %s391 = sadd.s32 %s389, %s390
      %s392 = smul.addr %s391, 4
      %s393 = scalar_lea.vmem %s6, %s392
      %p394 = pneg %p245
      %p395 = pneg %p242
      %p396 = scmp.lt.s32.totalorder %s23, 1
      %s397 = scalar_select %p396, %s23, 1
      %p398 = scmp.lt.s32.totalorder %s24, 1
      %s399 = scalar_select %p398, %s24, 1
      %s400 = smul.addr %s397, 2
      %s401 = sadd.s32 %s399, %s400
      %s402 = smul.addr %s401, 2
      %s403 = scalar_lea.vmem %s7, %s402
      %s404 = smul.u32 8, %s24
      %p405 = scmp.lt.s32.totalorder %s23, 1
      %s406 = scalar_select %p405, %s23, 1
      %p407 = scmp.lt.s32.totalorder %s404, 15
      %s408 = scalar_select %p407, %s404, 15
      %s409 = smul.addr %s408, 2
      %s410 = smul.addr %s406, 32
      %s411 = sadd.s32 %s409, %s410
      %s412 = smul.addr %s411, 4
      %s413 = scalar_lea.vmem %s0, %s412
      %s414 = smul.u32 8, %s24
      %s415 = smul.u32 %s24, 8
      %s416 = ssub.s32 %s415, 1
      %p417 = scmp.gt.s32.totalorder %s416, 0
      %s418 = scalar_select %p417, %s416, 0
      %p419 = scmp.lt.s32.totalorder %s23, 1
      %s420 = scalar_select %p419, %s23, 1
      %p421 = scmp.lt.s32.totalorder %s418, 15
      %s422 = scalar_select %p421, %s418, 15
      %s423 = smul.addr %s422, 2
      %s424 = smul.addr %s420, 32
      %s425 = sadd.s32 %s423, %s424
      %s426 = smul.addr %s425, 4
      %s427 = scalar_lea.vmem %s1, %s426
      %s428 = smul.u32 %s24, 8
      %s429 = ssub.s32 %s428, 1
      %p430 = scmp.gt.s32.totalorder %s429, 0
      %s431 = scalar_select %p430, %s429, 0
      %s432 = sadd.s32 %s24, 1
      %s433 = smul.u32 %s432, 8
      %p434 = scmp.lt.s32.totalorder %s433, 15
      %s435 = scalar_select %p434, %s433, 15
      %p436 = scmp.lt.s32.totalorder %s23, 1
      %s437 = scalar_select %p436, %s23, 1
      %p438 = scmp.lt.s32.totalorder %s435, 15
      %s439 = scalar_select %p438, %s435, 15
      %s440 = smul.addr %s439, 2
      %s441 = smul.addr %s437, 32
      %s442 = sadd.s32 %s440, %s441
      %s443 = smul.addr %s442, 4
      %s444 = scalar_lea.vmem %s2, %s443
      %s445 = sadd.s32 %s24, 1
      %s446 = smul.u32 %s445, 8
      %p447 = scmp.lt.s32.totalorder %s446, 15
      %s448 = scalar_select %p447, %s446, 15
      %s449 = smul.u32 8, %s24
      %p450 = scmp.lt.s32.totalorder %s23, 1
      %s451 = scalar_select %p450, %s23, 1
      %p452 = scmp.lt.s32.totalorder %s449, 15
      %s453 = scalar_select %p452, %s449, 15
      %s454 = smul.addr %s453, 2
      %s455 = smul.addr %s451, 32
      %s456 = sadd.s32 %s454, %s455
      %s457 = smul.addr %s456, 4
      %s458 = scalar_lea.vmem %s6, %s457
      %s459 = smul.u32 8, %s24
      %p460 = scmp.lt.s32.totalorder %s23, 1
      %s461 = scalar_select %p460, %s23, 1
      %p462 = scmp.lt.s32.totalorder %s24, 1
      %s463 = scalar_select %p462, %s24, 1
      %s464 = smul.addr %s461, 2
      %s465 = sadd.s32 %s463, %s464
      %s466 = smul.addr %s465, 2
      %s467 = scalar_lea.vmem %s7, %s466
      %v469 = vld [vmem:[%s3] sm:$0x1]
      %v470 = vld [vmem:[%s4] sm:$0x1]
      %v471 = vld [vmem:[%s413] sm:$0xf]
      %v472 = vld [vmem:[%s413 + $0x4] sm:$0xf]
      %v473 = vld [vmem:[%s413 + $0x8] sm:$0xf]
      %v474 = vld [vmem:[%s413 + $0xc] sm:$0xf]
      %v475 = vld [vmem:[%s413 + $0x10] sm:$0xf]
      %v476 = vld [vmem:[%s413 + $0x14] sm:$0xf]
      %v477 = vld [vmem:[%s413 + $0x18] sm:$0xf]
      %v478 = vld [vmem:[%s413 + $0x1c] sm:$0xf]
      %v479 = vld [vmem:[%s413 + $0x20] sm:$0xf]
      %v480 = vld [vmem:[%s413 + $0x24] sm:$0xf]
      %v481 = vld [vmem:[%s413 + $0x28] sm:$0xf]
      %v482 = vld [vmem:[%s413 + $0x2c] sm:$0xf]
      %v483 = vld [vmem:[%s413 + $0x30] sm:$0xf]
      %v484 = vld [vmem:[%s413 + $0x34] sm:$0xf]
      %v485 = vld [vmem:[%s413 + $0x38] sm:$0xf]
      %v486 = vld [vmem:[%s413 + $0x3c] sm:$0xf]
      %v487 = vunpack.c.l.bf16 %v471
      %v488 = vunpack.c.l.bf16 %v472
      %v489 = vunpack.c.l.bf16 %v473
      %v490 = vunpack.c.l.bf16 %v474
      %v491 = vunpack.c.l.bf16 %v475
      %v492 = vunpack.c.l.bf16 %v476
      %v493 = vunpack.c.l.bf16 %v477
      %v494 = vunpack.c.l.bf16 %v478
      %v495 = vunpack.c.l.bf16 %v479
      %v496 = vunpack.c.l.bf16 %v480
      %v497 = vunpack.c.l.bf16 %v481
      %v498 = vunpack.c.l.bf16 %v482
      %v499 = vunpack.c.l.bf16 %v483
      %v500 = vunpack.c.l.bf16 %v484
      %v501 = vunpack.c.l.bf16 %v485
      %v502 = vunpack.c.l.bf16 %v486
      %v504 = vlaneseq
      %v505 = vshrl.u32 %v504, 7
      %v506 = vsub.s32 0, %v505
      %v507 = vrot.slane %v469, %v506
      %v509 = vmul.f32 %v487, %v507
      %v510 = vmul.f32 %v488, %v507
      %v511 = vmul.f32 %v489, %v507
      %v512 = vmul.f32 %v490, %v507
      %v513 = vmul.f32 %v491, %v507
      %v514 = vmul.f32 %v492, %v507
      %v515 = vmul.f32 %v493, %v507
      %v516 = vmul.f32 %v494, %v507
      %v517 = vmul.f32 %v495, %v507
      %v518 = vmul.f32 %v496, %v507
      %v519 = vmul.f32 %v497, %v507
      %v520 = vmul.f32 %v498, %v507
      %v521 = vmul.f32 %v499, %v507
      %v522 = vmul.f32 %v500, %v507
      %v523 = vmul.f32 %v501, %v507
      %v524 = vmul.f32 %v502, %v507
      %v526 = vlaneseq
      %v527 = vshrl.u32 %v526, 7
      %v528 = vsub.s32 0, %v527
      %v529 = vrot.slane %v470, %v528
      %v531 = vadd.f32 %v509, %v529
      %v532 = vadd.f32 %v510, %v529
      %v533 = vadd.f32 %v511, %v529
      %v534 = vadd.f32 %v512, %v529
      %v535 = vadd.f32 %v513, %v529
      %v536 = vadd.f32 %v514, %v529
      %v537 = vadd.f32 %v515, %v529
      %v538 = vadd.f32 %v516, %v529
      %v539 = vadd.f32 %v517, %v529
      %v540 = vadd.f32 %v518, %v529
      %v541 = vadd.f32 %v519, %v529
      %v542 = vadd.f32 %v520, %v529
      %v543 = vadd.f32 %v521, %v529
      %v544 = vadd.f32 %v522, %v529
      %v545 = vadd.f32 %v523, %v529
      %v546 = vadd.f32 %v524, %v529
      %v547 = vmax.f32 %v531, 0.0
      %v548 = vmax.f32 %v532, 0.0
      %v549 = vmax.f32 %v533, 0.0
      %v550 = vmax.f32 %v534, 0.0
      %v551 = vmax.f32 %v535, 0.0
      %v552 = vmax.f32 %v536, 0.0
      %v553 = vmax.f32 %v537, 0.0
      %v554 = vmax.f32 %v538, 0.0
      %v555 = vmax.f32 %v539, 0.0
      %v556 = vmax.f32 %v540, 0.0
      %v557 = vmax.f32 %v541, 0.0
      %v558 = vmax.f32 %v542, 0.0
      %v559 = vmax.f32 %v543, 0.0
      %v560 = vmax.f32 %v544, 0.0
      %v561 = vmax.f32 %v545, 0.0
      %v562 = vmax.f32 %v546, 0.0
      %v563 = vld [vmem:[%s427] sm:$0xf]
      %v564 = vld [vmem:[%s427 + $0x4] sm:$0xf]
      %v565 = vunpack.c.l.bf16 %v563
      %v566 = vunpack.c.l.bf16 %v564
      %v567 = vmul.f32 %v565, %v507
      %v568 = vmul.f32 %v566, %v507
      %v569 = vadd.f32 %v567, %v529
      %v570 = vadd.f32 %v568, %v529
      %v571 = vmax.f32 %v569, 0.0
      %v572 = vmax.f32 %v570, 0.0
      %v573 = vld [vmem:[%s444] sm:$0xf]
      %v574 = vld [vmem:[%s444 + $0x4] sm:$0xf]
      %v575 = vunpack.c.l.bf16 %v573
      %v576 = vunpack.c.l.bf16 %v574
      %v577 = vmul.f32 %v575, %v507
      %v578 = vmul.f32 %v576, %v507
      %v579 = vadd.f32 %v577, %v529
      %v580 = vadd.f32 %v578, %v529
      %v581 = vmax.f32 %v579, 0.0
      %v582 = vmax.f32 %v580, 0.0
      %p583 = scmp.gt.s32.totalorder %s24, 0
      %s584 = scalar_select %p583, 1, 0
      %v585 = vstv %s584
      %vm586 = vcmp.eq.s32.totalorder %v585, 1
      %v587 = vsel %vm586, %v571, 0.0
      %v588 = vsel %vm586, %v572, 0.0
      %p589 = scmp.lt.s32.totalorder %s24, 1
      %s590 = scalar_select %p589, 1, 0
      %v591 = vstv %s590
      %vm592 = vcmp.eq.s32.totalorder %v591, 1
      %v593 = vsel %vm592, %v581, 0.0
      %v594 = vsel %vm592, %v582, 0.0
      %vm615 = vcmask 1040384
      %v616 = vrot.slane %v587, 7
      %v617 = vrot.slane %v588, 7
      %v618 = vsel %vm615, %v616, %v617
      %v619 = vrot.slane %v547, 7
      %v620 = vrot.slane %v548, 7
      %v621 = vsel %vm615, %v619, %v620
      %v622 = vrot.slane %v549, 7
      %v623 = vrot.slane %v550, 7
      %v624 = vsel %vm615, %v622, %v623
      %v625 = vrot.slane %v551, 7
      %v626 = vrot.slane %v552, 7
      %v627 = vsel %vm615, %v625, %v626
      %v628 = vrot.slane %v553, 7
      %v629 = vrot.slane %v554, 7
      %v630 = vsel %vm615, %v628, %v629
      %v631 = vrot.slane %v555, 7
      %v632 = vrot.slane %v556, 7
      %v633 = vsel %vm615, %v631, %v632
      %v634 = vrot.slane %v557, 7
      %v635 = vrot.slane %v558, 7
      %v636 = vsel %vm615, %v634, %v635
      %v637 = vrot.slane %v559, 7
      %v638 = vrot.slane %v560, 7
      %v639 = vsel %vm615, %v637, %v638
      %v640 = vrot.slane %v561, 7
      %v641 = vrot.slane %v562, 7
      %v642 = vsel %vm615, %v640, %v641
      %v643 = vrot.slane %v593, 7
      %v644 = vrot.slane %v594, 7
      %v645 = vsel %vm615, %v643, %v644
      %v676 = vsel %vm615, 0.0, %v616
      %v677 = vsel %vm615, 0.0, %v619
      %v678 = vsel %vm615, 0.0, %v622
      %v679 = vsel %vm615, 0.0, %v625
      %v680 = vsel %vm615, 0.0, %v628
      %v681 = vsel %vm615, 0.0, %v631
      %v682 = vsel %vm615, 0.0, %v634
      %v683 = vsel %vm615, 0.0, %v637
      %v684 = vsel %vm615, 0.0, %v640
      %v685 = vsel %vm615, 0.0, %v643
      %v686 = vsel %vm615, %v617, 0.0
      %v687 = vsel %vm615, %v620, 0.0
      %v688 = vsel %vm615, %v623, 0.0
      %v689 = vsel %vm615, %v626, 0.0
      %v690 = vsel %vm615, %v629, 0.0
      %v691 = vsel %vm615, %v632, 0.0
      %v692 = vsel %vm615, %v635, 0.0
      %v693 = vsel %vm615, %v638, 0.0
      %v694 = vsel %vm615, %v641, 0.0
      %v695 = vsel %vm615, %v644, 0.0
      %v696 = vpack.c.bf16 %v618, %v676
      %v697 = vpack.c.bf16 %v686, %v686
      %v698 = vpack.c.bf16 %v621, %v677
      %v699 = vpack.c.bf16 %v687, %v687
      %v700 = vpack.c.bf16 %v624, %v678
      %v701 = vpack.c.bf16 %v688, %v688
      %v702 = vpack.c.bf16 %v627, %v679
      %v703 = vpack.c.bf16 %v689, %v689
      %v704 = vpack.c.bf16 %v630, %v680
      %v705 = vpack.c.bf16 %v690, %v690
      %v706 = vpack.c.bf16 %v633, %v681
      %v707 = vpack.c.bf16 %v691, %v691
      %v708 = vpack.c.bf16 %v636, %v682
      %v709 = vpack.c.bf16 %v692, %v692
      %v710 = vpack.c.bf16 %v639, %v683
      %v711 = vpack.c.bf16 %v693, %v693
      %v712 = vpack.c.bf16 %v642, %v684
      %v713 = vpack.c.bf16 %v694, %v694
      %v714 = vpack.c.bf16 %v645, %v685
      %v715 = vpack.c.bf16 %v695, %v695
      %v716 = vld [vmem:[%s5] sm:$0xf]
      %v717 = vld [vmem:[%s5 + $0x4] sm:$0xf]
      %v718 = vld [vmem:[%s5 + $0x8] sm:$0xf]
      %v719 = vld [vmem:[%s5 + $0xc] sm:$0xf]
      %v720 = vld [vmem:[%s5 + $0x10] sm:$0xf]
      %v721 = vld [vmem:[%s5 + $0x14] sm:$0xf]
      %v722 = vld [vmem:[%s5 + $0x18] sm:$0xf]
      %v723 = vld [vmem:[%s5 + $0x1c] sm:$0xf]
      %v724 = vld [vmem:[%s5 + $0x20] sm:$0xf]
      %v725 = vld [vmem:[%s5 + $0x24] sm:$0xf]
      %v726 = vld [vmem:[%s5 + $0x28] sm:$0xf]
      %v727 = vld [vmem:[%s5 + $0x2c] sm:$0xf]
      %v728 = vld [vmem:[%s5 + $0x30] sm:$0xf]
      %v729 = vld [vmem:[%s5 + $0x34] sm:$0xf]
      %v730 = vld [vmem:[%s5 + $0x38] sm:$0xf]
      %v731 = vld [vmem:[%s5 + $0x3c] sm:$0xf]
      %vm732 = vsmask.f32 7424
      %v734 = vshrl.u32 %v696, 16
      %v736 = vshll.u32 %v696, 16
      %v738 = vrot.slane %v736, 1
      %v739 = vor.u32 %v734, %v738
      %v741 = vshll.u32 %v697, 16
      %v743 = vrot.slane %v741, 1
      %v744 = vsel %vm732, %v739, %v743
      %v746 = vshrl.u32 %v698, 16
      %v748 = vshll.u32 %v698, 16
      %v750 = vrot.slane %v748, 1
      %v751 = vor.u32 %v746, %v750
      %v753 = vshll.u32 %v699, 16
      %v755 = vrot.slane %v753, 1
      %v756 = vsel %vm732, %v751, %v755
      %v758 = vshrl.u32 %v700, 16
      %v760 = vshll.u32 %v700, 16
      %v762 = vrot.slane %v760, 1
      %v763 = vor.u32 %v758, %v762
      %v765 = vshll.u32 %v701, 16
      %v767 = vrot.slane %v765, 1
      %v768 = vsel %vm732, %v763, %v767
      %v770 = vshrl.u32 %v702, 16
      %v772 = vshll.u32 %v702, 16
      %v774 = vrot.slane %v772, 1
      %v775 = vor.u32 %v770, %v774
      %v777 = vshll.u32 %v703, 16
      %v779 = vrot.slane %v777, 1
      %v780 = vsel %vm732, %v775, %v779
      %v782 = vshrl.u32 %v704, 16
      %v784 = vshll.u32 %v704, 16
      %v786 = vrot.slane %v784, 1
      %v787 = vor.u32 %v782, %v786
      %v789 = vshll.u32 %v705, 16
      %v791 = vrot.slane %v789, 1
      %v792 = vsel %vm732, %v787, %v791
      %v794 = vshrl.u32 %v706, 16
      %v796 = vshll.u32 %v706, 16
      %v798 = vrot.slane %v796, 1
      %v799 = vor.u32 %v794, %v798
      %v801 = vshll.u32 %v707, 16
      %v803 = vrot.slane %v801, 1
      %v804 = vsel %vm732, %v799, %v803
      %v806 = vshrl.u32 %v708, 16
      %v808 = vshll.u32 %v708, 16
      %v810 = vrot.slane %v808, 1
      %v811 = vor.u32 %v806, %v810
      %v813 = vshll.u32 %v709, 16
      %v815 = vrot.slane %v813, 1
      %v816 = vsel %vm732, %v811, %v815
      %v818 = vshrl.u32 %v710, 16
      %v820 = vshll.u32 %v710, 16
      %v822 = vrot.slane %v820, 1
      %v823 = vor.u32 %v818, %v822
      %v825 = vshll.u32 %v711, 16
      %v827 = vrot.slane %v825, 1
      %v828 = vsel %vm732, %v823, %v827
      %s837 = scalar_lea.vmem %s5, 64
      %v838 = vld [vmem:[%s837] sm:$0xf]
      %v839 = vld [vmem:[%s837 + $0x4] sm:$0xf]
      %v840 = vld [vmem:[%s837 + $0x8] sm:$0xf]
      %v841 = vld [vmem:[%s837 + $0xc] sm:$0xf]
      %v842 = vld [vmem:[%s837 + $0x10] sm:$0xf]
      %v843 = vld [vmem:[%s837 + $0x14] sm:$0xf]
      %v844 = vld [vmem:[%s837 + $0x18] sm:$0xf]
      %v845 = vld [vmem:[%s837 + $0x1c] sm:$0xf]
      %v846 = vld [vmem:[%s837 + $0x20] sm:$0xf]
      %v847 = vld [vmem:[%s837 + $0x24] sm:$0xf]
      %v848 = vld [vmem:[%s837 + $0x28] sm:$0xf]
      %v849 = vld [vmem:[%s837 + $0x2c] sm:$0xf]
      %v850 = vld [vmem:[%s837 + $0x30] sm:$0xf]
      %v851 = vld [vmem:[%s837 + $0x34] sm:$0xf]
      %v852 = vld [vmem:[%s837 + $0x38] sm:$0xf]
      %v853 = vld [vmem:[%s837 + $0x3c] sm:$0xf]
      %v870 = vunpack.c.l.b16 %v838
      %v871 = vunpack.c.l.b16 %v839
      %v872 = vunpack.c.l.b16 %v840
      %v873 = vunpack.c.l.b16 %v841
      %v874 = vunpack.c.l.b16 %v842
      %v875 = vunpack.c.l.b16 %v843
      %v876 = vunpack.c.l.b16 %v844
      %v877 = vunpack.c.l.b16 %v845
      %v878 = vunpack.c.l.b16 %v846
      %v879 = vunpack.c.l.b16 %v847
      %v880 = vunpack.c.l.b16 %v848
      %v881 = vunpack.c.l.b16 %v849
      %v882 = vunpack.c.l.b16 %v850
      %v883 = vunpack.c.l.b16 %v851
      %v884 = vunpack.c.l.b16 %v852
      %v885 = vunpack.c.l.b16 %v853
      %v886 = vpack.c.b16 %v871, %v870
      %v887 = vpack.c.b16 %v873, %v872
      %v888 = vpack.c.b16 %v875, %v874
      %v889 = vpack.c.b16 %v877, %v876
      %v890 = vpack.c.b16 %v879, %v878
      %v891 = vpack.c.b16 %v881, %v880
      %v892 = vpack.c.b16 %v883, %v882
      %v893 = vpack.c.b16 %v885, %v884
      %902 = vmatprep.subr.bf16.mxu0 0
      %903 = vmatpush1.bf16.msra.mxu0 %v893
      %904 = vmatprep.subr.bf16.mxu0 0
      %905 = vmatpush1.bf16.msra.mxu0 %v892
      %906 = vmatprep.subr.bf16.mxu0 0
      %907 = vmatpush1.bf16.msra.mxu0 %v891
      %908 = vmatprep.subr.bf16.mxu0 0
      %909 = vmatpush1.bf16.msra.mxu0 %v890
      %910 = vmatprep.subr.bf16.mxu0 0
      %911 = vmatpush1.bf16.msra.mxu0 %v889
      %912 = vmatprep.subr.bf16.mxu0 0
      %913 = vmatpush1.bf16.msra.mxu0 %v888
      %914 = vmatprep.subr.bf16.mxu0 0
      %915 = vmatpush1.bf16.msra.mxu0 %v887
      %916 = vmatprep.subr.bf16.mxu0 0
      %917 = vmatpush1.bf16.msra.mxu0 %v886
      %918 = vmatprep.subr.bf16.mxu0 0
      %919 = vmatpush2.bf16.msra.mxu0 0
      %920 = vmatprep.subr.bf16.mxu0 0
      %921 = vmatpush2.bf16.msra.mxu0 0
      %922 = vmatprep.subr.bf16.mxu0 0
      %923 = vmatpush2.bf16.msra.mxu0 0
      %924 = vmatprep.subr.bf16.mxu0 0
      %925 = vmatpush2.bf16.msra.mxu0 0
      %926 = vmatprep.subr.bf16.mxu0 0
      %927 = vmatpush2.bf16.msra.mxu0 0
      %928 = vmatprep.subr.bf16.mxu0 0
      %929 = vmatpush2.bf16.msra.mxu0 0
      %930 = vmatprep.subr.bf16.mxu0 0
      %931 = vmatpush2.bf16.msra.mxu0 0
      %932 = vmatprep.subr.bf16.mxu0 0
      %933 = vmatpush2.bf16.msra.mxu0 0
      %934 = vmatprep.mubr.bf16.mxu0 0
      %935 = vmatmul.mubr.bf16.gmra.mxu0 %v744
      %v936 = vpop.f32.mrf.mxu0
      %v937 = vadd.f32 0.0, %v936
      %v938 = vpop.f32.mrf.mxu0
      %v939 = vpop.f32.mrf.mxu0
      %v940 = vadd.f32 0.0, %v939
      %v941 = vpop.f32.mrf.mxu0
      %942 = vmatprep.mubr.bf16.mxu0 0
      %943 = vmatmul.mubr.bf16.gmra.mxu0 %v756
      %v944 = vpop.f32.mrf.mxu0
      %v945 = vadd.f32 0.0, %v944
      %v946 = vpop.f32.mrf.mxu0
      %v947 = vpop.f32.mrf.mxu0
      %v948 = vadd.f32 0.0, %v947
      %v949 = vpop.f32.mrf.mxu0
      %950 = vmatprep.mubr.bf16.mxu0 0
      %951 = vmatmul.mubr.bf16.gmra.mxu0 %v768
      %v952 = vpop.f32.mrf.mxu0
      %v953 = vadd.f32 0.0, %v952
      %v954 = vpop.f32.mrf.mxu0
      %v955 = vpop.f32.mrf.mxu0
      %v956 = vadd.f32 0.0, %v955
      %v957 = vpop.f32.mrf.mxu0
      %958 = vmatprep.mubr.bf16.mxu0 0
      %959 = vmatmul.mubr.bf16.gmra.mxu0 %v780
      %v960 = vpop.f32.mrf.mxu0
      %v961 = vadd.f32 0.0, %v960
      %v962 = vpop.f32.mrf.mxu0
      %v963 = vpop.f32.mrf.mxu0
      %v964 = vadd.f32 0.0, %v963
      %v965 = vpop.f32.mrf.mxu0
      %966 = vmatprep.mubr.bf16.mxu0 0
      %967 = vmatmul.mubr.bf16.gmra.mxu0 %v792
      %v968 = vpop.f32.mrf.mxu0
      %v969 = vadd.f32 0.0, %v968
      %v970 = vpop.f32.mrf.mxu0
      %v971 = vpop.f32.mrf.mxu0
      %v972 = vadd.f32 0.0, %v971
      %v973 = vpop.f32.mrf.mxu0
      %974 = vmatprep.mubr.bf16.mxu0 0
      %975 = vmatmul.mubr.bf16.gmra.mxu0 %v804
      %v976 = vpop.f32.mrf.mxu0
      %v977 = vadd.f32 0.0, %v976
      %v978 = vpop.f32.mrf.mxu0
      %v979 = vpop.f32.mrf.mxu0
      %v980 = vadd.f32 0.0, %v979
      %v981 = vpop.f32.mrf.mxu0
      %982 = vmatprep.mubr.bf16.mxu0 0
      %983 = vmatmul.mubr.bf16.gmra.mxu0 %v816
      %v984 = vpop.f32.mrf.mxu0
      %v985 = vadd.f32 0.0, %v984
      %v986 = vpop.f32.mrf.mxu0
      %v987 = vpop.f32.mrf.mxu0
      %v988 = vadd.f32 0.0, %v987
      %v989 = vpop.f32.mrf.mxu0
      %990 = vmatprep.mubr.bf16.mxu0 0
      %991 = vmatmul.mubr.bf16.gmra.mxu0 %v828
      %v992 = vpop.f32.mrf.mxu0
      %v993 = vadd.f32 0.0, %v992
      %v994 = vpop.f32.mrf.mxu0
      %v995 = vpop.f32.mrf.mxu0
      %v996 = vadd.f32 0.0, %v995
      %v997 = vpop.f32.mrf.mxu0
      %998 = vdwg.mxu0
      %v1015 = vunpack.c.l.b16 %v716
      %v1016 = vunpack.c.l.b16 %v717
      %v1017 = vunpack.c.l.b16 %v718
      %v1018 = vunpack.c.l.b16 %v719
      %v1019 = vunpack.c.l.b16 %v720
      %v1020 = vunpack.c.l.b16 %v721
      %v1021 = vunpack.c.l.b16 %v722
      %v1022 = vunpack.c.l.b16 %v723
      %v1023 = vunpack.c.l.b16 %v724
      %v1024 = vunpack.c.l.b16 %v725
      %v1025 = vunpack.c.l.b16 %v726
      %v1026 = vunpack.c.l.b16 %v727
      %v1027 = vunpack.c.l.b16 %v728
      %v1028 = vunpack.c.l.b16 %v729
      %v1029 = vunpack.c.l.b16 %v730
      %v1030 = vunpack.c.l.b16 %v731
      %v1031 = vpack.c.b16 %v1016, %v1015
      %v1032 = vpack.c.b16 %v1018, %v1017
      %v1033 = vpack.c.b16 %v1020, %v1019
      %v1034 = vpack.c.b16 %v1022, %v1021
      %v1035 = vpack.c.b16 %v1024, %v1023
      %v1036 = vpack.c.b16 %v1026, %v1025
      %v1037 = vpack.c.b16 %v1028, %v1027
      %v1038 = vpack.c.b16 %v1030, %v1029
      %1047 = vmatprep.subr.bf16.mxu0 0
      %1048 = vmatpush1.bf16.msra.mxu0 %v1038
      %1049 = vmatprep.subr.bf16.mxu0 0
      %1050 = vmatpush1.bf16.msra.mxu0 %v1037
      %1051 = vmatprep.subr.bf16.mxu0 0
      %1052 = vmatpush1.bf16.msra.mxu0 %v1036
      %1053 = vmatprep.subr.bf16.mxu0 0
      %1054 = vmatpush1.bf16.msra.mxu0 %v1035
      %1055 = vmatprep.subr.bf16.mxu0 0
      %1056 = vmatpush1.bf16.msra.mxu0 %v1034
      %1057 = vmatprep.subr.bf16.mxu0 0
      %1058 = vmatpush1.bf16.msra.mxu0 %v1033
      %1059 = vmatprep.subr.bf16.mxu0 0
      %1060 = vmatpush1.bf16.msra.mxu0 %v1032
      %1061 = vmatprep.subr.bf16.mxu0 0
      %1062 = vmatpush1.bf16.msra.mxu0 %v1031
      %1063 = vmatprep.subr.bf16.mxu0 0
      %1064 = vmatpush2.bf16.msra.mxu0 0
      %1065 = vmatprep.subr.bf16.mxu0 0
      %1066 = vmatpush2.bf16.msra.mxu0 0
      %1067 = vmatprep.subr.bf16.mxu0 0
      %1068 = vmatpush2.bf16.msra.mxu0 0
      %1069 = vmatprep.subr.bf16.mxu0 0
      %1070 = vmatpush2.bf16.msra.mxu0 0
      %1071 = vmatprep.subr.bf16.mxu0 0
      %1072 = vmatpush2.bf16.msra.mxu0 0
      %1073 = vmatprep.subr.bf16.mxu0 0
      %1074 = vmatpush2.bf16.msra.mxu0 0
      %1075 = vmatprep.subr.bf16.mxu0 0
      %1076 = vmatpush2.bf16.msra.mxu0 0
      %1077 = vmatprep.subr.bf16.mxu0 0
      %1078 = vmatpush2.bf16.msra.mxu0 0
      %1079 = vmatprep.mubr.bf16.mxu0 0
      %1080 = vmatmul.mubr.bf16.gmra.mxu0 %v696
      %v1081 = vpop.f32.mrf.mxu0
      %v1082 = vadd.f32 %v937, %v1081
      %v1083 = vpop.f32.mrf.mxu0
      %v1084 = vpop.f32.mrf.mxu0
      %v1085 = vadd.f32 %v940, %v1084
      %v1086 = vpop.f32.mrf.mxu0
      %1087 = vmatprep.mubr.bf16.mxu0 0
      %1088 = vmatmul.mubr.bf16.gmra.mxu0 %v698
      %v1089 = vpop.f32.mrf.mxu0
      %v1090 = vadd.f32 %v945, %v1089
      %v1091 = vpop.f32.mrf.mxu0
      %v1092 = vpop.f32.mrf.mxu0
      %v1093 = vadd.f32 %v948, %v1092
      %v1094 = vpop.f32.mrf.mxu0
      %1095 = vmatprep.mubr.bf16.mxu0 0
      %1096 = vmatmul.mubr.bf16.gmra.mxu0 %v700
      %v1097 = vpop.f32.mrf.mxu0
      %v1098 = vadd.f32 %v953, %v1097
      %v1099 = vpop.f32.mrf.mxu0
      %v1100 = vpop.f32.mrf.mxu0
      %v1101 = vadd.f32 %v956, %v1100
      %v1102 = vpop.f32.mrf.mxu0
      %1103 = vmatprep.mubr.bf16.mxu0 0
      %1104 = vmatmul.mubr.bf16.gmra.mxu0 %v702
      %v1105 = vpop.f32.mrf.mxu0
      %v1106 = vadd.f32 %v961, %v1105
      %v1107 = vpop.f32.mrf.mxu0
      %v1108 = vpop.f32.mrf.mxu0
      %v1109 = vadd.f32 %v964, %v1108
      %v1110 = vpop.f32.mrf.mxu0
      %1111 = vmatprep.mubr.bf16.mxu0 0
      %1112 = vmatmul.mubr.bf16.gmra.mxu0 %v704
      %v1113 = vpop.f32.mrf.mxu0
      %v1114 = vadd.f32 %v969, %v1113
      %v1115 = vpop.f32.mrf.mxu0
      %v1116 = vpop.f32.mrf.mxu0
      %v1117 = vadd.f32 %v972, %v1116
      %v1118 = vpop.f32.mrf.mxu0
      %1119 = vmatprep.mubr.bf16.mxu0 0
      %1120 = vmatmul.mubr.bf16.gmra.mxu0 %v706
      %v1121 = vpop.f32.mrf.mxu0
      %v1122 = vadd.f32 %v977, %v1121
      %v1123 = vpop.f32.mrf.mxu0
      %v1124 = vpop.f32.mrf.mxu0
      %v1125 = vadd.f32 %v980, %v1124
      %v1126 = vpop.f32.mrf.mxu0
      %1127 = vmatprep.mubr.bf16.mxu0 0
      %1128 = vmatmul.mubr.bf16.gmra.mxu0 %v708
      %v1129 = vpop.f32.mrf.mxu0
      %v1130 = vadd.f32 %v985, %v1129
      %v1131 = vpop.f32.mrf.mxu0
      %v1132 = vpop.f32.mrf.mxu0
      %v1133 = vadd.f32 %v988, %v1132
      %v1134 = vpop.f32.mrf.mxu0
      %1135 = vmatprep.mubr.bf16.mxu0 0
      %1136 = vmatmul.mubr.bf16.gmra.mxu0 %v710
      %v1137 = vpop.f32.mrf.mxu0
      %v1138 = vadd.f32 %v993, %v1137
      %v1139 = vpop.f32.mrf.mxu0
      %v1140 = vpop.f32.mrf.mxu0
      %v1141 = vadd.f32 %v996, %v1140
      %v1142 = vpop.f32.mrf.mxu0
      %1143 = vdwg.mxu0
      %vm1160 = vcmask 1046528
      %v1161 = vrot.slane %v696, 1
      %v1162 = vrot.slane %v697, 1
      %v1163 = vsel %vm1160, %v1161, %v1162
      %v1164 = vrot.slane %v698, 1
      %v1165 = vrot.slane %v699, 1
      %v1166 = vsel %vm1160, %v1164, %v1165
      %v1167 = vrot.slane %v700, 1
      %v1168 = vrot.slane %v701, 1
      %v1169 = vsel %vm1160, %v1167, %v1168
      %v1170 = vrot.slane %v702, 1
      %v1171 = vrot.slane %v703, 1
      %v1172 = vsel %vm1160, %v1170, %v1171
      %v1173 = vrot.slane %v704, 1
      %v1174 = vrot.slane %v705, 1
      %v1175 = vsel %vm1160, %v1173, %v1174
      %v1176 = vrot.slane %v706, 1
      %v1177 = vrot.slane %v707, 1
      %v1178 = vsel %vm1160, %v1176, %v1177
      %v1179 = vrot.slane %v708, 1
      %v1180 = vrot.slane %v709, 1
      %v1181 = vsel %vm1160, %v1179, %v1180
      %v1182 = vrot.slane %v710, 1
      %v1183 = vrot.slane %v711, 1
      %v1184 = vsel %vm1160, %v1182, %v1183
      %s1193 = scalar_lea.vmem %s5, 128
      %v1194 = vld [vmem:[%s1193] sm:$0xf]
      %v1195 = vld [vmem:[%s1193 + $0x4] sm:$0xf]
      %v1196 = vld [vmem:[%s1193 + $0x8] sm:$0xf]
      %v1197 = vld [vmem:[%s1193 + $0xc] sm:$0xf]
      %v1198 = vld [vmem:[%s1193 + $0x10] sm:$0xf]
      %v1199 = vld [vmem:[%s1193 + $0x14] sm:$0xf]
      %v1200 = vld [vmem:[%s1193 + $0x18] sm:$0xf]
      %v1201 = vld [vmem:[%s1193 + $0x1c] sm:$0xf]
      %v1202 = vld [vmem:[%s1193 + $0x20] sm:$0xf]
      %v1203 = vld [vmem:[%s1193 + $0x24] sm:$0xf]
      %v1204 = vld [vmem:[%s1193 + $0x28] sm:$0xf]
      %v1205 = vld [vmem:[%s1193 + $0x2c] sm:$0xf]
      %v1206 = vld [vmem:[%s1193 + $0x30] sm:$0xf]
      %v1207 = vld [vmem:[%s1193 + $0x34] sm:$0xf]
      %v1208 = vld [vmem:[%s1193 + $0x38] sm:$0xf]
      %v1209 = vld [vmem:[%s1193 + $0x3c] sm:$0xf]
      %v1226 = vunpack.c.l.b16 %v1194
      %v1227 = vunpack.c.l.b16 %v1195
      %v1228 = vunpack.c.l.b16 %v1196
      %v1229 = vunpack.c.l.b16 %v1197
      %v1230 = vunpack.c.l.b16 %v1198
      %v1231 = vunpack.c.l.b16 %v1199
      %v1232 = vunpack.c.l.b16 %v1200
      %v1233 = vunpack.c.l.b16 %v1201
      %v1234 = vunpack.c.l.b16 %v1202
      %v1235 = vunpack.c.l.b16 %v1203
      %v1236 = vunpack.c.l.b16 %v1204
      %v1237 = vunpack.c.l.b16 %v1205
      %v1238 = vunpack.c.l.b16 %v1206
      %v1239 = vunpack.c.l.b16 %v1207
      %v1240 = vunpack.c.l.b16 %v1208
      %v1241 = vunpack.c.l.b16 %v1209
      %v1242 = vpack.c.b16 %v1227, %v1226
      %v1243 = vpack.c.b16 %v1229, %v1228
      %v1244 = vpack.c.b16 %v1231, %v1230
      %v1245 = vpack.c.b16 %v1233, %v1232
      %v1246 = vpack.c.b16 %v1235, %v1234
      %v1247 = vpack.c.b16 %v1237, %v1236
      %v1248 = vpack.c.b16 %v1239, %v1238
      %v1249 = vpack.c.b16 %v1241, %v1240
      %1258 = vmatprep.subr.bf16.mxu0 0
      %1259 = vmatpush1.bf16.msra.mxu0 %v1249
      %1260 = vmatprep.subr.bf16.mxu0 0
      %1261 = vmatpush1.bf16.msra.mxu0 %v1248
      %1262 = vmatprep.subr.bf16.mxu0 0
      %1263 = vmatpush1.bf16.msra.mxu0 %v1247
      %1264 = vmatprep.subr.bf16.mxu0 0
      %1265 = vmatpush1.bf16.msra.mxu0 %v1246
      %1266 = vmatprep.subr.bf16.mxu0 0
      %1267 = vmatpush1.bf16.msra.mxu0 %v1245
      %1268 = vmatprep.subr.bf16.mxu0 0
      %1269 = vmatpush1.bf16.msra.mxu0 %v1244
      %1270 = vmatprep.subr.bf16.mxu0 0
      %1271 = vmatpush1.bf16.msra.mxu0 %v1243
      %1272 = vmatprep.subr.bf16.mxu0 0
      %1273 = vmatpush1.bf16.msra.mxu0 %v1242
      %1274 = vmatprep.subr.bf16.mxu0 0
      %1275 = vmatpush2.bf16.msra.mxu0 0
      %1276 = vmatprep.subr.bf16.mxu0 0
      %1277 = vmatpush2.bf16.msra.mxu0 0
      %1278 = vmatprep.subr.bf16.mxu0 0
      %1279 = vmatpush2.bf16.msra.mxu0 0
      %1280 = vmatprep.subr.bf16.mxu0 0
      %1281 = vmatpush2.bf16.msra.mxu0 0
      %1282 = vmatprep.subr.bf16.mxu0 0
      %1283 = vmatpush2.bf16.msra.mxu0 0
      %1284 = vmatprep.subr.bf16.mxu0 0
      %1285 = vmatpush2.bf16.msra.mxu0 0
      %1286 = vmatprep.subr.bf16.mxu0 0
      %1287 = vmatpush2.bf16.msra.mxu0 0
      %1288 = vmatprep.subr.bf16.mxu0 0
      %1289 = vmatpush2.bf16.msra.mxu0 0
      %1290 = vmatprep.mubr.bf16.mxu0 0
      %1291 = vmatmul.mubr.bf16.gmra.mxu0 %v1163
      %v1292 = vpop.f32.mrf.mxu0
      %v1293 = vadd.f32 0.0, %v1292
      %v1294 = vpop.f32.mrf.mxu0
      %v1295 = vpop.f32.mrf.mxu0
      %v1296 = vadd.f32 0.0, %v1295
      %v1297 = vpop.f32.mrf.mxu0
      %1298 = vmatprep.mubr.bf16.mxu0 0
      %1299 = vmatmul.mubr.bf16.gmra.mxu0 %v1166
      %v1300 = vpop.f32.mrf.mxu0
      %v1301 = vadd.f32 0.0, %v1300
      %v1302 = vpop.f32.mrf.mxu0
      %v1303 = vpop.f32.mrf.mxu0
      %v1304 = vadd.f32 0.0, %v1303
      %v1305 = vpop.f32.mrf.mxu0
      %1306 = vmatprep.mubr.bf16.mxu0 0
      %1307 = vmatmul.mubr.bf16.gmra.mxu0 %v1169
      %v1308 = vpop.f32.mrf.mxu0
      %v1309 = vadd.f32 0.0, %v1308
      %v1310 = vpop.f32.mrf.mxu0
      %v1311 = vpop.f32.mrf.mxu0
      %v1312 = vadd.f32 0.0, %v1311
      %v1313 = vpop.f32.mrf.mxu0
      %1314 = vmatprep.mubr.bf16.mxu0 0
      %1315 = vmatmul.mubr.bf16.gmra.mxu0 %v1172
      %v1316 = vpop.f32.mrf.mxu0
      %v1317 = vadd.f32 0.0, %v1316
      %v1318 = vpop.f32.mrf.mxu0
      %v1319 = vpop.f32.mrf.mxu0
      %v1320 = vadd.f32 0.0, %v1319
      %v1321 = vpop.f32.mrf.mxu0
      %1322 = vmatprep.mubr.bf16.mxu0 0
      %1323 = vmatmul.mubr.bf16.gmra.mxu0 %v1175
      %v1324 = vpop.f32.mrf.mxu0
      %v1325 = vadd.f32 0.0, %v1324
      %v1326 = vpop.f32.mrf.mxu0
      %v1327 = vpop.f32.mrf.mxu0
      %v1328 = vadd.f32 0.0, %v1327
      %v1329 = vpop.f32.mrf.mxu0
      %1330 = vmatprep.mubr.bf16.mxu0 0
      %1331 = vmatmul.mubr.bf16.gmra.mxu0 %v1178
      %v1332 = vpop.f32.mrf.mxu0
      %v1333 = vadd.f32 0.0, %v1332
      %v1334 = vpop.f32.mrf.mxu0
      %v1335 = vpop.f32.mrf.mxu0
      %v1336 = vadd.f32 0.0, %v1335
      %v1337 = vpop.f32.mrf.mxu0
      %1338 = vmatprep.mubr.bf16.mxu0 0
      %1339 = vmatmul.mubr.bf16.gmra.mxu0 %v1181
      %v1340 = vpop.f32.mrf.mxu0
      %v1341 = vadd.f32 0.0, %v1340
      %v1342 = vpop.f32.mrf.mxu0
      %v1343 = vpop.f32.mrf.mxu0
      %v1344 = vadd.f32 0.0, %v1343
      %v1345 = vpop.f32.mrf.mxu0
      %1346 = vmatprep.mubr.bf16.mxu0 0
      %1347 = vmatmul.mubr.bf16.gmra.mxu0 %v1184
      %v1348 = vpop.f32.mrf.mxu0
      %v1349 = vadd.f32 0.0, %v1348
      %v1350 = vpop.f32.mrf.mxu0
      %v1351 = vpop.f32.mrf.mxu0
      %v1352 = vadd.f32 0.0, %v1351
      %v1353 = vpop.f32.mrf.mxu0
      %1354 = vdwg.mxu0
      %v1355 = vadd.f32 %v1082, %v1293
      %v1356 = vadd.f32 %v1085, %v1296
      %v1357 = vadd.f32 %v1090, %v1301
      %v1358 = vadd.f32 %v1093, %v1304
      %v1359 = vadd.f32 %v1098, %v1309
      %v1360 = vadd.f32 %v1101, %v1312
      %v1361 = vadd.f32 %v1106, %v1317
      %v1362 = vadd.f32 %v1109, %v1320
      %v1363 = vadd.f32 %v1114, %v1325
      %v1364 = vadd.f32 %v1117, %v1328
      %v1365 = vadd.f32 %v1122, %v1333
      %v1366 = vadd.f32 %v1125, %v1336
      %v1367 = vadd.f32 %v1130, %v1341
      %v1368 = vadd.f32 %v1133, %v1344
      %v1369 = vadd.f32 %v1138, %v1349
      %v1370 = vadd.f32 %v1141, %v1352
      %s1371 = scalar_lea.vmem %s5, 192
      %v1372 = vld [vmem:[%s1371] sm:$0xf]
      %v1373 = vld [vmem:[%s1371 + $0x4] sm:$0xf]
      %v1374 = vld [vmem:[%s1371 + $0x8] sm:$0xf]
      %v1375 = vld [vmem:[%s1371 + $0xc] sm:$0xf]
      %v1376 = vld [vmem:[%s1371 + $0x10] sm:$0xf]
      %v1377 = vld [vmem:[%s1371 + $0x14] sm:$0xf]
      %v1378 = vld [vmem:[%s1371 + $0x18] sm:$0xf]
      %v1379 = vld [vmem:[%s1371 + $0x1c] sm:$0xf]
      %v1380 = vld [vmem:[%s1371 + $0x20] sm:$0xf]
      %v1381 = vld [vmem:[%s1371 + $0x24] sm:$0xf]
      %v1382 = vld [vmem:[%s1371 + $0x28] sm:$0xf]
      %v1383 = vld [vmem:[%s1371 + $0x2c] sm:$0xf]
      %v1384 = vld [vmem:[%s1371 + $0x30] sm:$0xf]
      %v1385 = vld [vmem:[%s1371 + $0x34] sm:$0xf]
      %v1386 = vld [vmem:[%s1371 + $0x38] sm:$0xf]
      %v1387 = vld [vmem:[%s1371 + $0x3c] sm:$0xf]
      %v1404 = vunpack.c.l.b16 %v1372
      %v1405 = vunpack.c.l.b16 %v1373
      %v1406 = vunpack.c.l.b16 %v1374
      %v1407 = vunpack.c.l.b16 %v1375
      %v1408 = vunpack.c.l.b16 %v1376
      %v1409 = vunpack.c.l.b16 %v1377
      %v1410 = vunpack.c.l.b16 %v1378
      %v1411 = vunpack.c.l.b16 %v1379
      %v1412 = vunpack.c.l.b16 %v1380
      %v1413 = vunpack.c.l.b16 %v1381
      %v1414 = vunpack.c.l.b16 %v1382
      %v1415 = vunpack.c.l.b16 %v1383
      %v1416 = vunpack.c.l.b16 %v1384
      %v1417 = vunpack.c.l.b16 %v1385
      %v1418 = vunpack.c.l.b16 %v1386
      %v1419 = vunpack.c.l.b16 %v1387
      %v1420 = vpack.c.b16 %v1405, %v1404
      %v1421 = vpack.c.b16 %v1407, %v1406
      %v1422 = vpack.c.b16 %v1409, %v1408
      %v1423 = vpack.c.b16 %v1411, %v1410
      %v1424 = vpack.c.b16 %v1413, %v1412
      %v1425 = vpack.c.b16 %v1415, %v1414
      %v1426 = vpack.c.b16 %v1417, %v1416
      %v1427 = vpack.c.b16 %v1419, %v1418
      %1436 = vmatprep.subr.bf16.mxu0 0
      %1437 = vmatpush1.bf16.msra.mxu0 %v1427
      %1438 = vmatprep.subr.bf16.mxu0 0
      %1439 = vmatpush1.bf16.msra.mxu0 %v1426
      %1440 = vmatprep.subr.bf16.mxu0 0
      %1441 = vmatpush1.bf16.msra.mxu0 %v1425
      %1442 = vmatprep.subr.bf16.mxu0 0
      %1443 = vmatpush1.bf16.msra.mxu0 %v1424
      %1444 = vmatprep.subr.bf16.mxu0 0
      %1445 = vmatpush1.bf16.msra.mxu0 %v1423
      %1446 = vmatprep.subr.bf16.mxu0 0
      %1447 = vmatpush1.bf16.msra.mxu0 %v1422
      %1448 = vmatprep.subr.bf16.mxu0 0
      %1449 = vmatpush1.bf16.msra.mxu0 %v1421
      %1450 = vmatprep.subr.bf16.mxu0 0
      %1451 = vmatpush1.bf16.msra.mxu0 %v1420
      %1452 = vmatprep.subr.bf16.mxu0 0
      %1453 = vmatpush2.bf16.msra.mxu0 0
      %1454 = vmatprep.subr.bf16.mxu0 0
      %1455 = vmatpush2.bf16.msra.mxu0 0
      %1456 = vmatprep.subr.bf16.mxu0 0
      %1457 = vmatpush2.bf16.msra.mxu0 0
      %1458 = vmatprep.subr.bf16.mxu0 0
      %1459 = vmatpush2.bf16.msra.mxu0 0
      %1460 = vmatprep.subr.bf16.mxu0 0
      %1461 = vmatpush2.bf16.msra.mxu0 0
      %1462 = vmatprep.subr.bf16.mxu0 0
      %1463 = vmatpush2.bf16.msra.mxu0 0
      %1464 = vmatprep.subr.bf16.mxu0 0
      %1465 = vmatpush2.bf16.msra.mxu0 0
      %1466 = vmatprep.subr.bf16.mxu0 0
      %1467 = vmatpush2.bf16.msra.mxu0 0
      %1468 = vmatprep.mubr.bf16.mxu0 0
      %1469 = vmatmul.mubr.bf16.gmra.mxu0 %v698
      %v1470 = vpop.f32.mrf.mxu0
      %v1471 = vadd.f32 0.0, %v1470
      %v1472 = vpop.f32.mrf.mxu0
      %v1473 = vpop.f32.mrf.mxu0
      %v1474 = vadd.f32 0.0, %v1473
      %v1475 = vpop.f32.mrf.mxu0
      %1476 = vmatprep.mubr.bf16.mxu0 0
      %1477 = vmatmul.mubr.bf16.gmra.mxu0 %v700
      %v1478 = vpop.f32.mrf.mxu0
      %v1479 = vadd.f32 0.0, %v1478
      %v1480 = vpop.f32.mrf.mxu0
      %v1481 = vpop.f32.mrf.mxu0
      %v1482 = vadd.f32 0.0, %v1481
      %v1483 = vpop.f32.mrf.mxu0
      %1484 = vmatprep.mubr.bf16.mxu0 0
      %1485 = vmatmul.mubr.bf16.gmra.mxu0 %v702
      %v1486 = vpop.f32.mrf.mxu0
      %v1487 = vadd.f32 0.0, %v1486
      %v1488 = vpop.f32.mrf.mxu0
      %v1489 = vpop.f32.mrf.mxu0
      %v1490 = vadd.f32 0.0, %v1489
      %v1491 = vpop.f32.mrf.mxu0
      %1492 = vmatprep.mubr.bf16.mxu0 0
      %1493 = vmatmul.mubr.bf16.gmra.mxu0 %v704
      %v1494 = vpop.f32.mrf.mxu0
      %v1495 = vadd.f32 0.0, %v1494
      %v1496 = vpop.f32.mrf.mxu0
      %v1497 = vpop.f32.mrf.mxu0
      %v1498 = vadd.f32 0.0, %v1497
      %v1499 = vpop.f32.mrf.mxu0
      %1500 = vmatprep.mubr.bf16.mxu0 0
      %1501 = vmatmul.mubr.bf16.gmra.mxu0 %v706
      %v1502 = vpop.f32.mrf.mxu0
      %v1503 = vadd.f32 0.0, %v1502
      %v1504 = vpop.f32.mrf.mxu0
      %v1505 = vpop.f32.mrf.mxu0
      %v1506 = vadd.f32 0.0, %v1505
      %v1507 = vpop.f32.mrf.mxu0
      %1508 = vmatprep.mubr.bf16.mxu0 0
      %1509 = vmatmul.mubr.bf16.gmra.mxu0 %v708
      %v1510 = vpop.f32.mrf.mxu0
      %v1511 = vadd.f32 0.0, %v1510
      %v1512 = vpop.f32.mrf.mxu0
      %v1513 = vpop.f32.mrf.mxu0
      %v1514 = vadd.f32 0.0, %v1513
      %v1515 = vpop.f32.mrf.mxu0
      %1516 = vmatprep.mubr.bf16.mxu0 0
      %1517 = vmatmul.mubr.bf16.gmra.mxu0 %v710
      %v1518 = vpop.f32.mrf.mxu0
      %v1519 = vadd.f32 0.0, %v1518
      %v1520 = vpop.f32.mrf.mxu0
      %v1521 = vpop.f32.mrf.mxu0
      %v1522 = vadd.f32 0.0, %v1521
      %v1523 = vpop.f32.mrf.mxu0
      %1524 = vmatprep.mubr.bf16.mxu0 0
      %1525 = vmatmul.mubr.bf16.gmra.mxu0 %v712
      %v1526 = vpop.f32.mrf.mxu0
      %v1527 = vadd.f32 0.0, %v1526
      %v1528 = vpop.f32.mrf.mxu0
      %v1529 = vpop.f32.mrf.mxu0
      %v1530 = vadd.f32 0.0, %v1529
      %v1531 = vpop.f32.mrf.mxu0
      %1532 = vdwg.mxu0
      %v1533 = vadd.f32 %v1355, %v1471
      %v1534 = vadd.f32 %v1356, %v1474
      %v1535 = vadd.f32 %v1357, %v1479
      %v1536 = vadd.f32 %v1358, %v1482
      %v1537 = vadd.f32 %v1359, %v1487
      %v1538 = vadd.f32 %v1360, %v1490
      %v1539 = vadd.f32 %v1361, %v1495
      %v1540 = vadd.f32 %v1362, %v1498
      %v1541 = vadd.f32 %v1363, %v1503
      %v1542 = vadd.f32 %v1364, %v1506
      %v1543 = vadd.f32 %v1365, %v1511
      %v1544 = vadd.f32 %v1366, %v1514
      %v1545 = vadd.f32 %v1367, %v1519
      %v1546 = vadd.f32 %v1368, %v1522
      %v1547 = vadd.f32 %v1369, %v1527
      %v1548 = vadd.f32 %v1370, %v1530
      %v1550 = vshrl.u32 %v712, 16
      %v1552 = vshll.u32 %v712, 16
      %v1554 = vrot.slane %v1552, 1
      %v1555 = vor.u32 %v1550, %v1554
      %v1557 = vshll.u32 %v713, 16
      %v1559 = vrot.slane %v1557, 1
      %v1560 = vsel %vm732, %v1555, %v1559
      %s1562 = scalar_lea.vmem %s5, 256
      %v1563 = vld [vmem:[%s1562] sm:$0xf]
      %v1564 = vld [vmem:[%s1562 + $0x4] sm:$0xf]
      %v1565 = vld [vmem:[%s1562 + $0x8] sm:$0xf]
      %v1566 = vld [vmem:[%s1562 + $0xc] sm:$0xf]
      %v1567 = vld [vmem:[%s1562 + $0x10] sm:$0xf]
      %v1568 = vld [vmem:[%s1562 + $0x14] sm:$0xf]
      %v1569 = vld [vmem:[%s1562 + $0x18] sm:$0xf]
      %v1570 = vld [vmem:[%s1562 + $0x1c] sm:$0xf]
      %v1571 = vld [vmem:[%s1562 + $0x20] sm:$0xf]
      %v1572 = vld [vmem:[%s1562 + $0x24] sm:$0xf]
      %v1573 = vld [vmem:[%s1562 + $0x28] sm:$0xf]
      %v1574 = vld [vmem:[%s1562 + $0x2c] sm:$0xf]
      %v1575 = vld [vmem:[%s1562 + $0x30] sm:$0xf]
      %v1576 = vld [vmem:[%s1562 + $0x34] sm:$0xf]
      %v1577 = vld [vmem:[%s1562 + $0x38] sm:$0xf]
      %v1578 = vld [vmem:[%s1562 + $0x3c] sm:$0xf]
      %v1595 = vunpack.c.l.b16 %v1563
      %v1596 = vunpack.c.l.b16 %v1564
      %v1597 = vunpack.c.l.b16 %v1565
      %v1598 = vunpack.c.l.b16 %v1566
      %v1599 = vunpack.c.l.b16 %v1567
      %v1600 = vunpack.c.l.b16 %v1568
      %v1601 = vunpack.c.l.b16 %v1569
      %v1602 = vunpack.c.l.b16 %v1570
      %v1603 = vunpack.c.l.b16 %v1571
      %v1604 = vunpack.c.l.b16 %v1572
      %v1605 = vunpack.c.l.b16 %v1573
      %v1606 = vunpack.c.l.b16 %v1574
      %v1607 = vunpack.c.l.b16 %v1575
      %v1608 = vunpack.c.l.b16 %v1576
      %v1609 = vunpack.c.l.b16 %v1577
      %v1610 = vunpack.c.l.b16 %v1578
      %v1611 = vpack.c.b16 %v1596, %v1595
      %v1612 = vpack.c.b16 %v1598, %v1597
      %v1613 = vpack.c.b16 %v1600, %v1599
      %v1614 = vpack.c.b16 %v1602, %v1601
      %v1615 = vpack.c.b16 %v1604, %v1603
      %v1616 = vpack.c.b16 %v1606, %v1605
      %v1617 = vpack.c.b16 %v1608, %v1607
      %v1618 = vpack.c.b16 %v1610, %v1609
      %1627 = vmatprep.subr.bf16.mxu0 0
      %1628 = vmatpush1.bf16.msra.mxu0 %v1618
      %1629 = vmatprep.subr.bf16.mxu0 0
      %1630 = vmatpush1.bf16.msra.mxu0 %v1617
      %1631 = vmatprep.subr.bf16.mxu0 0
      %1632 = vmatpush1.bf16.msra.mxu0 %v1616
      %1633 = vmatprep.subr.bf16.mxu0 0
      %1634 = vmatpush1.bf16.msra.mxu0 %v1615
      %1635 = vmatprep.subr.bf16.mxu0 0
      %1636 = vmatpush1.bf16.msra.mxu0 %v1614
      %1637 = vmatprep.subr.bf16.mxu0 0
      %1638 = vmatpush1.bf16.msra.mxu0 %v1613
      %1639 = vmatprep.subr.bf16.mxu0 0
      %1640 = vmatpush1.bf16.msra.mxu0 %v1612
      %1641 = vmatprep.subr.bf16.mxu0 0
      %1642 = vmatpush1.bf16.msra.mxu0 %v1611
      %1643 = vmatprep.subr.bf16.mxu0 0
      %1644 = vmatpush2.bf16.msra.mxu0 0
      %1645 = vmatprep.subr.bf16.mxu0 0
      %1646 = vmatpush2.bf16.msra.mxu0 0
      %1647 = vmatprep.subr.bf16.mxu0 0
      %1648 = vmatpush2.bf16.msra.mxu0 0
      %1649 = vmatprep.subr.bf16.mxu0 0
      %1650 = vmatpush2.bf16.msra.mxu0 0
      %1651 = vmatprep.subr.bf16.mxu0 0
      %1652 = vmatpush2.bf16.msra.mxu0 0
      %1653 = vmatprep.subr.bf16.mxu0 0
      %1654 = vmatpush2.bf16.msra.mxu0 0
      %1655 = vmatprep.subr.bf16.mxu0 0
      %1656 = vmatpush2.bf16.msra.mxu0 0
      %1657 = vmatprep.subr.bf16.mxu0 0
      %1658 = vmatpush2.bf16.msra.mxu0 0
      %1659 = vmatprep.mubr.bf16.mxu0 0
      %1660 = vmatmul.mubr.bf16.gmra.mxu0 %v756
      %v1661 = vpop.f32.mrf.mxu0
      %v1662 = vadd.f32 0.0, %v1661
      %v1663 = vpop.f32.mrf.mxu0
      %v1664 = vpop.f32.mrf.mxu0
      %v1665 = vadd.f32 0.0, %v1664
      %v1666 = vpop.f32.mrf.mxu0
      %1667 = vmatprep.mubr.bf16.mxu0 0
      %1668 = vmatmul.mubr.bf16.gmra.mxu0 %v768
      %v1669 = vpop.f32.mrf.mxu0
      %v1670 = vadd.f32 0.0, %v1669
      %v1671 = vpop.f32.mrf.mxu0
      %v1672 = vpop.f32.mrf.mxu0
      %v1673 = vadd.f32 0.0, %v1672
      %v1674 = vpop.f32.mrf.mxu0
      %1675 = vmatprep.mubr.bf16.mxu0 0
      %1676 = vmatmul.mubr.bf16.gmra.mxu0 %v780
      %v1677 = vpop.f32.mrf.mxu0
      %v1678 = vadd.f32 0.0, %v1677
      %v1679 = vpop.f32.mrf.mxu0
      %v1680 = vpop.f32.mrf.mxu0
      %v1681 = vadd.f32 0.0, %v1680
      %v1682 = vpop.f32.mrf.mxu0
      %1683 = vmatprep.mubr.bf16.mxu0 0
      %1684 = vmatmul.mubr.bf16.gmra.mxu0 %v792
      %v1685 = vpop.f32.mrf.mxu0
      %v1686 = vadd.f32 0.0, %v1685
      %v1687 = vpop.f32.mrf.mxu0
      %v1688 = vpop.f32.mrf.mxu0
      %v1689 = vadd.f32 0.0, %v1688
      %v1690 = vpop.f32.mrf.mxu0
      %1691 = vmatprep.mubr.bf16.mxu0 0
      %1692 = vmatmul.mubr.bf16.gmra.mxu0 %v804
      %v1693 = vpop.f32.mrf.mxu0
      %v1694 = vadd.f32 0.0, %v1693
      %v1695 = vpop.f32.mrf.mxu0
      %v1696 = vpop.f32.mrf.mxu0
      %v1697 = vadd.f32 0.0, %v1696
      %v1698 = vpop.f32.mrf.mxu0
      %1699 = vmatprep.mubr.bf16.mxu0 0
      %1700 = vmatmul.mubr.bf16.gmra.mxu0 %v816
      %v1701 = vpop.f32.mrf.mxu0
      %v1702 = vadd.f32 0.0, %v1701
      %v1703 = vpop.f32.mrf.mxu0
      %v1704 = vpop.f32.mrf.mxu0
      %v1705 = vadd.f32 0.0, %v1704
      %v1706 = vpop.f32.mrf.mxu0
      %1707 = vmatprep.mubr.bf16.mxu0 0
      %1708 = vmatmul.mubr.bf16.gmra.mxu0 %v828
      %v1709 = vpop.f32.mrf.mxu0
      %v1710 = vadd.f32 0.0, %v1709
      %v1711 = vpop.f32.mrf.mxu0
      %v1712 = vpop.f32.mrf.mxu0
      %v1713 = vadd.f32 0.0, %v1712
      %v1714 = vpop.f32.mrf.mxu0
      %1715 = vmatprep.mubr.bf16.mxu0 0
      %1716 = vmatmul.mubr.bf16.gmra.mxu0 %v1560
      %v1717 = vpop.f32.mrf.mxu0
      %v1718 = vadd.f32 0.0, %v1717
      %v1719 = vpop.f32.mrf.mxu0
      %v1720 = vpop.f32.mrf.mxu0
      %v1721 = vadd.f32 0.0, %v1720
      %v1722 = vpop.f32.mrf.mxu0
      %1723 = vdwg.mxu0
      %v1724 = vadd.f32 %v1533, %v1662
      %v1725 = vadd.f32 %v1534, %v1665
      %v1726 = vadd.f32 %v1535, %v1670
      %v1727 = vadd.f32 %v1536, %v1673
      %v1728 = vadd.f32 %v1537, %v1678
      %v1729 = vadd.f32 %v1538, %v1681
      %v1730 = vadd.f32 %v1539, %v1686
      %v1731 = vadd.f32 %v1540, %v1689
      %v1732 = vadd.f32 %v1541, %v1694
      %v1733 = vadd.f32 %v1542, %v1697
      %v1734 = vadd.f32 %v1543, %v1702
      %v1735 = vadd.f32 %v1544, %v1705
      %v1736 = vadd.f32 %v1545, %v1710
      %v1737 = vadd.f32 %v1546, %v1713
      %v1738 = vadd.f32 %v1547, %v1718
      %v1739 = vadd.f32 %v1548, %v1721
      %v1742 = vrot.slane %v712, 1
      %v1743 = vrot.slane %v713, 1
      %v1744 = vsel %vm1160, %v1742, %v1743
      %s1746 = scalar_lea.vmem %s5, 320
      %v1747 = vld [vmem:[%s1746] sm:$0xf]
      %v1748 = vld [vmem:[%s1746 + $0x4] sm:$0xf]
      %v1749 = vld [vmem:[%s1746 + $0x8] sm:$0xf]
      %v1750 = vld [vmem:[%s1746 + $0xc] sm:$0xf]
      %v1751 = vld [vmem:[%s1746 + $0x10] sm:$0xf]
      %v1752 = vld [vmem:[%s1746 + $0x14] sm:$0xf]
      %v1753 = vld [vmem:[%s1746 + $0x18] sm:$0xf]
      %v1754 = vld [vmem:[%s1746 + $0x1c] sm:$0xf]
      %v1755 = vld [vmem:[%s1746 + $0x20] sm:$0xf]
      %v1756 = vld [vmem:[%s1746 + $0x24] sm:$0xf]
      %v1757 = vld [vmem:[%s1746 + $0x28] sm:$0xf]
      %v1758 = vld [vmem:[%s1746 + $0x2c] sm:$0xf]
      %v1759 = vld [vmem:[%s1746 + $0x30] sm:$0xf]
      %v1760 = vld [vmem:[%s1746 + $0x34] sm:$0xf]
      %v1761 = vld [vmem:[%s1746 + $0x38] sm:$0xf]
      %v1762 = vld [vmem:[%s1746 + $0x3c] sm:$0xf]
      %v1779 = vunpack.c.l.b16 %v1747
      %v1780 = vunpack.c.l.b16 %v1748
      %v1781 = vunpack.c.l.b16 %v1749
      %v1782 = vunpack.c.l.b16 %v1750
      %v1783 = vunpack.c.l.b16 %v1751
      %v1784 = vunpack.c.l.b16 %v1752
      %v1785 = vunpack.c.l.b16 %v1753
      %v1786 = vunpack.c.l.b16 %v1754
      %v1787 = vunpack.c.l.b16 %v1755
      %v1788 = vunpack.c.l.b16 %v1756
      %v1789 = vunpack.c.l.b16 %v1757
      %v1790 = vunpack.c.l.b16 %v1758
      %v1791 = vunpack.c.l.b16 %v1759
      %v1792 = vunpack.c.l.b16 %v1760
      %v1793 = vunpack.c.l.b16 %v1761
      %v1794 = vunpack.c.l.b16 %v1762
      %v1795 = vpack.c.b16 %v1780, %v1779
      %v1796 = vpack.c.b16 %v1782, %v1781
      %v1797 = vpack.c.b16 %v1784, %v1783
      %v1798 = vpack.c.b16 %v1786, %v1785
      %v1799 = vpack.c.b16 %v1788, %v1787
      %v1800 = vpack.c.b16 %v1790, %v1789
      %v1801 = vpack.c.b16 %v1792, %v1791
      %v1802 = vpack.c.b16 %v1794, %v1793
      %1811 = vmatprep.subr.bf16.mxu0 0
      %1812 = vmatpush1.bf16.msra.mxu0 %v1802
      %1813 = vmatprep.subr.bf16.mxu0 0
      %1814 = vmatpush1.bf16.msra.mxu0 %v1801
      %1815 = vmatprep.subr.bf16.mxu0 0
      %1816 = vmatpush1.bf16.msra.mxu0 %v1800
      %1817 = vmatprep.subr.bf16.mxu0 0
      %1818 = vmatpush1.bf16.msra.mxu0 %v1799
      %1819 = vmatprep.subr.bf16.mxu0 0
      %1820 = vmatpush1.bf16.msra.mxu0 %v1798
      %1821 = vmatprep.subr.bf16.mxu0 0
      %1822 = vmatpush1.bf16.msra.mxu0 %v1797
      %1823 = vmatprep.subr.bf16.mxu0 0
      %1824 = vmatpush1.bf16.msra.mxu0 %v1796
      %1825 = vmatprep.subr.bf16.mxu0 0
      %1826 = vmatpush1.bf16.msra.mxu0 %v1795
      %1827 = vmatprep.subr.bf16.mxu0 0
      %1828 = vmatpush2.bf16.msra.mxu0 0
      %1829 = vmatprep.subr.bf16.mxu0 0
      %1830 = vmatpush2.bf16.msra.mxu0 0
      %1831 = vmatprep.subr.bf16.mxu0 0
      %1832 = vmatpush2.bf16.msra.mxu0 0
      %1833 = vmatprep.subr.bf16.mxu0 0
      %1834 = vmatpush2.bf16.msra.mxu0 0
      %1835 = vmatprep.subr.bf16.mxu0 0
      %1836 = vmatpush2.bf16.msra.mxu0 0
      %1837 = vmatprep.subr.bf16.mxu0 0
      %1838 = vmatpush2.bf16.msra.mxu0 0
      %1839 = vmatprep.subr.bf16.mxu0 0
      %1840 = vmatpush2.bf16.msra.mxu0 0
      %1841 = vmatprep.subr.bf16.mxu0 0
      %1842 = vmatpush2.bf16.msra.mxu0 0
      %1843 = vmatprep.mubr.bf16.mxu0 0
      %1844 = vmatmul.mubr.bf16.gmra.mxu0 %v1166
      %v1845 = vpop.f32.mrf.mxu0
      %v1846 = vadd.f32 0.0, %v1845
      %v1847 = vpop.f32.mrf.mxu0
      %v1848 = vpop.f32.mrf.mxu0
      %v1849 = vadd.f32 0.0, %v1848
      %v1850 = vpop.f32.mrf.mxu0
      %1851 = vmatprep.mubr.bf16.mxu0 0
      %1852 = vmatmul.mubr.bf16.gmra.mxu0 %v1169
      %v1853 = vpop.f32.mrf.mxu0
      %v1854 = vadd.f32 0.0, %v1853
      %v1855 = vpop.f32.mrf.mxu0
      %v1856 = vpop.f32.mrf.mxu0
      %v1857 = vadd.f32 0.0, %v1856
      %v1858 = vpop.f32.mrf.mxu0
      %1859 = vmatprep.mubr.bf16.mxu0 0
      %1860 = vmatmul.mubr.bf16.gmra.mxu0 %v1172
      %v1861 = vpop.f32.mrf.mxu0
      %v1862 = vadd.f32 0.0, %v1861
      %v1863 = vpop.f32.mrf.mxu0
      %v1864 = vpop.f32.mrf.mxu0
      %v1865 = vadd.f32 0.0, %v1864
      %v1866 = vpop.f32.mrf.mxu0
      %1867 = vmatprep.mubr.bf16.mxu0 0
      %1868 = vmatmul.mubr.bf16.gmra.mxu0 %v1175
      %v1869 = vpop.f32.mrf.mxu0
      %v1870 = vadd.f32 0.0, %v1869
      %v1871 = vpop.f32.mrf.mxu0
      %v1872 = vpop.f32.mrf.mxu0
      %v1873 = vadd.f32 0.0, %v1872
      %v1874 = vpop.f32.mrf.mxu0
      %1875 = vmatprep.mubr.bf16.mxu0 0
      %1876 = vmatmul.mubr.bf16.gmra.mxu0 %v1178
      %v1877 = vpop.f32.mrf.mxu0
      %v1878 = vadd.f32 0.0, %v1877
      %v1879 = vpop.f32.mrf.mxu0
      %v1880 = vpop.f32.mrf.mxu0
      %v1881 = vadd.f32 0.0, %v1880
      %v1882 = vpop.f32.mrf.mxu0
      %1883 = vmatprep.mubr.bf16.mxu0 0
      %1884 = vmatmul.mubr.bf16.gmra.mxu0 %v1181
      %v1885 = vpop.f32.mrf.mxu0
      %v1886 = vadd.f32 0.0, %v1885
      %v1887 = vpop.f32.mrf.mxu0
      %v1888 = vpop.f32.mrf.mxu0
      %v1889 = vadd.f32 0.0, %v1888
      %v1890 = vpop.f32.mrf.mxu0
      %1891 = vmatprep.mubr.bf16.mxu0 0
      %1892 = vmatmul.mubr.bf16.gmra.mxu0 %v1184
      %v1893 = vpop.f32.mrf.mxu0
      %v1894 = vadd.f32 0.0, %v1893
      %v1895 = vpop.f32.mrf.mxu0
      %v1896 = vpop.f32.mrf.mxu0
      %v1897 = vadd.f32 0.0, %v1896
      %v1898 = vpop.f32.mrf.mxu0
      %1899 = vmatprep.mubr.bf16.mxu0 0
      %1900 = vmatmul.mubr.bf16.gmra.mxu0 %v1744
      %v1901 = vpop.f32.mrf.mxu0
      %v1902 = vadd.f32 0.0, %v1901
      %v1903 = vpop.f32.mrf.mxu0
      %v1904 = vpop.f32.mrf.mxu0
      %v1905 = vadd.f32 0.0, %v1904
      %v1906 = vpop.f32.mrf.mxu0
      %1907 = vdwg.mxu0
      %v1908 = vadd.f32 %v1724, %v1846
      %v1909 = vadd.f32 %v1725, %v1849
      %v1910 = vadd.f32 %v1726, %v1854
      %v1911 = vadd.f32 %v1727, %v1857
      %v1912 = vadd.f32 %v1728, %v1862
      %v1913 = vadd.f32 %v1729, %v1865
      %v1914 = vadd.f32 %v1730, %v1870
      %v1915 = vadd.f32 %v1731, %v1873
      %v1916 = vadd.f32 %v1732, %v1878
      %v1917 = vadd.f32 %v1733, %v1881
      %v1918 = vadd.f32 %v1734, %v1886
      %v1919 = vadd.f32 %v1735, %v1889
      %v1920 = vadd.f32 %v1736, %v1894
      %v1921 = vadd.f32 %v1737, %v1897
      %v1922 = vadd.f32 %v1738, %v1902
      %v1923 = vadd.f32 %v1739, %v1905
      %s1924 = scalar_lea.vmem %s5, 384
      %v1925 = vld [vmem:[%s1924] sm:$0xf]
      %v1926 = vld [vmem:[%s1924 + $0x4] sm:$0xf]
      %v1927 = vld [vmem:[%s1924 + $0x8] sm:$0xf]
      %v1928 = vld [vmem:[%s1924 + $0xc] sm:$0xf]
      %v1929 = vld [vmem:[%s1924 + $0x10] sm:$0xf]
      %v1930 = vld [vmem:[%s1924 + $0x14] sm:$0xf]
      %v1931 = vld [vmem:[%s1924 + $0x18] sm:$0xf]
      %v1932 = vld [vmem:[%s1924 + $0x1c] sm:$0xf]
      %v1933 = vld [vmem:[%s1924 + $0x20] sm:$0xf]
      %v1934 = vld [vmem:[%s1924 + $0x24] sm:$0xf]
      %v1935 = vld [vmem:[%s1924 + $0x28] sm:$0xf]
      %v1936 = vld [vmem:[%s1924 + $0x2c] sm:$0xf]
      %v1937 = vld [vmem:[%s1924 + $0x30] sm:$0xf]
      %v1938 = vld [vmem:[%s1924 + $0x34] sm:$0xf]
      %v1939 = vld [vmem:[%s1924 + $0x38] sm:$0xf]
      %v1940 = vld [vmem:[%s1924 + $0x3c] sm:$0xf]
      %v1957 = vunpack.c.l.b16 %v1925
      %v1958 = vunpack.c.l.b16 %v1926
      %v1959 = vunpack.c.l.b16 %v1927
      %v1960 = vunpack.c.l.b16 %v1928
      %v1961 = vunpack.c.l.b16 %v1929
      %v1962 = vunpack.c.l.b16 %v1930
      %v1963 = vunpack.c.l.b16 %v1931
      %v1964 = vunpack.c.l.b16 %v1932
      %v1965 = vunpack.c.l.b16 %v1933
      %v1966 = vunpack.c.l.b16 %v1934
      %v1967 = vunpack.c.l.b16 %v1935
      %v1968 = vunpack.c.l.b16 %v1936
      %v1969 = vunpack.c.l.b16 %v1937
      %v1970 = vunpack.c.l.b16 %v1938
      %v1971 = vunpack.c.l.b16 %v1939
      %v1972 = vunpack.c.l.b16 %v1940
      %v1973 = vpack.c.b16 %v1958, %v1957
      %v1974 = vpack.c.b16 %v1960, %v1959
      %v1975 = vpack.c.b16 %v1962, %v1961
      %v1976 = vpack.c.b16 %v1964, %v1963
      %v1977 = vpack.c.b16 %v1966, %v1965
      %v1978 = vpack.c.b16 %v1968, %v1967
      %v1979 = vpack.c.b16 %v1970, %v1969
      %v1980 = vpack.c.b16 %v1972, %v1971
      %1989 = vmatprep.subr.bf16.mxu0 0
      %1990 = vmatpush1.bf16.msra.mxu0 %v1980
      %1991 = vmatprep.subr.bf16.mxu0 0
      %1992 = vmatpush1.bf16.msra.mxu0 %v1979
      %1993 = vmatprep.subr.bf16.mxu0 0
      %1994 = vmatpush1.bf16.msra.mxu0 %v1978
      %1995 = vmatprep.subr.bf16.mxu0 0
      %1996 = vmatpush1.bf16.msra.mxu0 %v1977
      %1997 = vmatprep.subr.bf16.mxu0 0
      %1998 = vmatpush1.bf16.msra.mxu0 %v1976
      %1999 = vmatprep.subr.bf16.mxu0 0
      %2000 = vmatpush1.bf16.msra.mxu0 %v1975
      %2001 = vmatprep.subr.bf16.mxu0 0
      %2002 = vmatpush1.bf16.msra.mxu0 %v1974
      %2003 = vmatprep.subr.bf16.mxu0 0
      %2004 = vmatpush1.bf16.msra.mxu0 %v1973
      %2005 = vmatprep.subr.bf16.mxu0 0
      %2006 = vmatpush2.bf16.msra.mxu0 0
      %2007 = vmatprep.subr.bf16.mxu0 0
      %2008 = vmatpush2.bf16.msra.mxu0 0
      %2009 = vmatprep.subr.bf16.mxu0 0
      %2010 = vmatpush2.bf16.msra.mxu0 0
      %2011 = vmatprep.subr.bf16.mxu0 0
      %2012 = vmatpush2.bf16.msra.mxu0 0
      %2013 = vmatprep.subr.bf16.mxu0 0
      %2014 = vmatpush2.bf16.msra.mxu0 0
      %2015 = vmatprep.subr.bf16.mxu0 0
      %2016 = vmatpush2.bf16.msra.mxu0 0
      %2017 = vmatprep.subr.bf16.mxu0 0
      %2018 = vmatpush2.bf16.msra.mxu0 0
      %2019 = vmatprep.subr.bf16.mxu0 0
      %2020 = vmatpush2.bf16.msra.mxu0 0
      %2021 = vmatprep.mubr.bf16.mxu0 0
      %2022 = vmatmul.mubr.bf16.gmra.mxu0 %v700
      %v2023 = vpop.f32.mrf.mxu0
      %v2024 = vadd.f32 0.0, %v2023
      %v2025 = vpop.f32.mrf.mxu0
      %v2026 = vpop.f32.mrf.mxu0
      %v2027 = vadd.f32 0.0, %v2026
      %v2028 = vpop.f32.mrf.mxu0
      %2029 = vmatprep.mubr.bf16.mxu0 0
      %2030 = vmatmul.mubr.bf16.gmra.mxu0 %v702
      %v2031 = vpop.f32.mrf.mxu0
      %v2032 = vadd.f32 0.0, %v2031
      %v2033 = vpop.f32.mrf.mxu0
      %v2034 = vpop.f32.mrf.mxu0
      %v2035 = vadd.f32 0.0, %v2034
      %v2036 = vpop.f32.mrf.mxu0
      %2037 = vmatprep.mubr.bf16.mxu0 0
      %2038 = vmatmul.mubr.bf16.gmra.mxu0 %v704
      %v2039 = vpop.f32.mrf.mxu0
      %v2040 = vadd.f32 0.0, %v2039
      %v2041 = vpop.f32.mrf.mxu0
      %v2042 = vpop.f32.mrf.mxu0
      %v2043 = vadd.f32 0.0, %v2042
      %v2044 = vpop.f32.mrf.mxu0
      %2045 = vmatprep.mubr.bf16.mxu0 0
      %2046 = vmatmul.mubr.bf16.gmra.mxu0 %v706
      %v2047 = vpop.f32.mrf.mxu0
      %v2048 = vadd.f32 0.0, %v2047
      %v2049 = vpop.f32.mrf.mxu0
      %v2050 = vpop.f32.mrf.mxu0
      %v2051 = vadd.f32 0.0, %v2050
      %v2052 = vpop.f32.mrf.mxu0
      %2053 = vmatprep.mubr.bf16.mxu0 0
      %2054 = vmatmul.mubr.bf16.gmra.mxu0 %v708
      %v2055 = vpop.f32.mrf.mxu0
      %v2056 = vadd.f32 0.0, %v2055
      %v2057 = vpop.f32.mrf.mxu0
      %v2058 = vpop.f32.mrf.mxu0
      %v2059 = vadd.f32 0.0, %v2058
      %v2060 = vpop.f32.mrf.mxu0
      %2061 = vmatprep.mubr.bf16.mxu0 0
      %2062 = vmatmul.mubr.bf16.gmra.mxu0 %v710
      %v2063 = vpop.f32.mrf.mxu0
      %v2064 = vadd.f32 0.0, %v2063
      %v2065 = vpop.f32.mrf.mxu0
      %v2066 = vpop.f32.mrf.mxu0
      %v2067 = vadd.f32 0.0, %v2066
      %v2068 = vpop.f32.mrf.mxu0
      %2069 = vmatprep.mubr.bf16.mxu0 0
      %2070 = vmatmul.mubr.bf16.gmra.mxu0 %v712
      %v2071 = vpop.f32.mrf.mxu0
      %v2072 = vadd.f32 0.0, %v2071
      %v2073 = vpop.f32.mrf.mxu0
      %v2074 = vpop.f32.mrf.mxu0
      %v2075 = vadd.f32 0.0, %v2074
      %v2076 = vpop.f32.mrf.mxu0
      %2077 = vmatprep.mubr.bf16.mxu0 0
      %2078 = vmatmul.mubr.bf16.gmra.mxu0 %v714
      %v2079 = vpop.f32.mrf.mxu0
      %v2080 = vadd.f32 0.0, %v2079
      %v2081 = vpop.f32.mrf.mxu0
      %v2082 = vpop.f32.mrf.mxu0
      %v2083 = vadd.f32 0.0, %v2082
      %v2084 = vpop.f32.mrf.mxu0
      %2085 = vdwg.mxu0
      %v2086 = vadd.f32 %v1908, %v2024
      %v2087 = vadd.f32 %v1909, %v2027
      %v2088 = vadd.f32 %v1910, %v2032
      %v2089 = vadd.f32 %v1911, %v2035
      %v2090 = vadd.f32 %v1912, %v2040
      %v2091 = vadd.f32 %v1913, %v2043
      %v2092 = vadd.f32 %v1914, %v2048
      %v2093 = vadd.f32 %v1915, %v2051
      %v2094 = vadd.f32 %v1916, %v2056
      %v2095 = vadd.f32 %v1917, %v2059
      %v2096 = vadd.f32 %v1918, %v2064
      %v2097 = vadd.f32 %v1919, %v2067
      %v2098 = vadd.f32 %v1920, %v2072
      %v2099 = vadd.f32 %v1921, %v2075
      %v2100 = vadd.f32 %v1922, %v2080
      %v2101 = vadd.f32 %v1923, %v2083
      %v2103 = vshrl.u32 %v714, 16
      %v2105 = vshll.u32 %v714, 16
      %v2107 = vrot.slane %v2105, 1
      %v2108 = vor.u32 %v2103, %v2107
      %v2110 = vshll.u32 %v715, 16
      %v2112 = vrot.slane %v2110, 1
      %v2113 = vsel %vm732, %v2108, %v2112
      %s2115 = scalar_lea.vmem %s5, 448
      %v2116 = vld [vmem:[%s2115] sm:$0xf]
      %v2117 = vld [vmem:[%s2115 + $0x4] sm:$0xf]
      %v2118 = vld [vmem:[%s2115 + $0x8] sm:$0xf]
      %v2119 = vld [vmem:[%s2115 + $0xc] sm:$0xf]
      %v2120 = vld [vmem:[%s2115 + $0x10] sm:$0xf]
      %v2121 = vld [vmem:[%s2115 + $0x14] sm:$0xf]
      %v2122 = vld [vmem:[%s2115 + $0x18] sm:$0xf]
      %v2123 = vld [vmem:[%s2115 + $0x1c] sm:$0xf]
      %v2124 = vld [vmem:[%s2115 + $0x20] sm:$0xf]
      %v2125 = vld [vmem:[%s2115 + $0x24] sm:$0xf]
      %v2126 = vld [vmem:[%s2115 + $0x28] sm:$0xf]
      %v2127 = vld [vmem:[%s2115 + $0x2c] sm:$0xf]
      %v2128 = vld [vmem:[%s2115 + $0x30] sm:$0xf]
      %v2129 = vld [vmem:[%s2115 + $0x34] sm:$0xf]
      %v2130 = vld [vmem:[%s2115 + $0x38] sm:$0xf]
      %v2131 = vld [vmem:[%s2115 + $0x3c] sm:$0xf]
      %v2148 = vunpack.c.l.b16 %v2116
      %v2149 = vunpack.c.l.b16 %v2117
      %v2150 = vunpack.c.l.b16 %v2118
      %v2151 = vunpack.c.l.b16 %v2119
      %v2152 = vunpack.c.l.b16 %v2120
      %v2153 = vunpack.c.l.b16 %v2121
      %v2154 = vunpack.c.l.b16 %v2122
      %v2155 = vunpack.c.l.b16 %v2123
      %v2156 = vunpack.c.l.b16 %v2124
      %v2157 = vunpack.c.l.b16 %v2125
      %v2158 = vunpack.c.l.b16 %v2126
      %v2159 = vunpack.c.l.b16 %v2127
      %v2160 = vunpack.c.l.b16 %v2128
      %v2161 = vunpack.c.l.b16 %v2129
      %v2162 = vunpack.c.l.b16 %v2130
      %v2163 = vunpack.c.l.b16 %v2131
      %v2164 = vpack.c.b16 %v2149, %v2148
      %v2165 = vpack.c.b16 %v2151, %v2150
      %v2166 = vpack.c.b16 %v2153, %v2152
      %v2167 = vpack.c.b16 %v2155, %v2154
      %v2168 = vpack.c.b16 %v2157, %v2156
      %v2169 = vpack.c.b16 %v2159, %v2158
      %v2170 = vpack.c.b16 %v2161, %v2160
      %v2171 = vpack.c.b16 %v2163, %v2162
      %2180 = vmatprep.subr.bf16.mxu0 0
      %2181 = vmatpush1.bf16.msra.mxu0 %v2171
      %2182 = vmatprep.subr.bf16.mxu0 0
      %2183 = vmatpush1.bf16.msra.mxu0 %v2170
      %2184 = vmatprep.subr.bf16.mxu0 0
      %2185 = vmatpush1.bf16.msra.mxu0 %v2169
      %2186 = vmatprep.subr.bf16.mxu0 0
      %2187 = vmatpush1.bf16.msra.mxu0 %v2168
      %2188 = vmatprep.subr.bf16.mxu0 0
      %2189 = vmatpush1.bf16.msra.mxu0 %v2167
      %2190 = vmatprep.subr.bf16.mxu0 0
      %2191 = vmatpush1.bf16.msra.mxu0 %v2166
      %2192 = vmatprep.subr.bf16.mxu0 0
      %2193 = vmatpush1.bf16.msra.mxu0 %v2165
      %2194 = vmatprep.subr.bf16.mxu0 0
      %2195 = vmatpush1.bf16.msra.mxu0 %v2164
      %2196 = vmatprep.subr.bf16.mxu0 0
      %2197 = vmatpush2.bf16.msra.mxu0 0
      %2198 = vmatprep.subr.bf16.mxu0 0
      %2199 = vmatpush2.bf16.msra.mxu0 0
      %2200 = vmatprep.subr.bf16.mxu0 0
      %2201 = vmatpush2.bf16.msra.mxu0 0
      %2202 = vmatprep.subr.bf16.mxu0 0
      %2203 = vmatpush2.bf16.msra.mxu0 0
      %2204 = vmatprep.subr.bf16.mxu0 0
      %2205 = vmatpush2.bf16.msra.mxu0 0
      %2206 = vmatprep.subr.bf16.mxu0 0
      %2207 = vmatpush2.bf16.msra.mxu0 0
      %2208 = vmatprep.subr.bf16.mxu0 0
      %2209 = vmatpush2.bf16.msra.mxu0 0
      %2210 = vmatprep.subr.bf16.mxu0 0
      %2211 = vmatpush2.bf16.msra.mxu0 0
      %2212 = vmatprep.mubr.bf16.mxu0 0
      %2213 = vmatmul.mubr.bf16.gmra.mxu0 %v768
      %v2214 = vpop.f32.mrf.mxu0
      %v2215 = vadd.f32 0.0, %v2214
      %v2216 = vpop.f32.mrf.mxu0
      %v2217 = vpop.f32.mrf.mxu0
      %v2218 = vadd.f32 0.0, %v2217
      %v2219 = vpop.f32.mrf.mxu0
      %2220 = vmatprep.mubr.bf16.mxu0 0
      %2221 = vmatmul.mubr.bf16.gmra.mxu0 %v780
      %v2222 = vpop.f32.mrf.mxu0
      %v2223 = vadd.f32 0.0, %v2222
      %v2224 = vpop.f32.mrf.mxu0
      %v2225 = vpop.f32.mrf.mxu0
      %v2226 = vadd.f32 0.0, %v2225
      %v2227 = vpop.f32.mrf.mxu0
      %2228 = vmatprep.mubr.bf16.mxu0 0
      %2229 = vmatmul.mubr.bf16.gmra.mxu0 %v792
      %v2230 = vpop.f32.mrf.mxu0
      %v2231 = vadd.f32 0.0, %v2230
      %v2232 = vpop.f32.mrf.mxu0
      %v2233 = vpop.f32.mrf.mxu0
      %v2234 = vadd.f32 0.0, %v2233
      %v2235 = vpop.f32.mrf.mxu0
      %2236 = vmatprep.mubr.bf16.mxu0 0
      %2237 = vmatmul.mubr.bf16.gmra.mxu0 %v804
      %v2238 = vpop.f32.mrf.mxu0
      %v2239 = vadd.f32 0.0, %v2238
      %v2240 = vpop.f32.mrf.mxu0
      %v2241 = vpop.f32.mrf.mxu0
      %v2242 = vadd.f32 0.0, %v2241
      %v2243 = vpop.f32.mrf.mxu0
      %2244 = vmatprep.mubr.bf16.mxu0 0
      %2245 = vmatmul.mubr.bf16.gmra.mxu0 %v816
      %v2246 = vpop.f32.mrf.mxu0
      %v2247 = vadd.f32 0.0, %v2246
      %v2248 = vpop.f32.mrf.mxu0
      %v2249 = vpop.f32.mrf.mxu0
      %v2250 = vadd.f32 0.0, %v2249
      %v2251 = vpop.f32.mrf.mxu0
      %2252 = vmatprep.mubr.bf16.mxu0 0
      %2253 = vmatmul.mubr.bf16.gmra.mxu0 %v828
      %v2254 = vpop.f32.mrf.mxu0
      %v2255 = vadd.f32 0.0, %v2254
      %v2256 = vpop.f32.mrf.mxu0
      %v2257 = vpop.f32.mrf.mxu0
      %v2258 = vadd.f32 0.0, %v2257
      %v2259 = vpop.f32.mrf.mxu0
      %2260 = vmatprep.mubr.bf16.mxu0 0
      %2261 = vmatmul.mubr.bf16.gmra.mxu0 %v1560
      %v2262 = vpop.f32.mrf.mxu0
      %v2263 = vadd.f32 0.0, %v2262
      %v2264 = vpop.f32.mrf.mxu0
      %v2265 = vpop.f32.mrf.mxu0
      %v2266 = vadd.f32 0.0, %v2265
      %v2267 = vpop.f32.mrf.mxu0
      %2268 = vmatprep.mubr.bf16.mxu0 0
      %2269 = vmatmul.mubr.bf16.gmra.mxu0 %v2113
      %v2270 = vpop.f32.mrf.mxu0
      %v2271 = vadd.f32 0.0, %v2270
      %v2272 = vpop.f32.mrf.mxu0
      %v2273 = vpop.f32.mrf.mxu0
      %v2274 = vadd.f32 0.0, %v2273
      %v2275 = vpop.f32.mrf.mxu0
      %2276 = vdwg.mxu0
      %v2277 = vadd.f32 %v2086, %v2215
      %v2278 = vadd.f32 %v2087, %v2218
      %v2279 = vadd.f32 %v2088, %v2223
      %v2280 = vadd.f32 %v2089, %v2226
      %v2281 = vadd.f32 %v2090, %v2231
      %v2282 = vadd.f32 %v2091, %v2234
      %v2283 = vadd.f32 %v2092, %v2239
      %v2284 = vadd.f32 %v2093, %v2242
      %v2285 = vadd.f32 %v2094, %v2247
      %v2286 = vadd.f32 %v2095, %v2250
      %v2287 = vadd.f32 %v2096, %v2255
      %v2288 = vadd.f32 %v2097, %v2258
      %v2289 = vadd.f32 %v2098, %v2263
      %v2290 = vadd.f32 %v2099, %v2266
      %v2291 = vadd.f32 %v2100, %v2271
      %v2292 = vadd.f32 %v2101, %v2274
      %v2295 = vrot.slane %v714, 1
      %v2296 = vrot.slane %v715, 1
      %v2297 = vsel %vm1160, %v2295, %v2296
      %s2299 = scalar_lea.vmem %s5, 512
      %v2300 = vld [vmem:[%s2299] sm:$0xf]
      %v2301 = vld [vmem:[%s2299 + $0x4] sm:$0xf]
      %v2302 = vld [vmem:[%s2299 + $0x8] sm:$0xf]
      %v2303 = vld [vmem:[%s2299 + $0xc] sm:$0xf]
      %v2304 = vld [vmem:[%s2299 + $0x10] sm:$0xf]
      %v2305 = vld [vmem:[%s2299 + $0x14] sm:$0xf]
      %v2306 = vld [vmem:[%s2299 + $0x18] sm:$0xf]
      %v2307 = vld [vmem:[%s2299 + $0x1c] sm:$0xf]
      %v2308 = vld [vmem:[%s2299 + $0x20] sm:$0xf]
      %v2309 = vld [vmem:[%s2299 + $0x24] sm:$0xf]
      %v2310 = vld [vmem:[%s2299 + $0x28] sm:$0xf]
      %v2311 = vld [vmem:[%s2299 + $0x2c] sm:$0xf]
      %v2312 = vld [vmem:[%s2299 + $0x30] sm:$0xf]
      %v2313 = vld [vmem:[%s2299 + $0x34] sm:$0xf]
      %v2314 = vld [vmem:[%s2299 + $0x38] sm:$0xf]
      %v2315 = vld [vmem:[%s2299 + $0x3c] sm:$0xf]
      %v2332 = vunpack.c.l.b16 %v2300
      %v2333 = vunpack.c.l.b16 %v2301
      %v2334 = vunpack.c.l.b16 %v2302
      %v2335 = vunpack.c.l.b16 %v2303
      %v2336 = vunpack.c.l.b16 %v2304
      %v2337 = vunpack.c.l.b16 %v2305
      %v2338 = vunpack.c.l.b16 %v2306
      %v2339 = vunpack.c.l.b16 %v2307
      %v2340 = vunpack.c.l.b16 %v2308
      %v2341 = vunpack.c.l.b16 %v2309
      %v2342 = vunpack.c.l.b16 %v2310
      %v2343 = vunpack.c.l.b16 %v2311
      %v2344 = vunpack.c.l.b16 %v2312
      %v2345 = vunpack.c.l.b16 %v2313
      %v2346 = vunpack.c.l.b16 %v2314
      %v2347 = vunpack.c.l.b16 %v2315
      %v2348 = vpack.c.b16 %v2333, %v2332
      %v2349 = vpack.c.b16 %v2335, %v2334
      %v2350 = vpack.c.b16 %v2337, %v2336
      %v2351 = vpack.c.b16 %v2339, %v2338
      %v2352 = vpack.c.b16 %v2341, %v2340
      %v2353 = vpack.c.b16 %v2343, %v2342
      %v2354 = vpack.c.b16 %v2345, %v2344
      %v2355 = vpack.c.b16 %v2347, %v2346
      %2364 = vmatprep.subr.bf16.mxu0 0
      %2365 = vmatpush1.bf16.msra.mxu0 %v2355
      %2366 = vmatprep.subr.bf16.mxu0 0
      %2367 = vmatpush1.bf16.msra.mxu0 %v2354
      %2368 = vmatprep.subr.bf16.mxu0 0
      %2369 = vmatpush1.bf16.msra.mxu0 %v2353
      %2370 = vmatprep.subr.bf16.mxu0 0
      %2371 = vmatpush1.bf16.msra.mxu0 %v2352
      %2372 = vmatprep.subr.bf16.mxu0 0
      %2373 = vmatpush1.bf16.msra.mxu0 %v2351
      %2374 = vmatprep.subr.bf16.mxu0 0
      %2375 = vmatpush1.bf16.msra.mxu0 %v2350
      %2376 = vmatprep.subr.bf16.mxu0 0
      %2377 = vmatpush1.bf16.msra.mxu0 %v2349
      %2378 = vmatprep.subr.bf16.mxu0 0
      %2379 = vmatpush1.bf16.msra.mxu0 %v2348
      %2380 = vmatprep.subr.bf16.mxu0 0
      %2381 = vmatpush2.bf16.msra.mxu0 0
      %2382 = vmatprep.subr.bf16.mxu0 0
      %2383 = vmatpush2.bf16.msra.mxu0 0
      %2384 = vmatprep.subr.bf16.mxu0 0
      %2385 = vmatpush2.bf16.msra.mxu0 0
      %2386 = vmatprep.subr.bf16.mxu0 0
      %2387 = vmatpush2.bf16.msra.mxu0 0
      %2388 = vmatprep.subr.bf16.mxu0 0
      %2389 = vmatpush2.bf16.msra.mxu0 0
      %2390 = vmatprep.subr.bf16.mxu0 0
      %2391 = vmatpush2.bf16.msra.mxu0 0
      %2392 = vmatprep.subr.bf16.mxu0 0
      %2393 = vmatpush2.bf16.msra.mxu0 0
      %2394 = vmatprep.subr.bf16.mxu0 0
      %2395 = vmatpush2.bf16.msra.mxu0 0
      %2396 = vmatprep.mubr.bf16.mxu0 0
      %2397 = vmatmul.mubr.bf16.gmra.mxu0 %v1169
      %v2398 = vpop.f32.mrf.mxu0
      %v2399 = vadd.f32 0.0, %v2398
      %v2400 = vpop.f32.mrf.mxu0
      %v2401 = vpop.f32.mrf.mxu0
      %v2402 = vadd.f32 0.0, %v2401
      %v2403 = vpop.f32.mrf.mxu0
      %2404 = vmatprep.mubr.bf16.mxu0 0
      %2405 = vmatmul.mubr.bf16.gmra.mxu0 %v1172
      %v2406 = vpop.f32.mrf.mxu0
      %v2407 = vadd.f32 0.0, %v2406
      %v2408 = vpop.f32.mrf.mxu0
      %v2409 = vpop.f32.mrf.mxu0
      %v2410 = vadd.f32 0.0, %v2409
      %v2411 = vpop.f32.mrf.mxu0
      %2412 = vmatprep.mubr.bf16.mxu0 0
      %2413 = vmatmul.mubr.bf16.gmra.mxu0 %v1175
      %v2414 = vpop.f32.mrf.mxu0
      %v2415 = vadd.f32 0.0, %v2414
      %v2416 = vpop.f32.mrf.mxu0
      %v2417 = vpop.f32.mrf.mxu0
      %v2418 = vadd.f32 0.0, %v2417
      %v2419 = vpop.f32.mrf.mxu0
      %2420 = vmatprep.mubr.bf16.mxu0 0
      %2421 = vmatmul.mubr.bf16.gmra.mxu0 %v1178
      %v2422 = vpop.f32.mrf.mxu0
      %v2423 = vadd.f32 0.0, %v2422
      %v2424 = vpop.f32.mrf.mxu0
      %v2425 = vpop.f32.mrf.mxu0
      %v2426 = vadd.f32 0.0, %v2425
      %v2427 = vpop.f32.mrf.mxu0
      %2428 = vmatprep.mubr.bf16.mxu0 0
      %2429 = vmatmul.mubr.bf16.gmra.mxu0 %v1181
      %v2430 = vpop.f32.mrf.mxu0
      %v2431 = vadd.f32 0.0, %v2430
      %v2432 = vpop.f32.mrf.mxu0
      %v2433 = vpop.f32.mrf.mxu0
      %v2434 = vadd.f32 0.0, %v2433
      %v2435 = vpop.f32.mrf.mxu0
      %2436 = vmatprep.mubr.bf16.mxu0 0
      %2437 = vmatmul.mubr.bf16.gmra.mxu0 %v1184
      %v2438 = vpop.f32.mrf.mxu0
      %v2439 = vadd.f32 0.0, %v2438
      %v2440 = vpop.f32.mrf.mxu0
      %v2441 = vpop.f32.mrf.mxu0
      %v2442 = vadd.f32 0.0, %v2441
      %v2443 = vpop.f32.mrf.mxu0
      %2444 = vmatprep.mubr.bf16.mxu0 0
      %2445 = vmatmul.mubr.bf16.gmra.mxu0 %v1744
      %v2446 = vpop.f32.mrf.mxu0
      %v2447 = vadd.f32 0.0, %v2446
      %v2448 = vpop.f32.mrf.mxu0
      %v2449 = vpop.f32.mrf.mxu0
      %v2450 = vadd.f32 0.0, %v2449
      %v2451 = vpop.f32.mrf.mxu0
      %2452 = vmatprep.mubr.bf16.mxu0 0
      %2453 = vmatmul.mubr.bf16.gmra.mxu0 %v2297
      %v2454 = vpop.f32.mrf.mxu0
      %v2455 = vadd.f32 0.0, %v2454
      %v2456 = vpop.f32.mrf.mxu0
      %v2457 = vpop.f32.mrf.mxu0
      %v2458 = vadd.f32 0.0, %v2457
      %v2459 = vpop.f32.mrf.mxu0
      %2460 = vdwg.mxu0
      %v2461 = vadd.f32 %v2277, %v2399
      %v2462 = vadd.f32 %v2278, %v2402
      %v2463 = vadd.f32 %v2279, %v2407
      %v2464 = vadd.f32 %v2280, %v2410
      %v2465 = vadd.f32 %v2281, %v2415
      %v2466 = vadd.f32 %v2282, %v2418
      %v2467 = vadd.f32 %v2283, %v2423
      %v2468 = vadd.f32 %v2284, %v2426
      %v2469 = vadd.f32 %v2285, %v2431
      %v2470 = vadd.f32 %v2286, %v2434
      %v2471 = vadd.f32 %v2287, %v2439
      %v2472 = vadd.f32 %v2288, %v2442
      %v2473 = vadd.f32 %v2289, %v2447
      %v2474 = vadd.f32 %v2290, %v2450
      %v2475 = vadd.f32 %v2291, %v2455
      %v2476 = vadd.f32 %v2292, %v2458
      %v2477 = vpack.c.bf16 %v2462, %v2461
      %v2478 = vpack.c.bf16 %v2464, %v2463
      %v2479 = vpack.c.bf16 %v2466, %v2465
      %v2480 = vpack.c.bf16 %v2468, %v2467
      %v2481 = vpack.c.bf16 %v2470, %v2469
      %v2482 = vpack.c.bf16 %v2472, %v2471
      %v2483 = vpack.c.bf16 %v2474, %v2473
      %v2484 = vpack.c.bf16 %v2476, %v2475
      %v2493 = vunpack.c.l.b16 %v2477
      %v2494 = vunpack.c.h.b16 %v2477
      %v2495 = vunpack.c.l.b16 %v2478
      %v2496 = vunpack.c.h.b16 %v2478
      %v2497 = vunpack.c.l.b16 %v2479
      %v2498 = vunpack.c.h.b16 %v2479
      %v2499 = vunpack.c.l.b16 %v2480
      %v2500 = vunpack.c.h.b16 %v2480
      %v2501 = vunpack.c.l.b16 %v2481
      %v2502 = vunpack.c.h.b16 %v2481
      %v2503 = vunpack.c.l.b16 %v2482
      %v2504 = vunpack.c.h.b16 %v2482
      %v2505 = vunpack.c.l.b16 %v2483
      %v2506 = vunpack.c.h.b16 %v2483
      %v2507 = vunpack.c.l.b16 %v2484
      %v2508 = vunpack.c.h.b16 %v2484
      %v2509 = vpack.c.b16 %v2493, %v2493
      %v2510 = vpack.c.b16 %v2494, %v2494
      %v2511 = vpack.c.b16 %v2495, %v2495
      %v2512 = vpack.c.b16 %v2496, %v2496
      %v2513 = vpack.c.b16 %v2497, %v2497
      %v2514 = vpack.c.b16 %v2498, %v2498
      %v2515 = vpack.c.b16 %v2499, %v2499
      %v2516 = vpack.c.b16 %v2500, %v2500
      %v2517 = vpack.c.b16 %v2501, %v2501
      %v2518 = vpack.c.b16 %v2502, %v2502
      %v2519 = vpack.c.b16 %v2503, %v2503
      %v2520 = vpack.c.b16 %v2504, %v2504
      %v2521 = vpack.c.b16 %v2505, %v2505
      %v2522 = vpack.c.b16 %v2506, %v2506
      %v2523 = vpack.c.b16 %v2507, %v2507
      %v2524 = vpack.c.b16 %v2508, %v2508
      %2541 = vst [vmem:[%s458] sm:$0xf] %v2509
      %2542 = vst [vmem:[%s458 + $0x4] sm:$0xf] %v2510
      %2543 = vst [vmem:[%s458 + $0x8] sm:$0xf] %v2511
      %2544 = vst [vmem:[%s458 + $0xc] sm:$0xf] %v2512
      %2545 = vst [vmem:[%s458 + $0x10] sm:$0xf] %v2513
      %2546 = vst [vmem:[%s458 + $0x14] sm:$0xf] %v2514
      %2547 = vst [vmem:[%s458 + $0x18] sm:$0xf] %v2515
      %2548 = vst [vmem:[%s458 + $0x1c] sm:$0xf] %v2516
      %2549 = vst [vmem:[%s458 + $0x20] sm:$0xf] %v2517
      %2550 = vst [vmem:[%s458 + $0x24] sm:$0xf] %v2518
      %2551 = vst [vmem:[%s458 + $0x28] sm:$0xf] %v2519
      %2552 = vst [vmem:[%s458 + $0x2c] sm:$0xf] %v2520
      %2553 = vst [vmem:[%s458 + $0x30] sm:$0xf] %v2521
      %2554 = vst [vmem:[%s458 + $0x34] sm:$0xf] %v2522
      %2555 = vst [vmem:[%s458 + $0x38] sm:$0xf] %v2523
      %2556 = vst [vmem:[%s458 + $0x3c] sm:$0xf] %v2524
      %v2557 = vadd.f32 %v2461, %v2462
      %v2558 = vadd.f32 %v2557, %v2463
      %v2559 = vadd.f32 %v2558, %v2464
      %v2560 = vadd.f32 %v2559, %v2465
      %v2561 = vadd.f32 %v2560, %v2466
      %v2562 = vadd.f32 %v2561, %v2467
      %v2563 = vadd.f32 %v2562, %v2468
      %v2564 = vadd.f32 %v2563, %v2469
      %v2565 = vadd.f32 %v2564, %v2470
      %v2566 = vadd.f32 %v2565, %v2471
      %v2567 = vadd.f32 %v2566, %v2472
      %v2568 = vadd.f32 %v2567, %v2473
      %v2569 = vadd.f32 %v2568, %v2474
      %v2570 = vadd.f32 %v2569, %v2475
      %v2571 = vadd.f32 %v2570, %v2476
      %v2572 = vrot.slane %v2571, 4
      %v2573 = vadd.f32 %v2571, %v2572
      %v2574 = vrot.slane %v2573, 2
      %v2575 = vadd.f32 %v2573, %v2574
      %v2576 = vrot.slane %v2575, 1
      %v2577 = vadd.f32 %v2575, %v2576
      %v2578 = vmul.f32 %v2461, %v2461
      %v2579 = vmul.f32 %v2462, %v2462
      %v2580 = vmul.f32 %v2463, %v2463
      %v2581 = vmul.f32 %v2464, %v2464
      %v2582 = vmul.f32 %v2465, %v2465
      %v2583 = vmul.f32 %v2466, %v2466
      %v2584 = vmul.f32 %v2467, %v2467
      %v2585 = vmul.f32 %v2468, %v2468
      %v2586 = vmul.f32 %v2469, %v2469
      %v2587 = vmul.f32 %v2470, %v2470
      %v2588 = vmul.f32 %v2471, %v2471
      %v2589 = vmul.f32 %v2472, %v2472
      %v2590 = vmul.f32 %v2473, %v2473
      %v2591 = vmul.f32 %v2474, %v2474
      %v2592 = vmul.f32 %v2475, %v2475
      %v2593 = vmul.f32 %v2476, %v2476
      %v2594 = vadd.f32 %v2578, %v2579
      %v2595 = vadd.f32 %v2594, %v2580
      %v2596 = vadd.f32 %v2595, %v2581
      %v2597 = vadd.f32 %v2596, %v2582
      %v2598 = vadd.f32 %v2597, %v2583
      %v2599 = vadd.f32 %v2598, %v2584
      %v2600 = vadd.f32 %v2599, %v2585
      %v2601 = vadd.f32 %v2600, %v2586
      %v2602 = vadd.f32 %v2601, %v2587
      %v2603 = vadd.f32 %v2602, %v2588
      %v2604 = vadd.f32 %v2603, %v2589
      %v2605 = vadd.f32 %v2604, %v2590
      %v2606 = vadd.f32 %v2605, %v2591
      %v2607 = vadd.f32 %v2606, %v2592
      %v2608 = vadd.f32 %v2607, %v2593
      %v2609 = vrot.slane %v2608, 4
      %v2610 = vadd.f32 %v2608, %v2609
      %v2611 = vrot.slane %v2610, 2
      %v2612 = vadd.f32 %v2610, %v2611
      %v2613 = vrot.slane %v2612, 1
      %v2614 = vadd.f32 %v2612, %v2613
      %v2615 = vsel %vm615, %v2577, %v2614
      %2616 = vst [vmem:[%s467] sm:$0x3] %v2615
      %s2617 = smul.u32 8, %s24
      %p2618 = scmp.lt.s32.totalorder %s23, 1
      %s2619 = scalar_select %p2618, %s23, 1
      %p2620 = scmp.lt.s32.totalorder %s2617, 15
      %s2621 = scalar_select %p2620, %s2617, 15
      %s2622 = smul.addr %s2621, 2
      %s2623 = smul.addr %s2619, 32
      %s2624 = sadd.s32 %s2622, %s2623
      %s2625 = smul.addr %s2624, 4
      %s2626 = scalar_lea.vmem %s6, %s2625
      %p2627 = scmp.lt.s32.totalorder %s23, 1
      %s2628 = scalar_select %p2627, %s23, 1
      %p2629 = scmp.lt.s32.totalorder %s24, 1
      %s2630 = scalar_select %p2629, %s24, 1
      %s2631 = smul.addr %s2628, 2
      %s2632 = sadd.s32 %s2630, %s2631
      %s2633 = smul.addr %s2632, 2
      %s2634 = scalar_lea.vmem %s7, %s2633
      // Predicated region
      $region45: #{bottleneck_pallas.5} parent=43 // pred_check
        %p2635 = pneg %p214
      $region46: #{bottleneck_pallas.5} parent=43 // pred_check_branch
        %2637 = sbr.rel (%p2635) target = $region48
      $region47: #{bottleneck_pallas.5} parent=43 // pred_region
        %s2638 = smul.u32 8, %s24
      $region48: #{bottleneck_pallas.5} parent=43 // pred_fallthru
        _
      // Predicated region
      $region49: #{bottleneck_pallas.5} parent=43 // pred_check
        %p2639 = pneg %p242
      $region50: #{bottleneck_pallas.5} parent=43 // pred_check_branch
        %2641 = sbr.rel (%p2639) target = $region52
      $region51: #{bottleneck_pallas.5} parent=43 // pred_region
        _
      $region52: #{bottleneck_pallas.5} parent=43 // pred_fallthru
        _
    $region44: #{bottleneck_pallas.5} parent=5 // pred_fallthru
      _
    %p2642 = scmp.le.s32.totalorder 2, %s14
    // Predicated region
    $region53: #{bottleneck_pallas.5} parent=5 // pred_check
      %p2643 = pneg %p2642
    $region54: #{bottleneck_pallas.5} parent=5 // pred_check_branch
      %2645 = sbr.rel (%p2643) target = $region56
    $region55: #{bottleneck_pallas.5} parent=5 // pred_region
      %s2646 = ssub.s32 %s14, 2
      // Predicated region
      $region57: #{bottleneck_pallas.5} parent=55 // pred_check
        %p2647 = pneg %p220
      $region58: #{bottleneck_pallas.5} parent=55 // pred_check_branch
        %2649 = sbr.rel (%p2647) target = $region60
      $region59: #{bottleneck_pallas.5} parent=55 // pred_region
        %s2650 = smul.u32 8, %s26
        %p2651 = scmp.lt.s32.totalorder %s25, 1
        %s2652 = scalar_select %p2651, %s25, 1
        %p2653 = scmp.lt.s32.totalorder %s2650, 15
        %s2654 = scalar_select %p2653, %s2650, 15
        %s2655 = smul.addr %s2654, 2
        %s2656 = smul.addr %s2652, 32
        %s2657 = sadd.s32 %s2655, %s2656
        %s2658 = smul.addr %s2657, 4
        %s2659 = scalar_lea.vmem %s6, %s2658
      $region60: #{bottleneck_pallas.5} parent=55 // pred_fallthru
        _
      // Predicated region
      $region61: #{bottleneck_pallas.5} parent=55 // pred_check
        %p2660 = pneg %p248
      $region62: #{bottleneck_pallas.5} parent=55 // pred_check_branch
        %2662 = sbr.rel (%p2660) target = $region64
      $region63: #{bottleneck_pallas.5} parent=55 // pred_region
        %p2663 = scmp.lt.s32.totalorder %s25, 1
        %s2664 = scalar_select %p2663, %s25, 1
        %p2665 = scmp.lt.s32.totalorder %s26, 1
        %s2666 = scalar_select %p2665, %s26, 1
        %s2667 = smul.addr %s2664, 2
        %s2668 = sadd.s32 %s2666, %s2667
        %s2669 = smul.addr %s2668, 2
        %s2670 = scalar_lea.vmem %s7, %s2669
      $region64: #{bottleneck_pallas.5} parent=55 // pred_fallthru
        _
    $region56: #{bottleneck_pallas.5} parent=5 // pred_fallthru
      _
  $region6: #{bottleneck_pallas.5} parent=0 // loop_footer
    %s18 = sadd.s32 1, %s14
  $region7: #{bottleneck_pallas.5} parent=0 // loop_footer_branch
    %13 = sbr.rel target = $region3
  $region8: #{bottleneck_pallas.5} parent=0 // loop_exit
    _

</llo_original>
